<compile_context>
chip_gen: v6e
topology: v6e:2x2x1
jax: 0.10.0
libtpu: 0.0.40
codegen_flags: <defaults>
</compile_context>

<pallas_src>
import functools

import jax
import jax.numpy as jnp
from jax import lax
from jax.experimental import pallas as pl
from jax.experimental.pallas import tpu as pltpu

HIDDEN = 50                     # nn.Linear hidden_size default from the module
NEG_SLOPE = 0.01                # nn.LeakyReLU default negative_slope
LANE = 128                      # TPU lane width
MAX_TB = 4096                   # hard cap on the batch tile
VMEM_BUDGET = 24 * 1024 * 1024  # target live VMEM bytes (fits v5e/v6e/v7x)
VMEM_LIMIT = 48 * 1024 * 1024   # scoped VMEM limit handed to Mosaic (< v7x 64 MiB phys)


def _round_up(x, m):
    return ((x + m - 1) // m) * m


def _leaky_relu(x):
    return jnp.where(x > 0, x, NEG_SLOPE * x)


def _mlp_kernel(x_ref,
                w1_ref, b1_ref,
                w2_ref, b2_ref,
                w3_ref, b3_ref,
                w4t_ref, b4_ref,
                o_ref):
    # x streamed f32 from HBM; cast to bf16 here (in VMEM) instead of materializing a
    # bf16 copy of x in HBM on the wrapper side.
    x = x_ref[...].astype(jnp.bfloat16)

    # Layer 1: bf16 x bf16 on the MXU, f32 accumulate.  Padded hidden columns of W1/b1
    # are zero, so the padded part of h stays exactly zero through every layer.
    h = jnp.dot(x, w1_ref[...], preferred_element_type=jnp.float32)
    h = _leaky_relu(h + b1_ref[...])

    h = jnp.dot(h.astype(jnp.bfloat16), w2_ref[...],
                preferred_element_type=jnp.float32)
    h = _leaky_relu(h + b2_ref[...])

    h = jnp.dot(h.astype(jnp.bfloat16), w3_ref[...],
                preferred_element_type=jnp.float32)
    h = _leaky_relu(h + b3_ref[...])

    # Final layer as (1, Hp) x (TB, Hp)^T -> (1, TB): batch lands on the lane axis so the
    # output store is lane-dense (unmasked).  h fed as bf16 so any transpose/copy of it
    # is half-width.
    z = lax.dot_general(w4t_ref[...], h.astype(jnp.bfloat16),
                        dimension_numbers=(((1,), (1,)), ((), ())),
                        preferred_element_type=jnp.float32) + b4_ref[...]

    # Sigmoid with the exact reciprocal (epilogue is only (1, TB) elements) so the output
    # stays in [0, 1] like torch.sigmoid.
    o_ref[...] = (1.0 / (1.0 + jnp.exp(-z))).astype(o_ref.dtype)


def _pick_tile(B, D, Hp):
    """Batch tile: multiple of 128, sized from an explicit VMEM live-bytes budget."""
    # Live bytes ~= single-buffered weights/biases
    #            + double-buffered f32 x tile + in-kernel bf16 copy of that tile
    #            + ~4 f32 (TB, Hp) intermediates.
    fixed = D * Hp * 2 + 2 * Hp * Hp * 2 + Hp * 2 + 4 * Hp * 4 + 4
    per_row = 2 * D * 4 + D * 2 + 4 * Hp * 4
    tb = (VMEM_BUDGET - fixed) // per_row
    tb = max(LANE, min(MAX_TB, tb) // LANE * LANE)

    b_aligned = _round_up(B, LANE)
    tb = min(tb, b_aligned)

    # v7x megacore: guarantee >= 2 batch tiles when the batch allows it, so
    # dimension_semantics=("parallel",) can actually use both TensorCores.
    if b_aligned >= 2 * LANE:
        tb = min(tb, max(LANE, (b_aligned // 2) // LANE * LANE))
    return tb


@functools.lru_cache(maxsize=None)
def _build_forward(B, D, Hp, TB, single_buffer_weights):
    n_tiles = int(pl.cdiv(B, TB))
    rep = lambda i: (0, 0)  # weights/biases replicated across the batch-tile grid

    def wspec(shape):
        # Grid-invariant operands: constant index_map, so one pipeline buffer suffices
        # (the default second buffer would waste D*Hp*2 bytes for W1 alone).
        if single_buffer_weights:
            return pl.BlockSpec(shape, rep, pipeline_mode=pl.Buffered(1))
        return pl.BlockSpec(shape, rep)

    cost = pl.CostEstimate(
        flops=2 * B * (D * Hp + 2 * Hp * Hp + Hp),
        transcendentals=B,
        bytes_accessed=(B * D * 4            # x (f32, streamed)
                        + D * Hp * 2         # W1 (bf16)
                        + 2 * Hp * Hp * 2    # W2, W3 (bf16)
                        + 5 * Hp * 4         # biases + W4^T (approx)
                        + B * 4),            # output
    )

    call = pl.pallas_call(
        _mlp_kernel,
        out_shape=jax.ShapeDtypeStruct((1, B), jnp.float32),
        grid=(n_tiles,),
        in_specs=[
            pl.BlockSpec((TB, D), lambda i: (i, 0)),   # x tile (f32; cast in-kernel)
            wspec((D, Hp)),                            # W1 (bf16)
            wspec((1, Hp)),                            # b1
            wspec((Hp, Hp)),                           # W2 (bf16)
            wspec((1, Hp)),                            # b2
            wspec((Hp, Hp)),                           # W3 (bf16)
            wspec((1, Hp)),                            # b3
            wspec((1, Hp)),                            # W4^T (bf16)
            wspec((1, 1)),                             # b4
        ],
        out_specs=pl.BlockSpec((1, TB), lambda i: (0, i)),   # lane-dense output slab
        compiler_params=pltpu.CompilerParams(
            dimension_semantics=("parallel",),   # shards batch tiles across v7x TCs
            vmem_limit_bytes=VMEM_LIMIT),
        cost_estimate=cost,
    )
    return jax.jit(call)


def prepare_params(params):
    """One-time prep (hoisted out of the per-call forward): pad the hidden dim 50 -> 128
    (zero padding => results unchanged) and cast weights to bf16."""
    (w1, b1), (w2, b2), (w3, b3), (w4, b4) = params
    H = w1.shape[1]
    Hp = _round_up(H, LANE)
    ph = Hp - H
    w1p = jnp.pad(w1, ((0, 0), (0, ph))).astype(jnp.bfloat16)     # (D, Hp)
    b1p = jnp.pad(b1.reshape(1, -1).astype(jnp.float32), ((0, 0), (0, ph)))
    w2p = jnp.pad(w2, ((0, ph), (0, ph))).astype(jnp.bfloat16)    # (Hp, Hp)
    b2p = jnp.pad(b2.reshape(1, -1).astype(jnp.float32), ((0, 0), (0, ph)))
    w3p = jnp.pad(w3, ((0, ph), (0, ph))).astype(jnp.bfloat16)    # (Hp, Hp)
    b3p = jnp.pad(b3.reshape(1, -1).astype(jnp.float32), ((0, 0), (0, ph)))
    w4t = jnp.pad(w4.T, ((0, 0), (0, ph))).astype(jnp.bfloat16)   # (1, Hp)
    b4p = b4.reshape(1, 1).astype(jnp.float32)                    # (1, 1)
    return (w1p, b1p, w2p, b2p, w3p, b3p, w4t, b4p)


_SINGLE_BUFFER_OK = True   # flipped off if this Pallas rejects pipeline_mode=Buffered(1)


def linear_discriminator_forward(x, prepared):
    """x: any shape with leading batch dim; flattened to (B, input_dim) like PyTorch."""
    global _SINGLE_BUFFER_OK
    if x.ndim != 2:
        x = x.reshape(x.shape[0], -1)
    B, D = x.shape

    w1p, b1p, w2p, b2p, w3p, b3p, w4t, b4p = prepared
    Hp = w1p.shape[1]
    assert w1p.shape[0] == D, (w1p.shape, D)

    TB = _pick_tile(B, D, Hp)
    args = (x, w1p, b1p, w2p, b2p, w3p, b3p, w4t, b4p)

    if _SINGLE_BUFFER_OK:
        try:
            out = _build_forward(B, D, Hp, TB, True)(*args)
        except Exception:
            _SINGLE_BUFFER_OK = False
            out = _build_forward(B, D, Hp, TB, False)(*args)
    else:
        out = _build_forward(B, D, Hp, TB, False)(*args)

    return out[0, :B].reshape(B, 1)


def init_params(key, input_dim, hidden_size=HIDDEN):
    """Deterministic init matching torch.nn.Linear default (uniform(-1/sqrt(fan_in), +)).
    Weights stored as (in_features, out_features); biases as (1, out_features)."""
    dims = [(input_dim, hidden_size),
            (hidden_size, hidden_size),
            (hidden_size, hidden_size),
            (hidden_size, 1)]
    params = []
    for (fan_in, fan_out) in dims:
        key, kw, kb = jax.random.split(key, 3)
        bound = 1.0 / jnp.sqrt(fan_in)
        w = jax.random.uniform(kw, (fan_in, fan_out), jnp.float32, -bound, bound)
        b = jax.random.uniform(kb, (1, fan_out), jnp.float32, -bound, bound)
        params.append((w, b))
    return params


def _reference_forward(x, params):
    if x.ndim != 2:
        x = x.reshape(x.shape[0], -1)
    h = x.astype(jnp.float32)
    for i, (w, b) in enumerate(params):
        h = h @ w + b
        if i < len(params) - 1:
            h = jnp.where(h > 0, h, NEG_SLOPE * h)
    return 1.0 / (1.0 + jnp.exp(-h))


if __name__ == "__main__":
    key = jax.random.PRNGKey(0)
    kx, kp = jax.random.split(key)

    # Small NCHW-like input, flattened inside forward (B=2, C=4, H=W=16 -> input_dim=1024).
    x = jax.random.normal(kx, (2, 4, 16, 16), jnp.float32)
    input_dim = 4 * 16 * 16

    params = init_params(kp, input_dim, HIDDEN)
    prepared = prepare_params(params)   # padded/bf16 weights, computed once

    out = linear_discriminator_forward(x, prepared)
    out = jax.block_until_ready(out)

    ref = _reference_forward(x, params)
    assert out.shape == (2, 1), out.shape
    # Tolerance loosened vs the f32 reference because x/weights go through bf16 matmuls.
    assert jnp.allclose(out, ref, atol=2e-2, rtol=2e-2), (out, ref)
    assert bool(jnp.all((out >= 0.0) & (out <= 1.0)))

    print("KERNEL_OK")
</pallas_src>

<mosaic_0001>
module attributes {stable_mosaic.version = 11 : i64} {
  func.func @_mlp_kernel(%arg0: i32, %arg1: memref<128x1024xf32, #tpu.memory_space<vmem>>, %arg2: memref<1024x128xbf16, #tpu.memory_space<vmem>>, %arg3: memref<1x128xf32, #tpu.memory_space<vmem>>, %arg4: memref<128x128xbf16, #tpu.memory_space<vmem>>, %arg5: memref<1x128xf32, #tpu.memory_space<vmem>>, %arg6: memref<128x128xbf16, #tpu.memory_space<vmem>>, %arg7: memref<1x128xf32, #tpu.memory_space<vmem>>, %arg8: memref<1x128xbf16, #tpu.memory_space<vmem>>, %arg9: memref<1x1xf32, #tpu.memory_space<vmem>>, %arg10: memref<1x128xf32, #tpu.memory_space<vmem>>) attributes {dimension_semantics = [#tpu.dimension_semantics<parallel>], iteration_bounds = array<i64: 1>, scalar_prefetch = 0 : i64, scratch_operands = 0 : i64, tpu.core_type = #tpu.core_type<tc>, window_params = [{transform_indices = @transform_0, window_bounds = array<i64: 128, 1024>}, {pipeline_mode = #tpu.pipeline_mode<synchronous>, transform_indices = @transform_1, window_bounds = array<i64: 1024, 128>}, {pipeline_mode = #tpu.pipeline_mode<synchronous>, transform_indices = @transform_2, window_bounds = array<i64: 1, 128>}, {pipeline_mode = #tpu.pipeline_mode<synchronous>, transform_indices = @transform_3, window_bounds = array<i64: 128, 128>}, {pipeline_mode = #tpu.pipeline_mode<synchronous>, transform_indices = @transform_4, window_bounds = array<i64: 1, 128>}, {pipeline_mode = #tpu.pipeline_mode<synchronous>, transform_indices = @transform_5, window_bounds = array<i64: 128, 128>}, {pipeline_mode = #tpu.pipeline_mode<synchronous>, transform_indices = @transform_6, window_bounds = array<i64: 1, 128>}, {pipeline_mode = #tpu.pipeline_mode<synchronous>, transform_indices = @transform_7, window_bounds = array<i64: 1, 128>}, {pipeline_mode = #tpu.pipeline_mode<synchronous>, transform_indices = @transform_8, window_bounds = array<i64: 1, 1>}, {transform_indices = @transform_9, window_bounds = array<i64: 1, 128>}]} {
    %c0 = arith.constant 0 : index
    %c0_0 = arith.constant 0 : index
    %0 = vector.load %arg1[%c0, %c0_0] : memref<128x1024xf32, #tpu.memory_space<vmem>>, vector<128x1024xf32>
    %1 = arith.truncf %0 : vector<128x1024xf32> to vector<128x1024xbf16>
    %c0_1 = arith.constant 0 : index
    %c0_2 = arith.constant 0 : index
    %2 = vector.load %arg2[%c0_1, %c0_2] : memref<1024x128xbf16, #tpu.memory_space<vmem>>, vector<1024x128xbf16>
    %cst = arith.constant dense<0.000000e+00> : vector<128x128xf32>
    %3 = tpu.matmul %1, %2, %cst {dimension_numbers = #tpu.dot_dimension_numbers<[1], [0], [0], [1], [0, 0, 1, 1], [], []>} : vector<128x1024xbf16>, vector<1024x128xbf16>, vector<128x128xf32> -> vector<128x128xf32>
    %c0_3 = arith.constant 0 : index
    %c0_4 = arith.constant 0 : index
    %4 = vector.load %arg3[%c0_3, %c0_4] : memref<1x128xf32, #tpu.memory_space<vmem>>, vector<1x128xf32>
    %5 = vector.broadcast %4 : vector<1x128xf32> to vector<128x128xf32>
    %6 = arith.addf %3, %5 : vector<128x128xf32>
    %cst_5 = arith.constant 0.000000e+00 : f32
    %7 = vector.broadcast %cst_5 : f32 to vector<128x128xf32>
    %8 = arith.cmpf ogt, %6, %7 : vector<128x128xf32>
    %cst_6 = arith.constant 0.00999999977 : f32
    %9 = vector.broadcast %cst_6 : f32 to vector<128x128xf32>
    %10 = arith.mulf %9, %6 : vector<128x128xf32>
    %11 = arith.select %8, %6, %10 : vector<128x128xi1>, vector<128x128xf32>
    %12 = arith.truncf %11 : vector<128x128xf32> to vector<128x128xbf16>
    %c0_7 = arith.constant 0 : index
    %c0_8 = arith.constant 0 : index
    %13 = vector.load %arg4[%c0_7, %c0_8] : memref<128x128xbf16, #tpu.memory_space<vmem>>, vector<128x128xbf16>
    %cst_9 = arith.constant dense<0.000000e+00> : vector<128x128xf32>
    %14 = tpu.matmul %12, %13, %cst_9 {dimension_numbers = #tpu.dot_dimension_numbers<[1], [0], [0], [1], [0, 0, 1, 1], [], []>} : vector<128x128xbf16>, vector<128x128xbf16>, vector<128x128xf32> -> vector<128x128xf32>
    %c0_10 = arith.constant 0 : index
    %c0_11 = arith.constant 0 : index
    %15 = vector.load %arg5[%c0_10, %c0_11] : memref<1x128xf32, #tpu.memory_space<vmem>>, vector<1x128xf32>
    %16 = vector.broadcast %15 : vector<1x128xf32> to vector<128x128xf32>
    %17 = arith.addf %14, %16 : vector<128x128xf32>
    %cst_12 = arith.constant 0.000000e+00 : f32
    %18 = vector.broadcast %cst_12 : f32 to vector<128x128xf32>
    %19 = arith.cmpf ogt, %17, %18 : vector<128x128xf32>
    %cst_13 = arith.constant 0.00999999977 : f32
    %20 = vector.broadcast %cst_13 : f32 to vector<128x128xf32>
    %21 = arith.mulf %20, %17 : vector<128x128xf32>
    %22 = arith.select %19, %17, %21 : vector<128x128xi1>, vector<128x128xf32>
    %23 = arith.truncf %22 : vector<128x128xf32> to vector<128x128xbf16>
    %c0_14 = arith.constant 0 : index
    %c0_15 = arith.constant 0 : index
    %24 = vector.load %arg6[%c0_14, %c0_15] : memref<128x128xbf16, #tpu.memory_space<vmem>>, vector<128x128xbf16>
    %cst_16 = arith.constant dense<0.000000e+00> : vector<128x128xf32>
    %25 = tpu.matmul %23, %24, %cst_16 {dimension_numbers = #tpu.dot_dimension_numbers<[1], [0], [0], [1], [0, 0, 1, 1], [], []>} : vector<128x128xbf16>, vector<128x128xbf16>, vector<128x128xf32> -> vector<128x128xf32>
    %c0_17 = arith.constant 0 : index
    %c0_18 = arith.constant 0 : index
    %26 = vector.load %arg7[%c0_17, %c0_18] : memref<1x128xf32, #tpu.memory_space<vmem>>, vector<1x128xf32>
    %27 = vector.broadcast %26 : vector<1x128xf32> to vector<128x128xf32>
    %28 = arith.addf %25, %27 : vector<128x128xf32>
    %cst_19 = arith.constant 0.000000e+00 : f32
    %29 = vector.broadcast %cst_19 : f32 to vector<128x128xf32>
    %30 = arith.cmpf ogt, %28, %29 : vector<128x128xf32>
    %cst_20 = arith.constant 0.00999999977 : f32
    %31 = vector.broadcast %cst_20 : f32 to vector<128x128xf32>
    %32 = arith.mulf %31, %28 : vector<128x128xf32>
    %33 = arith.select %30, %28, %32 : vector<128x128xi1>, vector<128x128xf32>
    %c0_21 = arith.constant 0 : index
    %c0_22 = arith.constant 0 : index
    %34 = vector.load %arg8[%c0_21, %c0_22] : memref<1x128xbf16, #tpu.memory_space<vmem>>, vector<1x128xbf16>
    %35 = arith.truncf %33 : vector<128x128xf32> to vector<128x128xbf16>
    %cst_23 = arith.constant dense<0.000000e+00> : vector<1x128xf32>
    %36 = tpu.matmul %34, %35, %cst_23 {dimension_numbers = #tpu.dot_dimension_numbers<[1], [1], [0], [0], [0, 0, 1, 0], [], []>} : vector<1x128xbf16>, vector<128x128xbf16>, vector<1x128xf32> -> vector<1x128xf32>
    %c0_24 = arith.constant 0 : index
    %c0_25 = arith.constant 0 : index
    %37 = vector.load %arg9[%c0_24, %c0_25] : memref<1x1xf32, #tpu.memory_space<vmem>>, vector<1x1xf32>
    %38 = vector.broadcast %37 : vector<1x1xf32> to vector<1x128xf32>
    %39 = arith.addf %36, %38 : vector<1x128xf32>
    %cst_26 = arith.constant 0.000000e+00 : f32
    %40 = vector.broadcast %cst_26 : f32 to vector<1x128xf32>
    %41 = arith.subf %40, %39 : vector<1x128xf32>
    %42 = math.exp %41 : vector<1x128xf32>
    %cst_27 = arith.constant 1.000000e+00 : f32
    %43 = vector.broadcast %cst_27 : f32 to vector<1x128xf32>
    %44 = arith.addf %43, %42 : vector<1x128xf32>
    %cst_28 = arith.constant 1.000000e+00 : f32
    %45 = vector.broadcast %cst_28 : f32 to vector<1x128xf32>
    %46 = arith.divf %45, %44 : vector<1x128xf32>
    %c0_29 = arith.constant 0 : index
    %c0_30 = arith.constant 0 : index
    %47 = vector.load %arg10[%c0_29, %c0_30] : memref<1x128xf32, #tpu.memory_space<vmem>>, vector<1x128xf32>
    tpu.vector_store %arg10[%c0_29, %c0_30], %46 {strides = array<i32>} : memref<1x128xf32, #tpu.memory_space<vmem>>, vector<1x128xf32>,
    return
  }
  func.func @transform_0(%arg0: i32) -> (i32, i32) {
    %c0_i32 = arith.constant 0 : i32
    %c0_i32_0 = arith.constant 0 : i32
    return %arg0, %c0_i32 : i32, i32
  }
  func.func @transform_1(%arg0: i32) -> (i32, i32) {
    %c0_i32 = arith.constant 0 : i32
    %c0_i32_0 = arith.constant 0 : i32
    %c0_i32_1 = arith.constant 0 : i32
    return %c0_i32, %c0_i32_0 : i32, i32
  }
  func.func @transform_2(%arg0: i32) -> (i32, i32) {
    %c0_i32 = arith.constant 0 : i32
    %c0_i32_0 = arith.constant 0 : i32
    %c0_i32_1 = arith.constant 0 : i32
    return %c0_i32, %c0_i32_0 : i32, i32
  }
  func.func @transform_3(%arg0: i32) -> (i32, i32) {
    %c0_i32 = arith.constant 0 : i32
    %c0_i32_0 = arith.constant 0 : i32
    %c0_i32_1 = arith.constant 0 : i32
    return %c0_i32, %c0_i32_0 : i32, i32
  }
  func.func @transform_4(%arg0: i32) -> (i32, i32) {
    %c0_i32 = arith.constant 0 : i32
    %c0_i32_0 = arith.constant 0 : i32
    %c0_i32_1 = arith.constant 0 : i32
    return %c0_i32, %c0_i32_0 : i32, i32
  }
  func.func @transform_5(%arg0: i32) -> (i32, i32) {
    %c0_i32 = arith.constant 0 : i32
    %c0_i32_0 = arith.constant 0 : i32
    %c0_i32_1 = arith.constant 0 : i32
    return %c0_i32, %c0_i32_0 : i32, i32
  }
  func.func @transform_6(%arg0: i32) -> (i32, i32) {
    %c0_i32 = arith.constant 0 : i32
    %c0_i32_0 = arith.constant 0 : i32
    %c0_i32_1 = arith.constant 0 : i32
    return %c0_i32, %c0_i32_0 : i32, i32
  }
  func.func @transform_7(%arg0: i32) -> (i32, i32) {
    %c0_i32 = arith.constant 0 : i32
    %c0_i32_0 = arith.constant 0 : i32
    %c0_i32_1 = arith.constant 0 : i32
    return %c0_i32, %c0_i32_0 : i32, i32
  }
  func.func @transform_8(%arg0: i32) -> (i32, i32) {
    %c0_i32 = arith.constant 0 : i32
    %c0_i32_0 = arith.constant 0 : i32
    %c0_i32_1 = arith.constant 0 : i32
    return %c0_i32, %c0_i32_0 : i32, i32
  }
  func.func @transform_9(%arg0: i32) -> (i32, i32) {
    %c0_i32 = arith.constant 0 : i32
    %c0_i32_0 = arith.constant 0 : i32
    return %c0_i32, %arg0 : i32, i32
  }
}

module attributes {stable_mosaic.version = 11 : i64} {
  func.func @_mlp_kernel(%arg0: i32, %arg1: memref<128x1024xf32, #tpu.memory_space<vmem>>, %arg2: memref<1024x128xbf16, #tpu.memory_space<vmem>>, %arg3: memref<1x128xf32, #tpu.memory_space<vmem>>, %arg4: memref<128x128xbf16, #tpu.memory_space<vmem>>, %arg5: memref<1x128xf32, #tpu.memory_space<vmem>>, %arg6: memref<128x128xbf16, #tpu.memory_space<vmem>>, %arg7: memref<1x128xf32, #tpu.memory_space<vmem>>, %arg8: memref<1x128xbf16, #tpu.memory_space<vmem>>, %arg9: memref<1x1xf32, #tpu.memory_space<vmem>>, %arg10: memref<1x128xf32, #tpu.memory_space<vmem>>) attributes {dimension_semantics = [#tpu.dimension_semantics<parallel>], iteration_bounds = array<i64: 1>, scalar_prefetch = 0 : i64, scratch_operands = 0 : i64, tpu.core_type = #tpu.core_type<tc>, window_params = [{transform_indices = @transform_0, window_bounds = array<i64: 128, 1024>}, {pipeline_mode = #tpu.pipeline_mode<synchronous>, transform_indices = @transform_1, window_bounds = array<i64: 1024, 128>}, {pipeline_mode = #tpu.pipeline_mode<synchronous>, transform_indices = @transform_2, window_bounds = array<i64: 1, 128>}, {pipeline_mode = #tpu.pipeline_mode<synchronous>, transform_indices = @transform_3, window_bounds = array<i64: 128, 128>}, {pipeline_mode = #tpu.pipeline_mode<synchronous>, transform_indices = @transform_4, window_bounds = array<i64: 1, 128>}, {pipeline_mode = #tpu.pipeline_mode<synchronous>, transform_indices = @transform_5, window_bounds = array<i64: 128, 128>}, {pipeline_mode = #tpu.pipeline_mode<synchronous>, transform_indices = @transform_6, window_bounds = array<i64: 1, 128>}, {pipeline_mode = #tpu.pipeline_mode<synchronous>, transform_indices = @transform_7, window_bounds = array<i64: 1, 128>}, {pipeline_mode = #tpu.pipeline_mode<synchronous>, transform_indices = @transform_8, window_bounds = array<i64: 1, 1>}, {transform_indices = @transform_9, window_bounds = array<i64: 1, 128>}]} {
    %c0 = arith.constant 0 : index
    %c0_0 = arith.constant 0 : index
    %0 = vector.load %arg1[%c0, %c0_0] : memref<128x1024xf32, #tpu.memory_space<vmem>>, vector<128x1024xf32>
    %1 = arith.truncf %0 : vector<128x1024xf32> to vector<128x1024xbf16>
    %c0_1 = arith.constant 0 : index
    %c0_2 = arith.constant 0 : index
    %2 = vector.load %arg2[%c0_1, %c0_2] : memref<1024x128xbf16, #tpu.memory_space<vmem>>, vector<1024x128xbf16>
    %cst = arith.constant dense<0.000000e+00> : vector<128x128xf32>
    %3 = tpu.matmul %1, %2, %cst {dimension_numbers = #tpu.dot_dimension_numbers<[1], [0], [0], [1], [0, 0, 1, 1], [], []>} : vector<128x1024xbf16>, vector<1024x128xbf16>, vector<128x128xf32> -> vector<128x128xf32>
    %c0_3 = arith.constant 0 : index
    %c0_4 = arith.constant 0 : index
    %4 = vector.load %arg3[%c0_3, %c0_4] : memref<1x128xf32, #tpu.memory_space<vmem>>, vector<1x128xf32>
    %5 = vector.broadcast %4 : vector<1x128xf32> to vector<128x128xf32>
    %6 = arith.addf %3, %5 : vector<128x128xf32>
    %cst_5 = arith.constant 0.000000e+00 : f32
    %7 = vector.broadcast %cst_5 : f32 to vector<128x128xf32>
    %8 = arith.cmpf ogt, %6, %7 : vector<128x128xf32>
    %cst_6 = arith.constant 0.00999999977 : f32
    %9 = vector.broadcast %cst_6 : f32 to vector<128x128xf32>
    %10 = arith.mulf %9, %6 : vector<128x128xf32>
    %11 = arith.select %8, %6, %10 : vector<128x128xi1>, vector<128x128xf32>
    %12 = arith.truncf %11 : vector<128x128xf32> to vector<128x128xbf16>
    %c0_7 = arith.constant 0 : index
    %c0_8 = arith.constant 0 : index
    %13 = vector.load %arg4[%c0_7, %c0_8] : memref<128x128xbf16, #tpu.memory_space<vmem>>, vector<128x128xbf16>
    %cst_9 = arith.constant dense<0.000000e+00> : vector<128x128xf32>
    %14 = tpu.matmul %12, %13, %cst_9 {dimension_numbers = #tpu.dot_dimension_numbers<[1], [0], [0], [1], [0, 0, 1, 1], [], []>} : vector<128x128xbf16>, vector<128x128xbf16>, vector<128x128xf32> -> vector<128x128xf32>
    %c0_10 = arith.constant 0 : index
    %c0_11 = arith.constant 0 : index
    %15 = vector.load %arg5[%c0_10, %c0_11] : memref<1x128xf32, #tpu.memory_space<vmem>>, vector<1x128xf32>
    %16 = vector.broadcast %15 : vector<1x128xf32> to vector<128x128xf32>
    %17 = arith.addf %14, %16 : vector<128x128xf32>
    %cst_12 = arith.constant 0.000000e+00 : f32
    %18 = vector.broadcast %cst_12 : f32 to vector<128x128xf32>
    %19 = arith.cmpf ogt, %17, %18 : vector<128x128xf32>
    %cst_13 = arith.constant 0.00999999977 : f32
    %20 = vector.broadcast %cst_13 : f32 to vector<128x128xf32>
    %21 = arith.mulf %20, %17 : vector<128x128xf32>
    %22 = arith.select %19, %17, %21 : vector<128x128xi1>, vector<128x128xf32>
    %23 = arith.truncf %22 : vector<128x128xf32> to vector<128x128xbf16>
    %c0_14 = arith.constant 0 : index
    %c0_15 = arith.constant 0 : index
    %24 = vector.load %arg6[%c0_14, %c0_15] : memref<128x128xbf16, #tpu.memory_space<vmem>>, vector<128x128xbf16>
    %cst_16 = arith.constant dense<0.000000e+00> : vector<128x128xf32>
    %25 = tpu.matmul %23, %24, %cst_16 {dimension_numbers = #tpu.dot_dimension_numbers<[1], [0], [0], [1], [0, 0, 1, 1], [], []>} : vector<128x128xbf16>, vector<128x128xbf16>, vector<128x128xf32> -> vector<128x128xf32>
    %c0_17 = arith.constant 0 : index
    %c0_18 = arith.constant 0 : index
    %26 = vector.load %arg7[%c0_17, %c0_18] : memref<1x128xf32, #tpu.memory_space<vmem>>, vector<1x128xf32>
    %27 = vector.broadcast %26 : vector<1x128xf32> to vector<128x128xf32>
    %28 = arith.addf %25, %27 : vector<128x128xf32>
    %cst_19 = arith.constant 0.000000e+00 : f32
    %29 = vector.broadcast %cst_19 : f32 to vector<128x128xf32>
    %30 = arith.cmpf ogt, %28, %29 : vector<128x128xf32>
    %cst_20 = arith.constant 0.00999999977 : f32
    %31 = vector.broadcast %cst_20 : f32 to vector<128x128xf32>
    %32 = arith.mulf %31, %28 : vector<128x128xf32>
    %33 = arith.select %30, %28, %32 : vector<128x128xi1>, vector<128x128xf32>
    %c0_21 = arith.constant 0 : index
    %c0_22 = arith.constant 0 : index
    %34 = vector.load %arg8[%c0_21, %c0_22] : memref<1x128xbf16, #tpu.memory_space<vmem>>, vector<1x128xbf16>
    %35 = arith.truncf %33 : vector<128x128xf32> to vector<128x128xbf16>
    %cst_23 = arith.constant dense<0.000000e+00> : vector<1x128xf32>
    %36 = tpu.matmul %34, %35, %cst_23 {dimension_numbers = #tpu.dot_dimension_numbers<[1], [1], [0], [0], [0, 0, 1, 0], [], []>} : vector<1x128xbf16>, vector<128x128xbf16>, vector<1x128xf32> -> vector<1x128xf32>
    %c0_24 = arith.constant 0 : index
    %c0_25 = arith.constant 0 : index
    %37 = vector.load %arg9[%c0_24, %c0_25] : memref<1x1xf32, #tpu.memory_space<vmem>>, vector<1x1xf32>
    %38 = vector.broadcast %37 : vector<1x1xf32> to vector<1x128xf32>
    %39 = arith.addf %36, %38 : vector<1x128xf32>
    %cst_26 = arith.constant 0.000000e+00 : f32
    %40 = vector.broadcast %cst_26 : f32 to vector<1x128xf32>
    %41 = arith.subf %40, %39 : vector<1x128xf32>
    %42 = math.exp %41 : vector<1x128xf32>
    %cst_27 = arith.constant 1.000000e+00 : f32
    %43 = vector.broadcast %cst_27 : f32 to vector<1x128xf32>
    %44 = arith.addf %43, %42 : vector<1x128xf32>
    %cst_28 = arith.constant 1.000000e+00 : f32
    %45 = vector.broadcast %cst_28 : f32 to vector<1x128xf32>
    %46 = arith.divf %45, %44 : vector<1x128xf32>
    %c0_29 = arith.constant 0 : index
    %c0_30 = arith.constant 0 : index
    %47 = vector.load %arg10[%c0_29, %c0_30] : memref<1x128xf32, #tpu.memory_space<vmem>>, vector<1x128xf32>
    tpu.vector_store %arg10[%c0_29, %c0_30], %46 {strides = array<i32>} : memref<1x128xf32, #tpu.memory_space<vmem>>, vector<1x128xf32>,
    return
  }
  func.func @transform_0(%arg0: i32) -> (i32, i32) {
    %c0_i32 = arith.constant 0 : i32
    %c0_i32_0 = arith.constant 0 : i32
    return %arg0, %c0_i32 : i32, i32
  }
  func.func @transform_1(%arg0: i32) -> (i32, i32) {
    %c0_i32 = arith.constant 0 : i32
    %c0_i32_0 = arith.constant 0 : i32
    %c0_i32_1 = arith.constant 0 : i32
    return %c0_i32, %c0_i32_0 : i32, i32
  }
  func.func @transform_2(%arg0: i32) -> (i32, i32) {
    %c0_i32 = arith.constant 0 : i32
    %c0_i32_0 = arith.constant 0 : i32
    %c0_i32_1 = arith.constant 0 : i32
    return %c0_i32, %c0_i32_0 : i32, i32
  }
  func.func @transform_3(%arg0: i32) -> (i32, i32) {
    %c0_i32 = arith.constant 0 : i32
    %c0_i32_0 = arith.constant 0 : i32
    %c0_i32_1 = arith.constant 0 : i32
    return %c0_i32, %c0_i32_0 : i32, i32
  }
  func.func @transform_4(%arg0: i32) -> (i32, i32) {
    %c0_i32 = arith.constant 0 : i32
    %c0_i32_0 = arith.constant 0 : i32
    %c0_i32_1 = arith.constant 0 : i32
    return %c0_i32, %c0_i32_0 : i32, i32
  }
  func.func @transform_5(%arg0: i32) -> (i32, i32) {
    %c0_i32 = arith.constant 0 : i32
    %c0_i32_0 = arith.constant 0 : i32
    %c0_i32_1 = arith.constant 0 : i32
    return %c0_i32, %c0_i32_0 : i32, i32
  }
  func.func @transform_6(%arg0: i32) -> (i32, i32) {
    %c0_i32 = arith.constant 0 : i32
    %c0_i32_0 = arith.constant 0 : i32
    %c0_i32_1 = arith.constant 0 : i32
    return %c0_i32, %c0_i32_0 : i32, i32
  }
  func.func @transform_7(%arg0: i32) -> (i32, i32) {
    %c0_i32 = arith.constant 0 : i32
    %c0_i32_0 = arith.constant 0 : i32
    %c0_i32_1 = arith.constant 0 : i32
    return %c0_i32, %c0_i32_0 : i32, i32
  }
  func.func @transform_8(%arg0: i32) -> (i32, i32) {
    %c0_i32 = arith.constant 0 : i32
    %c0_i32_0 = arith.constant 0 : i32
    %c0_i32_1 = arith.constant 0 : i32
    return %c0_i32, %c0_i32_0 : i32, i32
  }
  func.func @transform_9(%arg0: i32) -> (i32, i32) {
    %c0_i32 = arith.constant 0 : i32
    %c0_i32_0 = arith.constant 0 : i32
    return %c0_i32, %arg0 : i32, i32
  }
}

</mosaic_0001>

<llo_original>
// kernel: tpu_custom_call.1
$region0: #{tpu_custom_call.1}
  #allocation0 [shape = 'u32[]', space=smem, size = 0x4, offset = 0x4, fixed_abs, tag = 'smem constant byte address 0x4 - core index']
  #allocation1 [shape = 'u32[144,128]{1,0:T(1,128)}', space=vmem, size = 0x12000, scoped, tag = 'internal scratch']
  #allocation2 [shape = 'f32[1,1]{1,0:T(1,128)S(1)}', space=vmem, size = 0x200, scoped, tag = 'scoped memory for tpu_custom_call.1']
  %s0 = inlined_call_operand.hbm [shape: f32[2,1024], index: 0, kind: input, shape index: {}]
  %s1 = inlined_call_operand.hbm [shape: bf16[1024,128], index: 1, kind: input, shape index: {}]
  %s2 = inlined_call_operand.vmem [shape: f32[1,128], index: 2, kind: input, shape index: {}]
  %s3 = inlined_call_operand.hbm [shape: bf16[128,128], index: 3, kind: input, shape index: {}]
  %s4 = inlined_call_operand.vmem [shape: f32[1,128], index: 4, kind: input, shape index: {}]
  %s5 = inlined_call_operand.hbm [shape: bf16[128,128], index: 5, kind: input, shape index: {}]
  %s6 = inlined_call_operand.vmem [shape: f32[1,128], index: 6, kind: input, shape index: {}]
  %s7 = inlined_call_operand.vmem [shape: bf16[1,128], index: 7, kind: input, shape index: {}]
  %s8 = inlined_call_operand.<no memory space> [shape: f32[1,1], index: 8, kind: input, shape index: {}]
  %s9 = inlined_call_operand.hbm [shape: f32[1,2], index: 9, kind: output, shape index: {}]
  %s10 = sld [smem:[#allocation0]]
  $region62: #{tpu_custom_call.1} parent=0
    _
  %s12 = ssub.s32 1, %s10
  %s13 = scalar_select 0, %s12, %s10
  %v14 = vstv %s8
  %15 = vst [vmem:[#allocation2] sm:$0x1] %v14
  $region1: #{tpu_custom_call.1} parent=0
    #allocation3 [shape = 'u8[524288]{0}', space=vmem, size = 0x80000, scoped, tag = 'input window, operand 0, single buffered']
    #allocation4 [shape = 's32[1]{0}', space=sflag, size = 0x4, scoped, tag = 'scoped memory for tpu_custom_call.1']
    #allocation5 [shape = 's32[1]{0}', space=sflag, size = 0x4, scoped, tag = 'scoped memory for tpu_custom_call.1']
    #allocation6 [shape = 'u8[262144]{0}', space=vmem, size = 0x40000, scoped, tag = 'input window, operand 1, single buffered']
    #allocation7 [shape = 's32[1]{0}', space=sflag, size = 0x4, scoped, tag = 'scoped memory for tpu_custom_call.1']
    #allocation8 [shape = 'u8[32768]{0}', space=vmem, size = 0x8000, scoped, tag = 'input window, operand 3, single buffered']
    #allocation9 [shape = 'u8[32768]{0}', space=vmem, size = 0x8000, scoped, tag = 'input window, operand 5, single buffered']
    #allocation10 [shape = 's32[1]{0}', space=sflag, size = 0x4, scoped, tag = 'scoped memory for tpu_custom_call.1']
    #allocation11 [shape = 'u8[512]{0}', space=vmem, size = 0x400, scoped, tag = 'output window, operand 0, single buffered']
    %16 = vsyncpa [#allocation4], 0
    %17 = vsyncpa [#allocation7], 0
    %18 = vsyncpa [#allocation10], 0
    %19 = vsyncpa [#allocation5], 0
    // Predicated region
    $region2: #{tpu_custom_call.1} parent=1 // pred_check
      _
    $region3: #{tpu_custom_call.1} parent=1 // pred_check_branch
      %21 = sbr.rel (0) target = $region5
    $region4: #{tpu_custom_call.1} parent=1 // pred_region
      %s23 = ssub.s32 16384, 256
      %24 = vsyncadd [#allocation4], %s23
      %s25 = sshll.u32 [#allocation3], 4
      %s26 = int_to_ptr.vmem [resolvable:$true] %s25
      %31 = dma.hbm_to_vmem [thread:$0]  %s0, 256, %s26, [#allocation4], 256, 256, 16
    $region5: #{tpu_custom_call.1} parent=1 // pred_fallthru
      _
    // Predicated region
    $region6: #{tpu_custom_call.1} parent=1 // pred_check
      _
    $region7: #{tpu_custom_call.1} parent=1 // pred_check_branch
      %33 = sbr.rel (0) target = $region9
    $region8: #{tpu_custom_call.1} parent=1 // pred_region
      %s35 = ssub.s32 8192, 8192
      %36 = vsyncadd [#allocation7], %s35
      %s37 = sshll.u32 [#allocation6], 4
      %s38 = int_to_ptr.vmem [resolvable:$true] %s37
      %43 = dma.hbm_to_vmem [thread:$0]  %s1, 8192, %s38, [#allocation7], 64, 64, 4
    $region9: #{tpu_custom_call.1} parent=1 // pred_fallthru
      _
    // Predicated region
    $region10: #{tpu_custom_call.1} parent=1 // pred_check
      _
    $region11: #{tpu_custom_call.1} parent=1 // pred_check_branch
      %45 = sbr.rel (0) target = $region13
    $region12: #{tpu_custom_call.1} parent=1 // pred_region
      _
    $region13: #{tpu_custom_call.1} parent=1 // pred_fallthru
      _
    // Predicated region
    $region14: #{tpu_custom_call.1} parent=1 // pred_check
      _
    $region15: #{tpu_custom_call.1} parent=1 // pred_check_branch
      %47 = sbr.rel (0) target = $region17
    $region16: #{tpu_custom_call.1} parent=1 // pred_region
      %s49 = ssub.s32 1024, 1024
      %50 = vsyncadd [#allocation7], %s49
      %s51 = sshll.u32 [#allocation8], 4
      %s52 = int_to_ptr.vmem [resolvable:$true] %s51
      %57 = dma.hbm_to_vmem [thread:$0]  %s3, 1024, %s52, [#allocation7], 64, 64, 4
    $region17: #{tpu_custom_call.1} parent=1 // pred_fallthru
      _
    // Predicated region
    $region18: #{tpu_custom_call.1} parent=1 // pred_check
      _
    $region19: #{tpu_custom_call.1} parent=1 // pred_check_branch
      %59 = sbr.rel (0) target = $region21
    $region20: #{tpu_custom_call.1} parent=1 // pred_region
      _
    $region21: #{tpu_custom_call.1} parent=1 // pred_fallthru
      _
    // Predicated region
    $region22: #{tpu_custom_call.1} parent=1 // pred_check
      _
    $region23: #{tpu_custom_call.1} parent=1 // pred_check_branch
      %61 = sbr.rel (0) target = $region25
    $region24: #{tpu_custom_call.1} parent=1 // pred_region
      %s63 = ssub.s32 1024, 1024
      %64 = vsyncadd [#allocation10], %s63
      %s65 = sshll.u32 [#allocation9], 4
      %s66 = int_to_ptr.vmem [resolvable:$true] %s65
      %71 = dma.hbm_to_vmem [thread:$0]  %s5, 1024, %s66, [#allocation10], 64, 64, 4
    $region25: #{tpu_custom_call.1} parent=1 // pred_fallthru
      _
    // Predicated region
    $region26: #{tpu_custom_call.1} parent=1 // pred_check
      _
    $region27: #{tpu_custom_call.1} parent=1 // pred_check_branch
      %73 = sbr.rel (0) target = $region29
    $region28: #{tpu_custom_call.1} parent=1 // pred_region
      _
    $region29: #{tpu_custom_call.1} parent=1 // pred_fallthru
      _
    // Predicated region
    $region30: #{tpu_custom_call.1} parent=1 // pred_check
      _
    $region31: #{tpu_custom_call.1} parent=1 // pred_check_branch
      %75 = sbr.rel (0) target = $region33
    $region32: #{tpu_custom_call.1} parent=1 // pred_region
      _
    $region33: #{tpu_custom_call.1} parent=1 // pred_fallthru
      _
    // Predicated region
    $region34: #{tpu_custom_call.1} parent=1 // pred_check
      _
    $region35: #{tpu_custom_call.1} parent=1 // pred_check_branch
      %77 = sbr.rel (0) target = $region37
    $region36: #{tpu_custom_call.1} parent=1 // pred_region
      _
    $region37: #{tpu_custom_call.1} parent=1 // pred_fallthru
      _
    // Predicated region
    $region38: #{tpu_custom_call.1} parent=1 // pred_check
      _
    $region39: #{tpu_custom_call.1} parent=1 // pred_check_branch
      %79 = sbr.rel (0) target = $region41
    $region40: #{tpu_custom_call.1} parent=1 // pred_region
      %80 = dma.done [#allocation4], 16384
    $region41: #{tpu_custom_call.1} parent=1 // pred_fallthru
      _
    // Predicated region
    $region42: #{tpu_custom_call.1} parent=1 // pred_check
      _
    $region43: #{tpu_custom_call.1} parent=1 // pred_check_branch
      %82 = sbr.rel (0) target = $region45
    $region44: #{tpu_custom_call.1} parent=1 // pred_region
      %83 = dma.done [#allocation7], 8192
    $region45: #{tpu_custom_call.1} parent=1 // pred_fallthru
      _
    // Predicated region
    $region46: #{tpu_custom_call.1} parent=1 // pred_check
      _
    $region47: #{tpu_custom_call.1} parent=1 // pred_check_branch
      %85 = sbr.rel (0) target = $region49
    $region48: #{tpu_custom_call.1} parent=1 // pred_region
      %86 = dma.done [#allocation7], 1024
    $region49: #{tpu_custom_call.1} parent=1 // pred_fallthru
      _
    // Predicated region
    $region50: #{tpu_custom_call.1} parent=1 // pred_check
      _
    $region51: #{tpu_custom_call.1} parent=1 // pred_check_branch
      %88 = sbr.rel (0) target = $region53
    $region52: #{tpu_custom_call.1} parent=1 // pred_region
      %89 = dma.done [#allocation10], 1024
    $region53: #{tpu_custom_call.1} parent=1 // pred_fallthru
      _
    %v91 = vld [vmem:[#allocation3] sm:$0xff]
    %v92 = vld [vmem:[#allocation3 + $0x8] sm:$0xff]
    %v93 = vld [vmem:[#allocation3 + $0x10] sm:$0xff]
    %v94 = vld [vmem:[#allocation3 + $0x18] sm:$0xff]
    %v95 = vld [vmem:[#allocation3 + $0x20] sm:$0xff]
    %v96 = vld [vmem:[#allocation3 + $0x28] sm:$0xff]
    %v97 = vld [vmem:[#allocation3 + $0x30] sm:$0xff]
    %v98 = vld [vmem:[#allocation3 + $0x38] sm:$0xff]
    %v99 = vld [vmem:[#allocation3 + $0x40] sm:$0xff]
    %v100 = vld [vmem:[#allocation3 + $0x48] sm:$0xff]
    %v101 = vld [vmem:[#allocation3 + $0x50] sm:$0xff]
    %v102 = vld [vmem:[#allocation3 + $0x58] sm:$0xff]
    %v103 = vld [vmem:[#allocation3 + $0x60] sm:$0xff]
    %v104 = vld [vmem:[#allocation3 + $0x68] sm:$0xff]
    %v105 = vld [vmem:[#allocation3 + $0x70] sm:$0xff]
    %v106 = vld [vmem:[#allocation3 + $0x78] sm:$0xff]
    %v107 = vld [vmem:[#allocation3 + $0x80] sm:$0xff]
    %v108 = vld [vmem:[#allocation3 + $0x88] sm:$0xff]
    %v109 = vld [vmem:[#allocation3 + $0x90] sm:$0xff]
    %v110 = vld [vmem:[#allocation3 + $0x98] sm:$0xff]
    %v111 = vld [vmem:[#allocation3 + $0xa0] sm:$0xff]
    %v112 = vld [vmem:[#allocation3 + $0xa8] sm:$0xff]
    %v113 = vld [vmem:[#allocation3 + $0xb0] sm:$0xff]
    %v114 = vld [vmem:[#allocation3 + $0xb8] sm:$0xff]
    %v115 = vld [vmem:[#allocation3 + $0xc0] sm:$0xff]
    %v116 = vld [vmem:[#allocation3 + $0xc8] sm:$0xff]
    %v117 = vld [vmem:[#allocation3 + $0xd0] sm:$0xff]
    %v118 = vld [vmem:[#allocation3 + $0xd8] sm:$0xff]
    %v119 = vld [vmem:[#allocation3 + $0xe0] sm:$0xff]
    %v120 = vld [vmem:[#allocation3 + $0xe8] sm:$0xff]
    %v121 = vld [vmem:[#allocation3 + $0xf0] sm:$0xff]
    %v122 = vld [vmem:[#allocation3 + $0xf8] sm:$0xff]
    %v123 = vld [vmem:[#allocation3 + $0x100] sm:$0xff]
    %v124 = vld [vmem:[#allocation3 + $0x108] sm:$0xff]
    %v125 = vld [vmem:[#allocation3 + $0x110] sm:$0xff]
    %v126 = vld [vmem:[#allocation3 + $0x118] sm:$0xff]
    %v127 = vld [vmem:[#allocation3 + $0x120] sm:$0xff]
    %v128 = vld [vmem:[#allocation3 + $0x128] sm:$0xff]
    %v129 = vld [vmem:[#allocation3 + $0x130] sm:$0xff]
    %v130 = vld [vmem:[#allocation3 + $0x138] sm:$0xff]
    %v131 = vld [vmem:[#allocation3 + $0x140] sm:$0xff]
    %v132 = vld [vmem:[#allocation3 + $0x148] sm:$0xff]
    %v133 = vld [vmem:[#allocation3 + $0x150] sm:$0xff]
    %v134 = vld [vmem:[#allocation3 + $0x158] sm:$0xff]
    %v135 = vld [vmem:[#allocation3 + $0x160] sm:$0xff]
    %v136 = vld [vmem:[#allocation3 + $0x168] sm:$0xff]
    %v137 = vld [vmem:[#allocation3 + $0x170] sm:$0xff]
    %v138 = vld [vmem:[#allocation3 + $0x178] sm:$0xff]
    %v139 = vld [vmem:[#allocation3 + $0x180] sm:$0xff]
    %v140 = vld [vmem:[#allocation3 + $0x188] sm:$0xff]
    %v141 = vld [vmem:[#allocation3 + $0x190] sm:$0xff]
    %v142 = vld [vmem:[#allocation3 + $0x198] sm:$0xff]
    %v143 = vld [vmem:[#allocation3 + $0x1a0] sm:$0xff]
    %v144 = vld [vmem:[#allocation3 + $0x1a8] sm:$0xff]
    %v145 = vld [vmem:[#allocation3 + $0x1b0] sm:$0xff]
    %v146 = vld [vmem:[#allocation3 + $0x1b8] sm:$0xff]
    %v147 = vld [vmem:[#allocation3 + $0x1c0] sm:$0xff]
    %v148 = vld [vmem:[#allocation3 + $0x1c8] sm:$0xff]
    %v149 = vld [vmem:[#allocation3 + $0x1d0] sm:$0xff]
    %v150 = vld [vmem:[#allocation3 + $0x1d8] sm:$0xff]
    %v151 = vld [vmem:[#allocation3 + $0x1e0] sm:$0xff]
    %v152 = vld [vmem:[#allocation3 + $0x1e8] sm:$0xff]
    %v153 = vld [vmem:[#allocation3 + $0x1f0] sm:$0xff]
    %v154 = vld [vmem:[#allocation3 + $0x1f8] sm:$0xff]
    %v155 = vld [vmem:[#allocation3 + $0x200] sm:$0xff]
    %v156 = vld [vmem:[#allocation3 + $0x208] sm:$0xff]
    %v157 = vld [vmem:[#allocation3 + $0x210] sm:$0xff]
    %v158 = vld [vmem:[#allocation3 + $0x218] sm:$0xff]
    %v159 = vld [vmem:[#allocation3 + $0x220] sm:$0xff]
    %v160 = vld [vmem:[#allocation3 + $0x228] sm:$0xff]
    %v161 = vld [vmem:[#allocation3 + $0x230] sm:$0xff]
    %v162 = vld [vmem:[#allocation3 + $0x238] sm:$0xff]
    %v163 = vld [vmem:[#allocation3 + $0x240] sm:$0xff]
    %v164 = vld [vmem:[#allocation3 + $0x248] sm:$0xff]
    %v165 = vld [vmem:[#allocation3 + $0x250] sm:$0xff]
    %v166 = vld [vmem:[#allocation3 + $0x258] sm:$0xff]
    %v167 = vld [vmem:[#allocation3 + $0x260] sm:$0xff]
    %v168 = vld [vmem:[#allocation3 + $0x268] sm:$0xff]
    %v169 = vld [vmem:[#allocation3 + $0x270] sm:$0xff]
    %v170 = vld [vmem:[#allocation3 + $0x278] sm:$0xff]
    %v171 = vld [vmem:[#allocation3 + $0x280] sm:$0xff]
    %v172 = vld [vmem:[#allocation3 + $0x288] sm:$0xff]
    %v173 = vld [vmem:[#allocation3 + $0x290] sm:$0xff]
    %v174 = vld [vmem:[#allocation3 + $0x298] sm:$0xff]
    %v175 = vld [vmem:[#allocation3 + $0x2a0] sm:$0xff]
    %v176 = vld [vmem:[#allocation3 + $0x2a8] sm:$0xff]
    %v177 = vld [vmem:[#allocation3 + $0x2b0] sm:$0xff]
    %v178 = vld [vmem:[#allocation3 + $0x2b8] sm:$0xff]
    %v179 = vld [vmem:[#allocation3 + $0x2c0] sm:$0xff]
    %v180 = vld [vmem:[#allocation3 + $0x2c8] sm:$0xff]
    %v181 = vld [vmem:[#allocation3 + $0x2d0] sm:$0xff]
    %v182 = vld [vmem:[#allocation3 + $0x2d8] sm:$0xff]
    %v183 = vld [vmem:[#allocation3 + $0x2e0] sm:$0xff]
    %v184 = vld [vmem:[#allocation3 + $0x2e8] sm:$0xff]
    %v185 = vld [vmem:[#allocation3 + $0x2f0] sm:$0xff]
    %v186 = vld [vmem:[#allocation3 + $0x2f8] sm:$0xff]
    %v187 = vld [vmem:[#allocation3 + $0x300] sm:$0xff]
    %v188 = vld [vmem:[#allocation3 + $0x308] sm:$0xff]
    %v189 = vld [vmem:[#allocation3 + $0x310] sm:$0xff]
    %v190 = vld [vmem:[#allocation3 + $0x318] sm:$0xff]
    %v191 = vld [vmem:[#allocation3 + $0x320] sm:$0xff]
    %v192 = vld [vmem:[#allocation3 + $0x328] sm:$0xff]
    %v193 = vld [vmem:[#allocation3 + $0x330] sm:$0xff]
    %v194 = vld [vmem:[#allocation3 + $0x338] sm:$0xff]
    %v195 = vld [vmem:[#allocation3 + $0x340] sm:$0xff]
    %v196 = vld [vmem:[#allocation3 + $0x348] sm:$0xff]
    %v197 = vld [vmem:[#allocation3 + $0x350] sm:$0xff]
    %v198 = vld [vmem:[#allocation3 + $0x358] sm:$0xff]
    %v199 = vld [vmem:[#allocation3 + $0x360] sm:$0xff]
    %v200 = vld [vmem:[#allocation3 + $0x368] sm:$0xff]
    %v201 = vld [vmem:[#allocation3 + $0x370] sm:$0xff]
    %v202 = vld [vmem:[#allocation3 + $0x378] sm:$0xff]
    %v203 = vld [vmem:[#allocation3 + $0x380] sm:$0xff]
    %v204 = vld [vmem:[#allocation3 + $0x388] sm:$0xff]
    %v205 = vld [vmem:[#allocation3 + $0x390] sm:$0xff]
    %v206 = vld [vmem:[#allocation3 + $0x398] sm:$0xff]
    %v207 = vld [vmem:[#allocation3 + $0x3a0] sm:$0xff]
    %v208 = vld [vmem:[#allocation3 + $0x3a8] sm:$0xff]
    %v209 = vld [vmem:[#allocation3 + $0x3b0] sm:$0xff]
    %v210 = vld [vmem:[#allocation3 + $0x3b8] sm:$0xff]
    %v211 = vld [vmem:[#allocation3 + $0x3c0] sm:$0xff]
    %v212 = vld [vmem:[#allocation3 + $0x3c8] sm:$0xff]
    %v213 = vld [vmem:[#allocation3 + $0x3d0] sm:$0xff]
    %v214 = vld [vmem:[#allocation3 + $0x3d8] sm:$0xff]
    %v215 = vld [vmem:[#allocation3 + $0x3e0] sm:$0xff]
    %v216 = vld [vmem:[#allocation3 + $0x3e8] sm:$0xff]
    %v217 = vld [vmem:[#allocation3 + $0x3f0] sm:$0xff]
    %v218 = vld [vmem:[#allocation3 + $0x3f8] sm:$0xff]
    %v347 = vcombine.low %v91, %v93
    %v348 = vcombine.high %v91, %v93
    %v349 = vcombine.low %v95, %v97
    %v350 = vcombine.high %v95, %v97
    %v352 = vunpack.c.l.s4 1983009808
    %v353 = vunpack.c.0.s8 %v352
    %v354 = vlaneseq
    %v355 = vshrl.u32 %v354, 7
    %v356 = vsub.s32 %v353, %v355
    %v357 = vrot.slane %v347, %v356
    %v359 = vunpack.c.l.s4 1983009808
    %v360 = vunpack.c.0.s8 %v359
    %v361 = vlaneseq
    %v362 = vshrl.u32 %v361, 7
    %v363 = vsub.s32 %v360, %v362
    %v364 = vrot.slane %v348, %v363
    %v366 = vunpack.c.l.s4 1983009808
    %v367 = vunpack.c.0.s8 %v366
    %v368 = vlaneseq
    %v369 = vshrl.u32 %v368, 7
    %v370 = vsub.s32 %v367, %v369
    %v371 = vrot.slane %v349, %v370
    %v373 = vunpack.c.l.s4 1983009808
    %v374 = vunpack.c.0.s8 %v373
    %v375 = vlaneseq
    %v376 = vshrl.u32 %v375, 7
    %v377 = vsub.s32 %v374, %v376
    %v378 = vrot.slane %v350, %v377
    %v379 = vcombine.low %v357, %v371
    %v380 = vcombine.high %v357, %v371
    %v381 = vcombine.low %v364, %v378
    %v382 = vcombine.high %v364, %v378
    %v383 = vcombine.low %v92, %v94
    %v384 = vcombine.high %v92, %v94
    %v385 = vcombine.low %v96, %v98
    %v386 = vcombine.high %v96, %v98
    %v388 = vunpack.c.l.s4 1983009808
    %v389 = vunpack.c.0.s8 %v388
    %v390 = vlaneseq
    %v391 = vshrl.u32 %v390, 7
    %v392 = vsub.s32 %v389, %v391
    %v393 = vrot.slane %v383, %v392
    %v395 = vunpack.c.l.s4 1983009808
    %v396 = vunpack.c.0.s8 %v395
    %v397 = vlaneseq
    %v398 = vshrl.u32 %v397, 7
    %v399 = vsub.s32 %v396, %v398
    %v400 = vrot.slane %v384, %v399
    %v402 = vunpack.c.l.s4 1983009808
    %v403 = vunpack.c.0.s8 %v402
    %v404 = vlaneseq
    %v405 = vshrl.u32 %v404, 7
    %v406 = vsub.s32 %v403, %v405
    %v407 = vrot.slane %v385, %v406
    %v409 = vunpack.c.l.s4 1983009808
    %v410 = vunpack.c.0.s8 %v409
    %v411 = vlaneseq
    %v412 = vshrl.u32 %v411, 7
    %v413 = vsub.s32 %v410, %v412
    %v414 = vrot.slane %v386, %v413
    %v415 = vcombine.low %v393, %v407
    %v416 = vcombine.high %v393, %v407
    %v417 = vcombine.low %v400, %v414
    %v418 = vcombine.high %v400, %v414
    %v419 = vcombine.low %v99, %v101
    %v420 = vcombine.high %v99, %v101
    %v421 = vcombine.low %v103, %v105
    %v422 = vcombine.high %v103, %v105
    %v424 = vunpack.c.l.s4 1983009808
    %v425 = vunpack.c.0.s8 %v424
    %v426 = vlaneseq
    %v427 = vshrl.u32 %v426, 7
    %v428 = vsub.s32 %v425, %v427
    %v429 = vrot.slane %v419, %v428
    %v431 = vunpack.c.l.s4 1983009808
    %v432 = vunpack.c.0.s8 %v431
    %v433 = vlaneseq
    %v434 = vshrl.u32 %v433, 7
    %v435 = vsub.s32 %v432, %v434
    %v436 = vrot.slane %v420, %v435
    %v438 = vunpack.c.l.s4 1983009808
    %v439 = vunpack.c.0.s8 %v438
    %v440 = vlaneseq
    %v441 = vshrl.u32 %v440, 7
    %v442 = vsub.s32 %v439, %v441
    %v443 = vrot.slane %v421, %v442
    %v445 = vunpack.c.l.s4 1983009808
    %v446 = vunpack.c.0.s8 %v445
    %v447 = vlaneseq
    %v448 = vshrl.u32 %v447, 7
    %v449 = vsub.s32 %v446, %v448
    %v450 = vrot.slane %v422, %v449
    %v451 = vcombine.low %v429, %v443
    %v452 = vcombine.high %v429, %v443
    %v453 = vcombine.low %v436, %v450
    %v454 = vcombine.high %v436, %v450
    %v455 = vcombine.low %v100, %v102
    %v456 = vcombine.high %v100, %v102
    %v457 = vcombine.low %v104, %v106
    %v458 = vcombine.high %v104, %v106
    %v460 = vunpack.c.l.s4 1983009808
    %v461 = vunpack.c.0.s8 %v460
    %v462 = vlaneseq
    %v463 = vshrl.u32 %v462, 7
    %v464 = vsub.s32 %v461, %v463
    %v465 = vrot.slane %v455, %v464
    %v467 = vunpack.c.l.s4 1983009808
    %v468 = vunpack.c.0.s8 %v467
    %v469 = vlaneseq
    %v470 = vshrl.u32 %v469, 7
    %v471 = vsub.s32 %v468, %v470
    %v472 = vrot.slane %v456, %v471
    %v474 = vunpack.c.l.s4 1983009808
    %v475 = vunpack.c.0.s8 %v474
    %v476 = vlaneseq
    %v477 = vshrl.u32 %v476, 7
    %v478 = vsub.s32 %v475, %v477
    %v479 = vrot.slane %v457, %v478
    %v481 = vunpack.c.l.s4 1983009808
    %v482 = vunpack.c.0.s8 %v481
    %v483 = vlaneseq
    %v484 = vshrl.u32 %v483, 7
    %v485 = vsub.s32 %v482, %v484
    %v486 = vrot.slane %v458, %v485
    %v487 = vcombine.low %v465, %v479
    %v488 = vcombine.high %v465, %v479
    %v489 = vcombine.low %v472, %v486
    %v490 = vcombine.high %v472, %v486
    %v491 = vcombine.low %v107, %v109
    %v492 = vcombine.high %v107, %v109
    %v493 = vcombine.low %v111, %v113
    %v494 = vcombine.high %v111, %v113
    %v496 = vunpack.c.l.s4 1983009808
    %v497 = vunpack.c.0.s8 %v496
    %v498 = vlaneseq
    %v499 = vshrl.u32 %v498, 7
    %v500 = vsub.s32 %v497, %v499
    %v501 = vrot.slane %v491, %v500
    %v503 = vunpack.c.l.s4 1983009808
    %v504 = vunpack.c.0.s8 %v503
    %v505 = vlaneseq
    %v506 = vshrl.u32 %v505, 7
    %v507 = vsub.s32 %v504, %v506
    %v508 = vrot.slane %v492, %v507
    %v510 = vunpack.c.l.s4 1983009808
    %v511 = vunpack.c.0.s8 %v510
    %v512 = vlaneseq
    %v513 = vshrl.u32 %v512, 7
    %v514 = vsub.s32 %v511, %v513
    %v515 = vrot.slane %v493, %v514
    %v517 = vunpack.c.l.s4 1983009808
    %v518 = vunpack.c.0.s8 %v517
    %v519 = vlaneseq
    %v520 = vshrl.u32 %v519, 7
    %v521 = vsub.s32 %v518, %v520
    %v522 = vrot.slane %v494, %v521
    %v523 = vcombine.low %v501, %v515
    %v524 = vcombine.high %v501, %v515
    %v525 = vcombine.low %v508, %v522
    %v526 = vcombine.high %v508, %v522
    %v527 = vcombine.low %v108, %v110
    %v528 = vcombine.high %v108, %v110
    %v529 = vcombine.low %v112, %v114
    %v530 = vcombine.high %v112, %v114
    %v532 = vunpack.c.l.s4 1983009808
    %v533 = vunpack.c.0.s8 %v532
    %v534 = vlaneseq
    %v535 = vshrl.u32 %v534, 7
    %v536 = vsub.s32 %v533, %v535
    %v537 = vrot.slane %v527, %v536
    %v539 = vunpack.c.l.s4 1983009808
    %v540 = vunpack.c.0.s8 %v539
    %v541 = vlaneseq
    %v542 = vshrl.u32 %v541, 7
    %v543 = vsub.s32 %v540, %v542
    %v544 = vrot.slane %v528, %v543
    %v546 = vunpack.c.l.s4 1983009808
    %v547 = vunpack.c.0.s8 %v546
    %v548 = vlaneseq
    %v549 = vshrl.u32 %v548, 7
    %v550 = vsub.s32 %v547, %v549
    %v551 = vrot.slane %v529, %v550
    %v553 = vunpack.c.l.s4 1983009808
    %v554 = vunpack.c.0.s8 %v553
    %v555 = vlaneseq
    %v556 = vshrl.u32 %v555, 7
    %v557 = vsub.s32 %v554, %v556
    %v558 = vrot.slane %v530, %v557
    %v559 = vcombine.low %v537, %v551
    %v560 = vcombine.high %v537, %v551
    %v561 = vcombine.low %v544, %v558
    %v562 = vcombine.high %v544, %v558
    %v563 = vcombine.low %v115, %v117
    %v564 = vcombine.high %v115, %v117
    %v565 = vcombine.low %v119, %v121
    %v566 = vcombine.high %v119, %v121
    %v568 = vunpack.c.l.s4 1983009808
    %v569 = vunpack.c.0.s8 %v568
    %v570 = vlaneseq
    %v571 = vshrl.u32 %v570, 7
    %v572 = vsub.s32 %v569, %v571
    %v573 = vrot.slane %v563, %v572
    %v575 = vunpack.c.l.s4 1983009808
    %v576 = vunpack.c.0.s8 %v575
    %v577 = vlaneseq
    %v578 = vshrl.u32 %v577, 7
    %v579 = vsub.s32 %v576, %v578
    %v580 = vrot.slane %v564, %v579
    %v582 = vunpack.c.l.s4 1983009808
    %v583 = vunpack.c.0.s8 %v582
    %v584 = vlaneseq
    %v585 = vshrl.u32 %v584, 7
    %v586 = vsub.s32 %v583, %v585
    %v587 = vrot.slane %v565, %v586
    %v589 = vunpack.c.l.s4 1983009808
    %v590 = vunpack.c.0.s8 %v589
    %v591 = vlaneseq
    %v592 = vshrl.u32 %v591, 7
    %v593 = vsub.s32 %v590, %v592
    %v594 = vrot.slane %v566, %v593
    %v595 = vcombine.low %v573, %v587
    %v596 = vcombine.high %v573, %v587
    %v597 = vcombine.low %v580, %v594
    %v598 = vcombine.high %v580, %v594
    %v599 = vcombine.low %v116, %v118
    %v600 = vcombine.high %v116, %v118
    %v601 = vcombine.low %v120, %v122
    %v602 = vcombine.high %v120, %v122
    %v604 = vunpack.c.l.s4 1983009808
    %v605 = vunpack.c.0.s8 %v604
    %v606 = vlaneseq
    %v607 = vshrl.u32 %v606, 7
    %v608 = vsub.s32 %v605, %v607
    %v609 = vrot.slane %v599, %v608
    %v611 = vunpack.c.l.s4 1983009808
    %v612 = vunpack.c.0.s8 %v611
    %v613 = vlaneseq
    %v614 = vshrl.u32 %v613, 7
    %v615 = vsub.s32 %v612, %v614
    %v616 = vrot.slane %v600, %v615
    %v618 = vunpack.c.l.s4 1983009808
    %v619 = vunpack.c.0.s8 %v618
    %v620 = vlaneseq
    %v621 = vshrl.u32 %v620, 7
    %v622 = vsub.s32 %v619, %v621
    %v623 = vrot.slane %v601, %v622
    %v625 = vunpack.c.l.s4 1983009808
    %v626 = vunpack.c.0.s8 %v625
    %v627 = vlaneseq
    %v628 = vshrl.u32 %v627, 7
    %v629 = vsub.s32 %v626, %v628
    %v630 = vrot.slane %v602, %v629
    %v631 = vcombine.low %v609, %v623
    %v632 = vcombine.high %v609, %v623
    %v633 = vcombine.low %v616, %v630
    %v634 = vcombine.high %v616, %v630
    %v635 = vcombine.low %v123, %v125
    %v636 = vcombine.high %v123, %v125
    %v637 = vcombine.low %v127, %v129
    %v638 = vcombine.high %v127, %v129
    %v640 = vunpack.c.l.s4 1983009808
    %v641 = vunpack.c.0.s8 %v640
    %v642 = vlaneseq
    %v643 = vshrl.u32 %v642, 7
    %v644 = vsub.s32 %v641, %v643
    %v645 = vrot.slane %v635, %v644
    %v647 = vunpack.c.l.s4 1983009808
    %v648 = vunpack.c.0.s8 %v647
    %v649 = vlaneseq
    %v650 = vshrl.u32 %v649, 7
    %v651 = vsub.s32 %v648, %v650
    %v652 = vrot.slane %v636, %v651
    %v654 = vunpack.c.l.s4 1983009808
    %v655 = vunpack.c.0.s8 %v654
    %v656 = vlaneseq
    %v657 = vshrl.u32 %v656, 7
    %v658 = vsub.s32 %v655, %v657
    %v659 = vrot.slane %v637, %v658
    %v661 = vunpack.c.l.s4 1983009808
    %v662 = vunpack.c.0.s8 %v661
    %v663 = vlaneseq
    %v664 = vshrl.u32 %v663, 7
    %v665 = vsub.s32 %v662, %v664
    %v666 = vrot.slane %v638, %v665
    %v667 = vcombine.low %v645, %v659
    %v668 = vcombine.high %v645, %v659
    %v669 = vcombine.low %v652, %v666
    %v670 = vcombine.high %v652, %v666
    %v671 = vcombine.low %v124, %v126
    %v672 = vcombine.high %v124, %v126
    %v673 = vcombine.low %v128, %v130
    %v674 = vcombine.high %v128, %v130
    %v676 = vunpack.c.l.s4 1983009808
    %v677 = vunpack.c.0.s8 %v676
    %v678 = vlaneseq
    %v679 = vshrl.u32 %v678, 7
    %v680 = vsub.s32 %v677, %v679
    %v681 = vrot.slane %v671, %v680
    %v683 = vunpack.c.l.s4 1983009808
    %v684 = vunpack.c.0.s8 %v683
    %v685 = vlaneseq
    %v686 = vshrl.u32 %v685, 7
    %v687 = vsub.s32 %v684, %v686
    %v688 = vrot.slane %v672, %v687
    %v690 = vunpack.c.l.s4 1983009808
    %v691 = vunpack.c.0.s8 %v690
    %v692 = vlaneseq
    %v693 = vshrl.u32 %v692, 7
    %v694 = vsub.s32 %v691, %v693
    %v695 = vrot.slane %v673, %v694
    %v697 = vunpack.c.l.s4 1983009808
    %v698 = vunpack.c.0.s8 %v697
    %v699 = vlaneseq
    %v700 = vshrl.u32 %v699, 7
    %v701 = vsub.s32 %v698, %v700
    %v702 = vrot.slane %v674, %v701
    %v703 = vcombine.low %v681, %v695
    %v704 = vcombine.high %v681, %v695
    %v705 = vcombine.low %v688, %v702
    %v706 = vcombine.high %v688, %v702
    %v707 = vcombine.low %v131, %v133
    %v708 = vcombine.high %v131, %v133
    %v709 = vcombine.low %v135, %v137
    %v710 = vcombine.high %v135, %v137
    %v712 = vunpack.c.l.s4 1983009808
    %v713 = vunpack.c.0.s8 %v712
    %v714 = vlaneseq
    %v715 = vshrl.u32 %v714, 7
    %v716 = vsub.s32 %v713, %v715
    %v717 = vrot.slane %v707, %v716
    %v719 = vunpack.c.l.s4 1983009808
    %v720 = vunpack.c.0.s8 %v719
    %v721 = vlaneseq
    %v722 = vshrl.u32 %v721, 7
    %v723 = vsub.s32 %v720, %v722
    %v724 = vrot.slane %v708, %v723
    %v726 = vunpack.c.l.s4 1983009808
    %v727 = vunpack.c.0.s8 %v726
    %v728 = vlaneseq
    %v729 = vshrl.u32 %v728, 7
    %v730 = vsub.s32 %v727, %v729
    %v731 = vrot.slane %v709, %v730
    %v733 = vunpack.c.l.s4 1983009808
    %v734 = vunpack.c.0.s8 %v733
    %v735 = vlaneseq
    %v736 = vshrl.u32 %v735, 7
    %v737 = vsub.s32 %v734, %v736
    %v738 = vrot.slane %v710, %v737
    %v739 = vcombine.low %v717, %v731
    %v740 = vcombine.high %v717, %v731
    %v741 = vcombine.low %v724, %v738
    %v742 = vcombine.high %v724, %v738
    %v743 = vcombine.low %v132, %v134
    %v744 = vcombine.high %v132, %v134
    %v745 = vcombine.low %v136, %v138
    %v746 = vcombine.high %v136, %v138
    %v748 = vunpack.c.l.s4 1983009808
    %v749 = vunpack.c.0.s8 %v748
    %v750 = vlaneseq
    %v751 = vshrl.u32 %v750, 7
    %v752 = vsub.s32 %v749, %v751
    %v753 = vrot.slane %v743, %v752
    %v755 = vunpack.c.l.s4 1983009808
    %v756 = vunpack.c.0.s8 %v755
    %v757 = vlaneseq
    %v758 = vshrl.u32 %v757, 7
    %v759 = vsub.s32 %v756, %v758
    %v760 = vrot.slane %v744, %v759
    %v762 = vunpack.c.l.s4 1983009808
    %v763 = vunpack.c.0.s8 %v762
    %v764 = vlaneseq
    %v765 = vshrl.u32 %v764, 7
    %v766 = vsub.s32 %v763, %v765
    %v767 = vrot.slane %v745, %v766
    %v769 = vunpack.c.l.s4 1983009808
    %v770 = vunpack.c.0.s8 %v769
    %v771 = vlaneseq
    %v772 = vshrl.u32 %v771, 7
    %v773 = vsub.s32 %v770, %v772
    %v774 = vrot.slane %v746, %v773
    %v775 = vcombine.low %v753, %v767
    %v776 = vcombine.high %v753, %v767
    %v777 = vcombine.low %v760, %v774
    %v778 = vcombine.high %v760, %v774
    %v779 = vcombine.low %v139, %v141
    %v780 = vcombine.high %v139, %v141
    %v781 = vcombine.low %v143, %v145
    %v782 = vcombine.high %v143, %v145
    %v784 = vunpack.c.l.s4 1983009808
    %v785 = vunpack.c.0.s8 %v784
    %v786 = vlaneseq
    %v787 = vshrl.u32 %v786, 7
    %v788 = vsub.s32 %v785, %v787
    %v789 = vrot.slane %v779, %v788
    %v791 = vunpack.c.l.s4 1983009808
    %v792 = vunpack.c.0.s8 %v791
    %v793 = vlaneseq
    %v794 = vshrl.u32 %v793, 7
    %v795 = vsub.s32 %v792, %v794
    %v796 = vrot.slane %v780, %v795
    %v798 = vunpack.c.l.s4 1983009808
    %v799 = vunpack.c.0.s8 %v798
    %v800 = vlaneseq
    %v801 = vshrl.u32 %v800, 7
    %v802 = vsub.s32 %v799, %v801
    %v803 = vrot.slane %v781, %v802
    %v805 = vunpack.c.l.s4 1983009808
    %v806 = vunpack.c.0.s8 %v805
    %v807 = vlaneseq
    %v808 = vshrl.u32 %v807, 7
    %v809 = vsub.s32 %v806, %v808
    %v810 = vrot.slane %v782, %v809
    %v811 = vcombine.low %v789, %v803
    %v812 = vcombine.high %v789, %v803
    %v813 = vcombine.low %v796, %v810
    %v814 = vcombine.high %v796, %v810
    %v815 = vcombine.low %v140, %v142
    %v816 = vcombine.high %v140, %v142
    %v817 = vcombine.low %v144, %v146
    %v818 = vcombine.high %v144, %v146
    %v820 = vunpack.c.l.s4 1983009808
    %v821 = vunpack.c.0.s8 %v820
    %v822 = vlaneseq
    %v823 = vshrl.u32 %v822, 7
    %v824 = vsub.s32 %v821, %v823
    %v825 = vrot.slane %v815, %v824
    %v827 = vunpack.c.l.s4 1983009808
    %v828 = vunpack.c.0.s8 %v827
    %v829 = vlaneseq
    %v830 = vshrl.u32 %v829, 7
    %v831 = vsub.s32 %v828, %v830
    %v832 = vrot.slane %v816, %v831
    %v834 = vunpack.c.l.s4 1983009808
    %v835 = vunpack.c.0.s8 %v834
    %v836 = vlaneseq
    %v837 = vshrl.u32 %v836, 7
    %v838 = vsub.s32 %v835, %v837
    %v839 = vrot.slane %v817, %v838
    %v841 = vunpack.c.l.s4 1983009808
    %v842 = vunpack.c.0.s8 %v841
    %v843 = vlaneseq
    %v844 = vshrl.u32 %v843, 7
    %v845 = vsub.s32 %v842, %v844
    %v846 = vrot.slane %v818, %v845
    %v847 = vcombine.low %v825, %v839
    %v848 = vcombine.high %v825, %v839
    %v849 = vcombine.low %v832, %v846
    %v850 = vcombine.high %v832, %v846
    %v851 = vcombine.low %v147, %v149
    %v852 = vcombine.high %v147, %v149
    %v853 = vcombine.low %v151, %v153
    %v854 = vcombine.high %v151, %v153
    %v856 = vunpack.c.l.s4 1983009808
    %v857 = vunpack.c.0.s8 %v856
    %v858 = vlaneseq
    %v859 = vshrl.u32 %v858, 7
    %v860 = vsub.s32 %v857, %v859
    %v861 = vrot.slane %v851, %v860
    %v863 = vunpack.c.l.s4 1983009808
    %v864 = vunpack.c.0.s8 %v863
    %v865 = vlaneseq
    %v866 = vshrl.u32 %v865, 7
    %v867 = vsub.s32 %v864, %v866
    %v868 = vrot.slane %v852, %v867
    %v870 = vunpack.c.l.s4 1983009808
    %v871 = vunpack.c.0.s8 %v870
    %v872 = vlaneseq
    %v873 = vshrl.u32 %v872, 7
    %v874 = vsub.s32 %v871, %v873
    %v875 = vrot.slane %v853, %v874
    %v877 = vunpack.c.l.s4 1983009808
    %v878 = vunpack.c.0.s8 %v877
    %v879 = vlaneseq
    %v880 = vshrl.u32 %v879, 7
    %v881 = vsub.s32 %v878, %v880
    %v882 = vrot.slane %v854, %v881
    %v883 = vcombine.low %v861, %v875
    %v884 = vcombine.high %v861, %v875
    %v885 = vcombine.low %v868, %v882
    %v886 = vcombine.high %v868, %v882
    %v887 = vcombine.low %v148, %v150
    %v888 = vcombine.high %v148, %v150
    %v889 = vcombine.low %v152, %v154
    %v890 = vcombine.high %v152, %v154
    %v892 = vunpack.c.l.s4 1983009808
    %v893 = vunpack.c.0.s8 %v892
    %v894 = vlaneseq
    %v895 = vshrl.u32 %v894, 7
    %v896 = vsub.s32 %v893, %v895
    %v897 = vrot.slane %v887, %v896
    %v899 = vunpack.c.l.s4 1983009808
    %v900 = vunpack.c.0.s8 %v899
    %v901 = vlaneseq
    %v902 = vshrl.u32 %v901, 7
    %v903 = vsub.s32 %v900, %v902
    %v904 = vrot.slane %v888, %v903
    %v906 = vunpack.c.l.s4 1983009808
    %v907 = vunpack.c.0.s8 %v906
    %v908 = vlaneseq
    %v909 = vshrl.u32 %v908, 7
    %v910 = vsub.s32 %v907, %v909
    %v911 = vrot.slane %v889, %v910
    %v913 = vunpack.c.l.s4 1983009808
    %v914 = vunpack.c.0.s8 %v913
    %v915 = vlaneseq
    %v916 = vshrl.u32 %v915, 7
    %v917 = vsub.s32 %v914, %v916
    %v918 = vrot.slane %v890, %v917
    %v919 = vcombine.low %v897, %v911
    %v920 = vcombine.high %v897, %v911
    %v921 = vcombine.low %v904, %v918
    %v922 = vcombine.high %v904, %v918
    %v923 = vcombine.low %v155, %v157
    %v924 = vcombine.high %v155, %v157
    %v925 = vcombine.low %v159, %v161
    %v926 = vcombine.high %v159, %v161
    %v928 = vunpack.c.l.s4 1983009808
    %v929 = vunpack.c.0.s8 %v928
    %v930 = vlaneseq
    %v931 = vshrl.u32 %v930, 7
    %v932 = vsub.s32 %v929, %v931
    %v933 = vrot.slane %v923, %v932
    %v935 = vunpack.c.l.s4 1983009808
    %v936 = vunpack.c.0.s8 %v935
    %v937 = vlaneseq
    %v938 = vshrl.u32 %v937, 7
    %v939 = vsub.s32 %v936, %v938
    %v940 = vrot.slane %v924, %v939
    %v942 = vunpack.c.l.s4 1983009808
    %v943 = vunpack.c.0.s8 %v942
    %v944 = vlaneseq
    %v945 = vshrl.u32 %v944, 7
    %v946 = vsub.s32 %v943, %v945
    %v947 = vrot.slane %v925, %v946
    %v949 = vunpack.c.l.s4 1983009808
    %v950 = vunpack.c.0.s8 %v949
    %v951 = vlaneseq
    %v952 = vshrl.u32 %v951, 7
    %v953 = vsub.s32 %v950, %v952
    %v954 = vrot.slane %v926, %v953
    %v955 = vcombine.low %v933, %v947
    %v956 = vcombine.high %v933, %v947
    %v957 = vcombine.low %v940, %v954
    %v958 = vcombine.high %v940, %v954
    %v959 = vcombine.low %v156, %v158
    %v960 = vcombine.high %v156, %v158
    %v961 = vcombine.low %v160, %v162
    %v962 = vcombine.high %v160, %v162
    %v964 = vunpack.c.l.s4 1983009808
    %v965 = vunpack.c.0.s8 %v964
    %v966 = vlaneseq
    %v967 = vshrl.u32 %v966, 7
    %v968 = vsub.s32 %v965, %v967
    %v969 = vrot.slane %v959, %v968
    %v971 = vunpack.c.l.s4 1983009808
    %v972 = vunpack.c.0.s8 %v971
    %v973 = vlaneseq
    %v974 = vshrl.u32 %v973, 7
    %v975 = vsub.s32 %v972, %v974
    %v976 = vrot.slane %v960, %v975
    %v978 = vunpack.c.l.s4 1983009808
    %v979 = vunpack.c.0.s8 %v978
    %v980 = vlaneseq
    %v981 = vshrl.u32 %v980, 7
    %v982 = vsub.s32 %v979, %v981
    %v983 = vrot.slane %v961, %v982
    %v985 = vunpack.c.l.s4 1983009808
    %v986 = vunpack.c.0.s8 %v985
    %v987 = vlaneseq
    %v988 = vshrl.u32 %v987, 7
    %v989 = vsub.s32 %v986, %v988
    %v990 = vrot.slane %v962, %v989
    %v991 = vcombine.low %v969, %v983
    %v992 = vcombine.high %v969, %v983
    %v993 = vcombine.low %v976, %v990
    %v994 = vcombine.high %v976, %v990
    %v995 = vcombine.low %v163, %v165
    %v996 = vcombine.high %v163, %v165
    %v997 = vcombine.low %v167, %v169
    %v998 = vcombine.high %v167, %v169
    %v1000 = vunpack.c.l.s4 1983009808
    %v1001 = vunpack.c.0.s8 %v1000
    %v1002 = vlaneseq
    %v1003 = vshrl.u32 %v1002, 7
    %v1004 = vsub.s32 %v1001, %v1003
    %v1005 = vrot.slane %v995, %v1004
    %v1007 = vunpack.c.l.s4 1983009808
    %v1008 = vunpack.c.0.s8 %v1007
    %v1009 = vlaneseq
    %v1010 = vshrl.u32 %v1009, 7
    %v1011 = vsub.s32 %v1008, %v1010
    %v1012 = vrot.slane %v996, %v1011
    %v1014 = vunpack.c.l.s4 1983009808
    %v1015 = vunpack.c.0.s8 %v1014
    %v1016 = vlaneseq
    %v1017 = vshrl.u32 %v1016, 7
    %v1018 = vsub.s32 %v1015, %v1017
    %v1019 = vrot.slane %v997, %v1018
    %v1021 = vunpack.c.l.s4 1983009808
    %v1022 = vunpack.c.0.s8 %v1021
    %v1023 = vlaneseq
    %v1024 = vshrl.u32 %v1023, 7
    %v1025 = vsub.s32 %v1022, %v1024
    %v1026 = vrot.slane %v998, %v1025
    %v1027 = vcombine.low %v1005, %v1019
    %v1028 = vcombine.high %v1005, %v1019
    %v1029 = vcombine.low %v1012, %v1026
    %v1030 = vcombine.high %v1012, %v1026
    %v1031 = vcombine.low %v164, %v166
    %v1032 = vcombine.high %v164, %v166
    %v1033 = vcombine.low %v168, %v170
    %v1034 = vcombine.high %v168, %v170
    %v1036 = vunpack.c.l.s4 1983009808
    %v1037 = vunpack.c.0.s8 %v1036
    %v1038 = vlaneseq
    %v1039 = vshrl.u32 %v1038, 7
    %v1040 = vsub.s32 %v1037, %v1039
    %v1041 = vrot.slane %v1031, %v1040
    %v1043 = vunpack.c.l.s4 1983009808
    %v1044 = vunpack.c.0.s8 %v1043
    %v1045 = vlaneseq
    %v1046 = vshrl.u32 %v1045, 7
    %v1047 = vsub.s32 %v1044, %v1046
    %v1048 = vrot.slane %v1032, %v1047
    %v1050 = vunpack.c.l.s4 1983009808
    %v1051 = vunpack.c.0.s8 %v1050
    %v1052 = vlaneseq
    %v1053 = vshrl.u32 %v1052, 7
    %v1054 = vsub.s32 %v1051, %v1053
    %v1055 = vrot.slane %v1033, %v1054
    %v1057 = vunpack.c.l.s4 1983009808
    %v1058 = vunpack.c.0.s8 %v1057
    %v1059 = vlaneseq
    %v1060 = vshrl.u32 %v1059, 7
    %v1061 = vsub.s32 %v1058, %v1060
    %v1062 = vrot.slane %v1034, %v1061
    %v1063 = vcombine.low %v1041, %v1055
    %v1064 = vcombine.high %v1041, %v1055
    %v1065 = vcombine.low %v1048, %v1062
    %v1066 = vcombine.high %v1048, %v1062
    %v1067 = vcombine.low %v171, %v173
    %v1068 = vcombine.high %v171, %v173
    %v1069 = vcombine.low %v175, %v177
    %v1070 = vcombine.high %v175, %v177
    %v1072 = vunpack.c.l.s4 1983009808
    %v1073 = vunpack.c.0.s8 %v1072
    %v1074 = vlaneseq
    %v1075 = vshrl.u32 %v1074, 7
    %v1076 = vsub.s32 %v1073, %v1075
    %v1077 = vrot.slane %v1067, %v1076
    %v1079 = vunpack.c.l.s4 1983009808
    %v1080 = vunpack.c.0.s8 %v1079
    %v1081 = vlaneseq
    %v1082 = vshrl.u32 %v1081, 7
    %v1083 = vsub.s32 %v1080, %v1082
    %v1084 = vrot.slane %v1068, %v1083
    %v1086 = vunpack.c.l.s4 1983009808
    %v1087 = vunpack.c.0.s8 %v1086
    %v1088 = vlaneseq
    %v1089 = vshrl.u32 %v1088, 7
    %v1090 = vsub.s32 %v1087, %v1089
    %v1091 = vrot.slane %v1069, %v1090
    %v1093 = vunpack.c.l.s4 1983009808
    %v1094 = vunpack.c.0.s8 %v1093
    %v1095 = vlaneseq
    %v1096 = vshrl.u32 %v1095, 7
    %v1097 = vsub.s32 %v1094, %v1096
    %v1098 = vrot.slane %v1070, %v1097
    %v1099 = vcombine.low %v1077, %v1091
    %v1100 = vcombine.high %v1077, %v1091
    %v1101 = vcombine.low %v1084, %v1098
    %v1102 = vcombine.high %v1084, %v1098
    %v1103 = vcombine.low %v172, %v174
    %v1104 = vcombine.high %v172, %v174
    %v1105 = vcombine.low %v176, %v178
    %v1106 = vcombine.high %v176, %v178
    %v1108 = vunpack.c.l.s4 1983009808
    %v1109 = vunpack.c.0.s8 %v1108
    %v1110 = vlaneseq
    %v1111 = vshrl.u32 %v1110, 7
    %v1112 = vsub.s32 %v1109, %v1111
    %v1113 = vrot.slane %v1103, %v1112
    %v1115 = vunpack.c.l.s4 1983009808
    %v1116 = vunpack.c.0.s8 %v1115
    %v1117 = vlaneseq
    %v1118 = vshrl.u32 %v1117, 7
    %v1119 = vsub.s32 %v1116, %v1118
    %v1120 = vrot.slane %v1104, %v1119
    %v1122 = vunpack.c.l.s4 1983009808
    %v1123 = vunpack.c.0.s8 %v1122
    %v1124 = vlaneseq
    %v1125 = vshrl.u32 %v1124, 7
    %v1126 = vsub.s32 %v1123, %v1125
    %v1127 = vrot.slane %v1105, %v1126
    %v1129 = vunpack.c.l.s4 1983009808
    %v1130 = vunpack.c.0.s8 %v1129
    %v1131 = vlaneseq
    %v1132 = vshrl.u32 %v1131, 7
    %v1133 = vsub.s32 %v1130, %v1132
    %v1134 = vrot.slane %v1106, %v1133
    %v1135 = vcombine.low %v1113, %v1127
    %v1136 = vcombine.high %v1113, %v1127
    %v1137 = vcombine.low %v1120, %v1134
    %v1138 = vcombine.high %v1120, %v1134
    %v1139 = vcombine.low %v179, %v181
    %v1140 = vcombine.high %v179, %v181
    %v1141 = vcombine.low %v183, %v185
    %v1142 = vcombine.high %v183, %v185
    %v1144 = vunpack.c.l.s4 1983009808
    %v1145 = vunpack.c.0.s8 %v1144
    %v1146 = vlaneseq
    %v1147 = vshrl.u32 %v1146, 7
    %v1148 = vsub.s32 %v1145, %v1147
    %v1149 = vrot.slane %v1139, %v1148
    %v1151 = vunpack.c.l.s4 1983009808
    %v1152 = vunpack.c.0.s8 %v1151
    %v1153 = vlaneseq
    %v1154 = vshrl.u32 %v1153, 7
    %v1155 = vsub.s32 %v1152, %v1154
    %v1156 = vrot.slane %v1140, %v1155
    %v1158 = vunpack.c.l.s4 1983009808
    %v1159 = vunpack.c.0.s8 %v1158
    %v1160 = vlaneseq
    %v1161 = vshrl.u32 %v1160, 7
    %v1162 = vsub.s32 %v1159, %v1161
    %v1163 = vrot.slane %v1141, %v1162
    %v1165 = vunpack.c.l.s4 1983009808
    %v1166 = vunpack.c.0.s8 %v1165
    %v1167 = vlaneseq
    %v1168 = vshrl.u32 %v1167, 7
    %v1169 = vsub.s32 %v1166, %v1168
    %v1170 = vrot.slane %v1142, %v1169
    %v1171 = vcombine.low %v1149, %v1163
    %v1172 = vcombine.high %v1149, %v1163
    %v1173 = vcombine.low %v1156, %v1170
    %v1174 = vcombine.high %v1156, %v1170
    %v1175 = vcombine.low %v180, %v182
    %v1176 = vcombine.high %v180, %v182
    %v1177 = vcombine.low %v184, %v186
    %v1178 = vcombine.high %v184, %v186
    %v1180 = vunpack.c.l.s4 1983009808
    %v1181 = vunpack.c.0.s8 %v1180
    %v1182 = vlaneseq
    %v1183 = vshrl.u32 %v1182, 7
    %v1184 = vsub.s32 %v1181, %v1183
    %v1185 = vrot.slane %v1175, %v1184
    %v1187 = vunpack.c.l.s4 1983009808
    %v1188 = vunpack.c.0.s8 %v1187
    %v1189 = vlaneseq
    %v1190 = vshrl.u32 %v1189, 7
    %v1191 = vsub.s32 %v1188, %v1190
    %v1192 = vrot.slane %v1176, %v1191
    %v1194 = vunpack.c.l.s4 1983009808
    %v1195 = vunpack.c.0.s8 %v1194
    %v1196 = vlaneseq
    %v1197 = vshrl.u32 %v1196, 7
    %v1198 = vsub.s32 %v1195, %v1197
    %v1199 = vrot.slane %v1177, %v1198
    %v1201 = vunpack.c.l.s4 1983009808
    %v1202 = vunpack.c.0.s8 %v1201
    %v1203 = vlaneseq
    %v1204 = vshrl.u32 %v1203, 7
    %v1205 = vsub.s32 %v1202, %v1204
    %v1206 = vrot.slane %v1178, %v1205
    %v1207 = vcombine.low %v1185, %v1199
    %v1208 = vcombine.high %v1185, %v1199
    %v1209 = vcombine.low %v1192, %v1206
    %v1210 = vcombine.high %v1192, %v1206
    %v1211 = vcombine.low %v187, %v189
    %v1212 = vcombine.high %v187, %v189
    %v1213 = vcombine.low %v191, %v193
    %v1214 = vcombine.high %v191, %v193
    %v1216 = vunpack.c.l.s4 1983009808
    %v1217 = vunpack.c.0.s8 %v1216
    %v1218 = vlaneseq
    %v1219 = vshrl.u32 %v1218, 7
    %v1220 = vsub.s32 %v1217, %v1219
    %v1221 = vrot.slane %v1211, %v1220
    %v1223 = vunpack.c.l.s4 1983009808
    %v1224 = vunpack.c.0.s8 %v1223
    %v1225 = vlaneseq
    %v1226 = vshrl.u32 %v1225, 7
    %v1227 = vsub.s32 %v1224, %v1226
    %v1228 = vrot.slane %v1212, %v1227
    %v1230 = vunpack.c.l.s4 1983009808
    %v1231 = vunpack.c.0.s8 %v1230
    %v1232 = vlaneseq
    %v1233 = vshrl.u32 %v1232, 7
    %v1234 = vsub.s32 %v1231, %v1233
    %v1235 = vrot.slane %v1213, %v1234
    %v1237 = vunpack.c.l.s4 1983009808
    %v1238 = vunpack.c.0.s8 %v1237
    %v1239 = vlaneseq
    %v1240 = vshrl.u32 %v1239, 7
    %v1241 = vsub.s32 %v1238, %v1240
    %v1242 = vrot.slane %v1214, %v1241
    %v1243 = vcombine.low %v1221, %v1235
    %v1244 = vcombine.high %v1221, %v1235
    %v1245 = vcombine.low %v1228, %v1242
    %v1246 = vcombine.high %v1228, %v1242
    %v1247 = vcombine.low %v188, %v190
    %v1248 = vcombine.high %v188, %v190
    %v1249 = vcombine.low %v192, %v194
    %v1250 = vcombine.high %v192, %v194
    %v1252 = vunpack.c.l.s4 1983009808
    %v1253 = vunpack.c.0.s8 %v1252
    %v1254 = vlaneseq
    %v1255 = vshrl.u32 %v1254, 7
    %v1256 = vsub.s32 %v1253, %v1255
    %v1257 = vrot.slane %v1247, %v1256
    %v1259 = vunpack.c.l.s4 1983009808
    %v1260 = vunpack.c.0.s8 %v1259
    %v1261 = vlaneseq
    %v1262 = vshrl.u32 %v1261, 7
    %v1263 = vsub.s32 %v1260, %v1262
    %v1264 = vrot.slane %v1248, %v1263
    %v1266 = vunpack.c.l.s4 1983009808
    %v1267 = vunpack.c.0.s8 %v1266
    %v1268 = vlaneseq
    %v1269 = vshrl.u32 %v1268, 7
    %v1270 = vsub.s32 %v1267, %v1269
    %v1271 = vrot.slane %v1249, %v1270
    %v1273 = vunpack.c.l.s4 1983009808
    %v1274 = vunpack.c.0.s8 %v1273
    %v1275 = vlaneseq
    %v1276 = vshrl.u32 %v1275, 7
    %v1277 = vsub.s32 %v1274, %v1276
    %v1278 = vrot.slane %v1250, %v1277
    %v1279 = vcombine.low %v1257, %v1271
    %v1280 = vcombine.high %v1257, %v1271
    %v1281 = vcombine.low %v1264, %v1278
    %v1282 = vcombine.high %v1264, %v1278
    %v1283 = vcombine.low %v195, %v197
    %v1284 = vcombine.high %v195, %v197
    %v1285 = vcombine.low %v199, %v201
    %v1286 = vcombine.high %v199, %v201
    %v1288 = vunpack.c.l.s4 1983009808
    %v1289 = vunpack.c.0.s8 %v1288
    %v1290 = vlaneseq
    %v1291 = vshrl.u32 %v1290, 7
    %v1292 = vsub.s32 %v1289, %v1291
    %v1293 = vrot.slane %v1283, %v1292
    %v1295 = vunpack.c.l.s4 1983009808
    %v1296 = vunpack.c.0.s8 %v1295
    %v1297 = vlaneseq
    %v1298 = vshrl.u32 %v1297, 7
    %v1299 = vsub.s32 %v1296, %v1298
    %v1300 = vrot.slane %v1284, %v1299
    %v1302 = vunpack.c.l.s4 1983009808
    %v1303 = vunpack.c.0.s8 %v1302
    %v1304 = vlaneseq
    %v1305 = vshrl.u32 %v1304, 7
    %v1306 = vsub.s32 %v1303, %v1305
    %v1307 = vrot.slane %v1285, %v1306
    %v1309 = vunpack.c.l.s4 1983009808
    %v1310 = vunpack.c.0.s8 %v1309
    %v1311 = vlaneseq
    %v1312 = vshrl.u32 %v1311, 7
    %v1313 = vsub.s32 %v1310, %v1312
    %v1314 = vrot.slane %v1286, %v1313
    %v1315 = vcombine.low %v1293, %v1307
    %v1316 = vcombine.high %v1293, %v1307
    %v1317 = vcombine.low %v1300, %v1314
    %v1318 = vcombine.high %v1300, %v1314
    %v1319 = vcombine.low %v196, %v198
    %v1320 = vcombine.high %v196, %v198
    %v1321 = vcombine.low %v200, %v202
    %v1322 = vcombine.high %v200, %v202
    %v1324 = vunpack.c.l.s4 1983009808
    %v1325 = vunpack.c.0.s8 %v1324
    %v1326 = vlaneseq
    %v1327 = vshrl.u32 %v1326, 7
    %v1328 = vsub.s32 %v1325, %v1327
    %v1329 = vrot.slane %v1319, %v1328
    %v1331 = vunpack.c.l.s4 1983009808
    %v1332 = vunpack.c.0.s8 %v1331
    %v1333 = vlaneseq
    %v1334 = vshrl.u32 %v1333, 7
    %v1335 = vsub.s32 %v1332, %v1334
    %v1336 = vrot.slane %v1320, %v1335
    %v1338 = vunpack.c.l.s4 1983009808
    %v1339 = vunpack.c.0.s8 %v1338
    %v1340 = vlaneseq
    %v1341 = vshrl.u32 %v1340, 7
    %v1342 = vsub.s32 %v1339, %v1341
    %v1343 = vrot.slane %v1321, %v1342
    %v1345 = vunpack.c.l.s4 1983009808
    %v1346 = vunpack.c.0.s8 %v1345
    %v1347 = vlaneseq
    %v1348 = vshrl.u32 %v1347, 7
    %v1349 = vsub.s32 %v1346, %v1348
    %v1350 = vrot.slane %v1322, %v1349
    %v1351 = vcombine.low %v1329, %v1343
    %v1352 = vcombine.high %v1329, %v1343
    %v1353 = vcombine.low %v1336, %v1350
    %v1354 = vcombine.high %v1336, %v1350
    %v1355 = vcombine.low %v203, %v205
    %v1356 = vcombine.high %v203, %v205
    %v1357 = vcombine.low %v207, %v209
    %v1358 = vcombine.high %v207, %v209
    %v1360 = vunpack.c.l.s4 1983009808
    %v1361 = vunpack.c.0.s8 %v1360
    %v1362 = vlaneseq
    %v1363 = vshrl.u32 %v1362, 7
    %v1364 = vsub.s32 %v1361, %v1363
    %v1365 = vrot.slane %v1355, %v1364
    %v1367 = vunpack.c.l.s4 1983009808
    %v1368 = vunpack.c.0.s8 %v1367
    %v1369 = vlaneseq
    %v1370 = vshrl.u32 %v1369, 7
    %v1371 = vsub.s32 %v1368, %v1370
    %v1372 = vrot.slane %v1356, %v1371
    %v1374 = vunpack.c.l.s4 1983009808
    %v1375 = vunpack.c.0.s8 %v1374
    %v1376 = vlaneseq
    %v1377 = vshrl.u32 %v1376, 7
    %v1378 = vsub.s32 %v1375, %v1377
    %v1379 = vrot.slane %v1357, %v1378
    %v1381 = vunpack.c.l.s4 1983009808
    %v1382 = vunpack.c.0.s8 %v1381
    %v1383 = vlaneseq
    %v1384 = vshrl.u32 %v1383, 7
    %v1385 = vsub.s32 %v1382, %v1384
    %v1386 = vrot.slane %v1358, %v1385
    %v1387 = vcombine.low %v1365, %v1379
    %v1388 = vcombine.high %v1365, %v1379
    %v1389 = vcombine.low %v1372, %v1386
    %v1390 = vcombine.high %v1372, %v1386
    %v1391 = vcombine.low %v204, %v206
    %v1392 = vcombine.high %v204, %v206
    %v1393 = vcombine.low %v208, %v210
    %v1394 = vcombine.high %v208, %v210
    %v1396 = vunpack.c.l.s4 1983009808
    %v1397 = vunpack.c.0.s8 %v1396
    %v1398 = vlaneseq
    %v1399 = vshrl.u32 %v1398, 7
    %v1400 = vsub.s32 %v1397, %v1399
    %v1401 = vrot.slane %v1391, %v1400
    %v1403 = vunpack.c.l.s4 1983009808
    %v1404 = vunpack.c.0.s8 %v1403
    %v1405 = vlaneseq
    %v1406 = vshrl.u32 %v1405, 7
    %v1407 = vsub.s32 %v1404, %v1406
    %v1408 = vrot.slane %v1392, %v1407
    %v1410 = vunpack.c.l.s4 1983009808
    %v1411 = vunpack.c.0.s8 %v1410
    %v1412 = vlaneseq
    %v1413 = vshrl.u32 %v1412, 7
    %v1414 = vsub.s32 %v1411, %v1413
    %v1415 = vrot.slane %v1393, %v1414
    %v1417 = vunpack.c.l.s4 1983009808
    %v1418 = vunpack.c.0.s8 %v1417
    %v1419 = vlaneseq
    %v1420 = vshrl.u32 %v1419, 7
    %v1421 = vsub.s32 %v1418, %v1420
    %v1422 = vrot.slane %v1394, %v1421
    %v1423 = vcombine.low %v1401, %v1415
    %v1424 = vcombine.high %v1401, %v1415
    %v1425 = vcombine.low %v1408, %v1422
    %v1426 = vcombine.high %v1408, %v1422
    %v1427 = vcombine.low %v211, %v213
    %v1428 = vcombine.high %v211, %v213
    %v1429 = vcombine.low %v215, %v217
    %v1430 = vcombine.high %v215, %v217
    %v1432 = vunpack.c.l.s4 1983009808
    %v1433 = vunpack.c.0.s8 %v1432
    %v1434 = vlaneseq
    %v1435 = vshrl.u32 %v1434, 7
    %v1436 = vsub.s32 %v1433, %v1435
    %v1437 = vrot.slane %v1427, %v1436
    %v1439 = vunpack.c.l.s4 1983009808
    %v1440 = vunpack.c.0.s8 %v1439
    %v1441 = vlaneseq
    %v1442 = vshrl.u32 %v1441, 7
    %v1443 = vsub.s32 %v1440, %v1442
    %v1444 = vrot.slane %v1428, %v1443
    %v1446 = vunpack.c.l.s4 1983009808
    %v1447 = vunpack.c.0.s8 %v1446
    %v1448 = vlaneseq
    %v1449 = vshrl.u32 %v1448, 7
    %v1450 = vsub.s32 %v1447, %v1449
    %v1451 = vrot.slane %v1429, %v1450
    %v1453 = vunpack.c.l.s4 1983009808
    %v1454 = vunpack.c.0.s8 %v1453
    %v1455 = vlaneseq
    %v1456 = vshrl.u32 %v1455, 7
    %v1457 = vsub.s32 %v1454, %v1456
    %v1458 = vrot.slane %v1430, %v1457
    %v1459 = vcombine.low %v1437, %v1451
    %v1460 = vcombine.high %v1437, %v1451
    %v1461 = vcombine.low %v1444, %v1458
    %v1462 = vcombine.high %v1444, %v1458
    %v1463 = vcombine.low %v212, %v214
    %v1464 = vcombine.high %v212, %v214
    %v1465 = vcombine.low %v216, %v218
    %v1466 = vcombine.high %v216, %v218
    %v1468 = vunpack.c.l.s4 1983009808
    %v1469 = vunpack.c.0.s8 %v1468
    %v1470 = vlaneseq
    %v1471 = vshrl.u32 %v1470, 7
    %v1472 = vsub.s32 %v1469, %v1471
    %v1473 = vrot.slane %v1463, %v1472
    %v1475 = vunpack.c.l.s4 1983009808
    %v1476 = vunpack.c.0.s8 %v1475
    %v1477 = vlaneseq
    %v1478 = vshrl.u32 %v1477, 7
    %v1479 = vsub.s32 %v1476, %v1478
    %v1480 = vrot.slane %v1464, %v1479
    %v1482 = vunpack.c.l.s4 1983009808
    %v1483 = vunpack.c.0.s8 %v1482
    %v1484 = vlaneseq
    %v1485 = vshrl.u32 %v1484, 7
    %v1486 = vsub.s32 %v1483, %v1485
    %v1487 = vrot.slane %v1465, %v1486
    %v1489 = vunpack.c.l.s4 1983009808
    %v1490 = vunpack.c.0.s8 %v1489
    %v1491 = vlaneseq
    %v1492 = vshrl.u32 %v1491, 7
    %v1493 = vsub.s32 %v1490, %v1492
    %v1494 = vrot.slane %v1466, %v1493
    %v1495 = vcombine.low %v1473, %v1487
    %v1496 = vcombine.high %v1473, %v1487
    %v1497 = vcombine.low %v1480, %v1494
    %v1498 = vcombine.high %v1480, %v1494
    %v1627 = vpack.c.bf16 %v451, %v379
    %v1628 = vpack.c.bf16 %v452, %v380
    %v1629 = vpack.c.bf16 %v453, %v381
    %v1630 = vpack.c.bf16 %v454, %v382
    %v1631 = vpack.c.bf16 %v487, %v415
    %v1632 = vpack.c.bf16 %v488, %v416
    %v1633 = vpack.c.bf16 %v489, %v417
    %v1634 = vpack.c.bf16 %v490, %v418
    %v1635 = vpack.c.bf16 %v595, %v523
    %v1636 = vpack.c.bf16 %v596, %v524
    %v1637 = vpack.c.bf16 %v597, %v525
    %v1638 = vpack.c.bf16 %v598, %v526
    %v1639 = vpack.c.bf16 %v631, %v559
    %v1640 = vpack.c.bf16 %v632, %v560
    %v1641 = vpack.c.bf16 %v633, %v561
    %v1642 = vpack.c.bf16 %v634, %v562
    %v1643 = vpack.c.bf16 %v739, %v667
    %v1644 = vpack.c.bf16 %v740, %v668
    %v1645 = vpack.c.bf16 %v741, %v669
    %v1646 = vpack.c.bf16 %v742, %v670
    %v1647 = vpack.c.bf16 %v775, %v703
    %v1648 = vpack.c.bf16 %v776, %v704
    %v1649 = vpack.c.bf16 %v777, %v705
    %v1650 = vpack.c.bf16 %v778, %v706
    %v1651 = vpack.c.bf16 %v883, %v811
    %v1652 = vpack.c.bf16 %v884, %v812
    %v1653 = vpack.c.bf16 %v885, %v813
    %v1654 = vpack.c.bf16 %v886, %v814
    %v1655 = vpack.c.bf16 %v919, %v847
    %v1656 = vpack.c.bf16 %v920, %v848
    %v1657 = vpack.c.bf16 %v921, %v849
    %v1658 = vpack.c.bf16 %v922, %v850
    %v1659 = vpack.c.bf16 %v1027, %v955
    %v1660 = vpack.c.bf16 %v1028, %v956
    %v1661 = vpack.c.bf16 %v1029, %v957
    %v1662 = vpack.c.bf16 %v1030, %v958
    %v1663 = vpack.c.bf16 %v1063, %v991
    %v1664 = vpack.c.bf16 %v1064, %v992
    %v1665 = vpack.c.bf16 %v1065, %v993
    %v1666 = vpack.c.bf16 %v1066, %v994
    %v1667 = vpack.c.bf16 %v1171, %v1099
    %v1668 = vpack.c.bf16 %v1172, %v1100
    %v1669 = vpack.c.bf16 %v1173, %v1101
    %v1670 = vpack.c.bf16 %v1174, %v1102
    %v1671 = vpack.c.bf16 %v1207, %v1135
    %v1672 = vpack.c.bf16 %v1208, %v1136
    %v1673 = vpack.c.bf16 %v1209, %v1137
    %v1674 = vpack.c.bf16 %v1210, %v1138
    %v1675 = vpack.c.bf16 %v1315, %v1243
    %v1676 = vpack.c.bf16 %v1316, %v1244
    %v1677 = vpack.c.bf16 %v1317, %v1245
    %v1678 = vpack.c.bf16 %v1318, %v1246
    %v1679 = vpack.c.bf16 %v1351, %v1279
    %v1680 = vpack.c.bf16 %v1352, %v1280
    %v1681 = vpack.c.bf16 %v1353, %v1281
    %v1682 = vpack.c.bf16 %v1354, %v1282
    %v1683 = vpack.c.bf16 %v1459, %v1387
    %v1684 = vpack.c.bf16 %v1460, %v1388
    %v1685 = vpack.c.bf16 %v1461, %v1389
    %v1686 = vpack.c.bf16 %v1462, %v1390
    %v1687 = vpack.c.bf16 %v1495, %v1423
    %v1688 = vpack.c.bf16 %v1496, %v1424
    %v1689 = vpack.c.bf16 %v1497, %v1425
    %v1690 = vpack.c.bf16 %v1498, %v1426
    %v1691 = vld [vmem:[#allocation6] sm:$0xf]
    %v1692 = vld [vmem:[#allocation6 + $0x4] sm:$0xf]
    %v1693 = vld [vmem:[#allocation6 + $0x8] sm:$0xf]
    %v1694 = vld [vmem:[#allocation6 + $0xc] sm:$0xf]
    %v1695 = vld [vmem:[#allocation6 + $0x10] sm:$0xf]
    %v1696 = vld [vmem:[#allocation6 + $0x14] sm:$0xf]
    %v1697 = vld [vmem:[#allocation6 + $0x18] sm:$0xf]
    %v1698 = vld [vmem:[#allocation6 + $0x1c] sm:$0xf]
    %v1699 = vld [vmem:[#allocation6 + $0x20] sm:$0xf]
    %v1700 = vld [vmem:[#allocation6 + $0x24] sm:$0xf]
    %v1701 = vld [vmem:[#allocation6 + $0x28] sm:$0xf]
    %v1702 = vld [vmem:[#allocation6 + $0x2c] sm:$0xf]
    %v1703 = vld [vmem:[#allocation6 + $0x30] sm:$0xf]
    %v1704 = vld [vmem:[#allocation6 + $0x34] sm:$0xf]
    %v1705 = vld [vmem:[#allocation6 + $0x38] sm:$0xf]
    %v1706 = vld [vmem:[#allocation6 + $0x3c] sm:$0xf]
    %v1707 = vld [vmem:[#allocation6 + $0x40] sm:$0xf]
    %v1708 = vld [vmem:[#allocation6 + $0x44] sm:$0xf]
    %v1709 = vld [vmem:[#allocation6 + $0x48] sm:$0xf]
    %v1710 = vld [vmem:[#allocation6 + $0x4c] sm:$0xf]
    %v1711 = vld [vmem:[#allocation6 + $0x50] sm:$0xf]
    %v1712 = vld [vmem:[#allocation6 + $0x54] sm:$0xf]
    %v1713 = vld [vmem:[#allocation6 + $0x58] sm:$0xf]
    %v1714 = vld [vmem:[#allocation6 + $0x5c] sm:$0xf]
    %v1715 = vld [vmem:[#allocation6 + $0x60] sm:$0xf]
    %v1716 = vld [vmem:[#allocation6 + $0x64] sm:$0xf]
    %v1717 = vld [vmem:[#allocation6 + $0x68] sm:$0xf]
    %v1718 = vld [vmem:[#allocation6 + $0x6c] sm:$0xf]
    %v1719 = vld [vmem:[#allocation6 + $0x70] sm:$0xf]
    %v1720 = vld [vmem:[#allocation6 + $0x74] sm:$0xf]
    %v1721 = vld [vmem:[#allocation6 + $0x78] sm:$0xf]
    %v1722 = vld [vmem:[#allocation6 + $0x7c] sm:$0xf]
    %v1723 = vld [vmem:[#allocation6 + $0x80] sm:$0xf]
    %v1724 = vld [vmem:[#allocation6 + $0x84] sm:$0xf]
    %v1725 = vld [vmem:[#allocation6 + $0x88] sm:$0xf]
    %v1726 = vld [vmem:[#allocation6 + $0x8c] sm:$0xf]
    %v1727 = vld [vmem:[#allocation6 + $0x90] sm:$0xf]
    %v1728 = vld [vmem:[#allocation6 + $0x94] sm:$0xf]
    %v1729 = vld [vmem:[#allocation6 + $0x98] sm:$0xf]
    %v1730 = vld [vmem:[#allocation6 + $0x9c] sm:$0xf]
    %v1731 = vld [vmem:[#allocation6 + $0xa0] sm:$0xf]
    %v1732 = vld [vmem:[#allocation6 + $0xa4] sm:$0xf]
    %v1733 = vld [vmem:[#allocation6 + $0xa8] sm:$0xf]
    %v1734 = vld [vmem:[#allocation6 + $0xac] sm:$0xf]
    %v1735 = vld [vmem:[#allocation6 + $0xb0] sm:$0xf]
    %v1736 = vld [vmem:[#allocation6 + $0xb4] sm:$0xf]
    %v1737 = vld [vmem:[#allocation6 + $0xb8] sm:$0xf]
    %v1738 = vld [vmem:[#allocation6 + $0xbc] sm:$0xf]
    %v1739 = vld [vmem:[#allocation6 + $0xc0] sm:$0xf]
    %v1740 = vld [vmem:[#allocation6 + $0xc4] sm:$0xf]
    %v1741 = vld [vmem:[#allocation6 + $0xc8] sm:$0xf]
    %v1742 = vld [vmem:[#allocation6 + $0xcc] sm:$0xf]
    %v1743 = vld [vmem:[#allocation6 + $0xd0] sm:$0xf]
    %v1744 = vld [vmem:[#allocation6 + $0xd4] sm:$0xf]
    %v1745 = vld [vmem:[#allocation6 + $0xd8] sm:$0xf]
    %v1746 = vld [vmem:[#allocation6 + $0xdc] sm:$0xf]
    %v1747 = vld [vmem:[#allocation6 + $0xe0] sm:$0xf]
    %v1748 = vld [vmem:[#allocation6 + $0xe4] sm:$0xf]
    %v1749 = vld [vmem:[#allocation6 + $0xe8] sm:$0xf]
    %v1750 = vld [vmem:[#allocation6 + $0xec] sm:$0xf]
    %v1751 = vld [vmem:[#allocation6 + $0xf0] sm:$0xf]
    %v1752 = vld [vmem:[#allocation6 + $0xf4] sm:$0xf]
    %v1753 = vld [vmem:[#allocation6 + $0xf8] sm:$0xf]
    %v1754 = vld [vmem:[#allocation6 + $0xfc] sm:$0xf]
    %v1755 = vld [vmem:[#allocation6 + $0x100] sm:$0xf]
    %v1756 = vld [vmem:[#allocation6 + $0x104] sm:$0xf]
    %v1757 = vld [vmem:[#allocation6 + $0x108] sm:$0xf]
    %v1758 = vld [vmem:[#allocation6 + $0x10c] sm:$0xf]
    %v1759 = vld [vmem:[#allocation6 + $0x110] sm:$0xf]
    %v1760 = vld [vmem:[#allocation6 + $0x114] sm:$0xf]
    %v1761 = vld [vmem:[#allocation6 + $0x118] sm:$0xf]
    %v1762 = vld [vmem:[#allocation6 + $0x11c] sm:$0xf]
    %v1763 = vld [vmem:[#allocation6 + $0x120] sm:$0xf]
    %v1764 = vld [vmem:[#allocation6 + $0x124] sm:$0xf]
    %v1765 = vld [vmem:[#allocation6 + $0x128] sm:$0xf]
    %v1766 = vld [vmem:[#allocation6 + $0x12c] sm:$0xf]
    %v1767 = vld [vmem:[#allocation6 + $0x130] sm:$0xf]
    %v1768 = vld [vmem:[#allocation6 + $0x134] sm:$0xf]
    %v1769 = vld [vmem:[#allocation6 + $0x138] sm:$0xf]
    %v1770 = vld [vmem:[#allocation6 + $0x13c] sm:$0xf]
    %v1771 = vld [vmem:[#allocation6 + $0x140] sm:$0xf]
    %v1772 = vld [vmem:[#allocation6 + $0x144] sm:$0xf]
    %v1773 = vld [vmem:[#allocation6 + $0x148] sm:$0xf]
    %v1774 = vld [vmem:[#allocation6 + $0x14c] sm:$0xf]
    %v1775 = vld [vmem:[#allocation6 + $0x150] sm:$0xf]
    %v1776 = vld [vmem:[#allocation6 + $0x154] sm:$0xf]
    %v1777 = vld [vmem:[#allocation6 + $0x158] sm:$0xf]
    %v1778 = vld [vmem:[#allocation6 + $0x15c] sm:$0xf]
    %v1779 = vld [vmem:[#allocation6 + $0x160] sm:$0xf]
    %v1780 = vld [vmem:[#allocation6 + $0x164] sm:$0xf]
    %v1781 = vld [vmem:[#allocation6 + $0x168] sm:$0xf]
    %v1782 = vld [vmem:[#allocation6 + $0x16c] sm:$0xf]
    %v1783 = vld [vmem:[#allocation6 + $0x170] sm:$0xf]
    %v1784 = vld [vmem:[#allocation6 + $0x174] sm:$0xf]
    %v1785 = vld [vmem:[#allocation6 + $0x178] sm:$0xf]
    %v1786 = vld [vmem:[#allocation6 + $0x17c] sm:$0xf]
    %v1787 = vld [vmem:[#allocation6 + $0x180] sm:$0xf]
    %v1788 = vld [vmem:[#allocation6 + $0x184] sm:$0xf]
    %v1789 = vld [vmem:[#allocation6 + $0x188] sm:$0xf]
    %v1790 = vld [vmem:[#allocation6 + $0x18c] sm:$0xf]
    %v1791 = vld [vmem:[#allocation6 + $0x190] sm:$0xf]
    %v1792 = vld [vmem:[#allocation6 + $0x194] sm:$0xf]
    %v1793 = vld [vmem:[#allocation6 + $0x198] sm:$0xf]
    %v1794 = vld [vmem:[#allocation6 + $0x19c] sm:$0xf]
    %v1795 = vld [vmem:[#allocation6 + $0x1a0] sm:$0xf]
    %v1796 = vld [vmem:[#allocation6 + $0x1a4] sm:$0xf]
    %v1797 = vld [vmem:[#allocation6 + $0x1a8] sm:$0xf]
    %v1798 = vld [vmem:[#allocation6 + $0x1ac] sm:$0xf]
    %v1799 = vld [vmem:[#allocation6 + $0x1b0] sm:$0xf]
    %v1800 = vld [vmem:[#allocation6 + $0x1b4] sm:$0xf]
    %v1801 = vld [vmem:[#allocation6 + $0x1b8] sm:$0xf]
    %v1802 = vld [vmem:[#allocation6 + $0x1bc] sm:$0xf]
    %v1803 = vld [vmem:[#allocation6 + $0x1c0] sm:$0xf]
    %v1804 = vld [vmem:[#allocation6 + $0x1c4] sm:$0xf]
    %v1805 = vld [vmem:[#allocation6 + $0x1c8] sm:$0xf]
    %v1806 = vld [vmem:[#allocation6 + $0x1cc] sm:$0xf]
    %v1807 = vld [vmem:[#allocation6 + $0x1d0] sm:$0xf]
    %v1808 = vld [vmem:[#allocation6 + $0x1d4] sm:$0xf]
    %v1809 = vld [vmem:[#allocation6 + $0x1d8] sm:$0xf]
    %v1810 = vld [vmem:[#allocation6 + $0x1dc] sm:$0xf]
    %v1811 = vld [vmem:[#allocation6 + $0x1e0] sm:$0xf]
    %v1812 = vld [vmem:[#allocation6 + $0x1e4] sm:$0xf]
    %v1813 = vld [vmem:[#allocation6 + $0x1e8] sm:$0xf]
    %v1814 = vld [vmem:[#allocation6 + $0x1ec] sm:$0xf]
    %v1815 = vld [vmem:[#allocation6 + $0x1f0] sm:$0xf]
    %v1816 = vld [vmem:[#allocation6 + $0x1f4] sm:$0xf]
    %v1817 = vld [vmem:[#allocation6 + $0x1f8] sm:$0xf]
    %v1818 = vld [vmem:[#allocation6 + $0x1fc] sm:$0xf]
    %v1819 = vld [vmem:[%s2] sm:$0x1]
    %v1821 = vlaneseq
    %v1822 = vshrl.u32 %v1821, 7
    %v1823 = vsub.s32 0, %v1822
    %v1824 = vrot.slane %v1819, %v1823
    %v1954 = vunpack.c.l.b16 %v1691
    %v1955 = vunpack.c.l.b16 %v1692
    %v1956 = vunpack.c.l.b16 %v1693
    %v1957 = vunpack.c.l.b16 %v1694
    %v1958 = vunpack.c.l.b16 %v1695
    %v1959 = vunpack.c.l.b16 %v1696
    %v1960 = vunpack.c.l.b16 %v1697
    %v1961 = vunpack.c.l.b16 %v1698
    %v1962 = vunpack.c.l.b16 %v1699
    %v1963 = vunpack.c.l.b16 %v1700
    %v1964 = vunpack.c.l.b16 %v1701
    %v1965 = vunpack.c.l.b16 %v1702
    %v1966 = vunpack.c.l.b16 %v1703
    %v1967 = vunpack.c.l.b16 %v1704
    %v1968 = vunpack.c.l.b16 %v1705
    %v1969 = vunpack.c.l.b16 %v1706
    %v1970 = vunpack.c.l.b16 %v1707
    %v1971 = vunpack.c.l.b16 %v1708
    %v1972 = vunpack.c.l.b16 %v1709
    %v1973 = vunpack.c.l.b16 %v1710
    %v1974 = vunpack.c.l.b16 %v1711
    %v1975 = vunpack.c.l.b16 %v1712
    %v1976 = vunpack.c.l.b16 %v1713
    %v1977 = vunpack.c.l.b16 %v1714
    %v1978 = vunpack.c.l.b16 %v1715
    %v1979 = vunpack.c.l.b16 %v1716
    %v1980 = vunpack.c.l.b16 %v1717
    %v1981 = vunpack.c.l.b16 %v1718
    %v1982 = vunpack.c.l.b16 %v1719
    %v1983 = vunpack.c.l.b16 %v1720
    %v1984 = vunpack.c.l.b16 %v1721
    %v1985 = vunpack.c.l.b16 %v1722
    %v1986 = vunpack.c.l.b16 %v1723
    %v1987 = vunpack.c.l.b16 %v1724
    %v1988 = vunpack.c.l.b16 %v1725
    %v1989 = vunpack.c.l.b16 %v1726
    %v1990 = vunpack.c.l.b16 %v1727
    %v1991 = vunpack.c.l.b16 %v1728
    %v1992 = vunpack.c.l.b16 %v1729
    %v1993 = vunpack.c.l.b16 %v1730
    %v1994 = vunpack.c.l.b16 %v1731
    %v1995 = vunpack.c.l.b16 %v1732
    %v1996 = vunpack.c.l.b16 %v1733
    %v1997 = vunpack.c.l.b16 %v1734
    %v1998 = vunpack.c.l.b16 %v1735
    %v1999 = vunpack.c.l.b16 %v1736
    %v2000 = vunpack.c.l.b16 %v1737
    %v2001 = vunpack.c.l.b16 %v1738
    %v2002 = vunpack.c.l.b16 %v1739
    %v2003 = vunpack.c.l.b16 %v1740
    %v2004 = vunpack.c.l.b16 %v1741
    %v2005 = vunpack.c.l.b16 %v1742
    %v2006 = vunpack.c.l.b16 %v1743
    %v2007 = vunpack.c.l.b16 %v1744
    %v2008 = vunpack.c.l.b16 %v1745
    %v2009 = vunpack.c.l.b16 %v1746
    %v2010 = vunpack.c.l.b16 %v1747
    %v2011 = vunpack.c.l.b16 %v1748
    %v2012 = vunpack.c.l.b16 %v1749
    %v2013 = vunpack.c.l.b16 %v1750
    %v2014 = vunpack.c.l.b16 %v1751
    %v2015 = vunpack.c.l.b16 %v1752
    %v2016 = vunpack.c.l.b16 %v1753
    %v2017 = vunpack.c.l.b16 %v1754
    %v2018 = vunpack.c.l.b16 %v1755
    %v2019 = vunpack.c.l.b16 %v1756
    %v2020 = vunpack.c.l.b16 %v1757
    %v2021 = vunpack.c.l.b16 %v1758
    %v2022 = vunpack.c.l.b16 %v1759
    %v2023 = vunpack.c.l.b16 %v1760
    %v2024 = vunpack.c.l.b16 %v1761
    %v2025 = vunpack.c.l.b16 %v1762
    %v2026 = vunpack.c.l.b16 %v1763
    %v2027 = vunpack.c.l.b16 %v1764
    %v2028 = vunpack.c.l.b16 %v1765
    %v2029 = vunpack.c.l.b16 %v1766
    %v2030 = vunpack.c.l.b16 %v1767
    %v2031 = vunpack.c.l.b16 %v1768
    %v2032 = vunpack.c.l.b16 %v1769
    %v2033 = vunpack.c.l.b16 %v1770
    %v2034 = vunpack.c.l.b16 %v1771
    %v2035 = vunpack.c.l.b16 %v1772
    %v2036 = vunpack.c.l.b16 %v1773
    %v2037 = vunpack.c.l.b16 %v1774
    %v2038 = vunpack.c.l.b16 %v1775
    %v2039 = vunpack.c.l.b16 %v1776
    %v2040 = vunpack.c.l.b16 %v1777
    %v2041 = vunpack.c.l.b16 %v1778
    %v2042 = vunpack.c.l.b16 %v1779
    %v2043 = vunpack.c.l.b16 %v1780
    %v2044 = vunpack.c.l.b16 %v1781
    %v2045 = vunpack.c.l.b16 %v1782
    %v2046 = vunpack.c.l.b16 %v1783
    %v2047 = vunpack.c.l.b16 %v1784
    %v2048 = vunpack.c.l.b16 %v1785
    %v2049 = vunpack.c.l.b16 %v1786
    %v2050 = vunpack.c.l.b16 %v1787
    %v2051 = vunpack.c.l.b16 %v1788
    %v2052 = vunpack.c.l.b16 %v1789
    %v2053 = vunpack.c.l.b16 %v1790
    %v2054 = vunpack.c.l.b16 %v1791
    %v2055 = vunpack.c.l.b16 %v1792
    %v2056 = vunpack.c.l.b16 %v1793
    %v2057 = vunpack.c.l.b16 %v1794
    %v2058 = vunpack.c.l.b16 %v1795
    %v2059 = vunpack.c.l.b16 %v1796
    %v2060 = vunpack.c.l.b16 %v1797
    %v2061 = vunpack.c.l.b16 %v1798
    %v2062 = vunpack.c.l.b16 %v1799
    %v2063 = vunpack.c.l.b16 %v1800
    %v2064 = vunpack.c.l.b16 %v1801
    %v2065 = vunpack.c.l.b16 %v1802
    %v2066 = vunpack.c.l.b16 %v1803
    %v2067 = vunpack.c.l.b16 %v1804
    %v2068 = vunpack.c.l.b16 %v1805
    %v2069 = vunpack.c.l.b16 %v1806
    %v2070 = vunpack.c.l.b16 %v1807
    %v2071 = vunpack.c.l.b16 %v1808
    %v2072 = vunpack.c.l.b16 %v1809
    %v2073 = vunpack.c.l.b16 %v1810
    %v2074 = vunpack.c.l.b16 %v1811
    %v2075 = vunpack.c.l.b16 %v1812
    %v2076 = vunpack.c.l.b16 %v1813
    %v2077 = vunpack.c.l.b16 %v1814
    %v2078 = vunpack.c.l.b16 %v1815
    %v2079 = vunpack.c.l.b16 %v1816
    %v2080 = vunpack.c.l.b16 %v1817
    %v2081 = vunpack.c.l.b16 %v1818
    %v2082 = vpack.c.b16 %v1955, %v1954
    %v2083 = vpack.c.b16 %v1957, %v1956
    %v2084 = vpack.c.b16 %v1959, %v1958
    %v2085 = vpack.c.b16 %v1961, %v1960
    %v2086 = vpack.c.b16 %v1963, %v1962
    %v2087 = vpack.c.b16 %v1965, %v1964
    %v2088 = vpack.c.b16 %v1967, %v1966
    %v2089 = vpack.c.b16 %v1969, %v1968
    %v2090 = vpack.c.b16 %v1971, %v1970
    %v2091 = vpack.c.b16 %v1973, %v1972
    %v2092 = vpack.c.b16 %v1975, %v1974
    %v2093 = vpack.c.b16 %v1977, %v1976
    %v2094 = vpack.c.b16 %v1979, %v1978
    %v2095 = vpack.c.b16 %v1981, %v1980
    %v2096 = vpack.c.b16 %v1983, %v1982
    %v2097 = vpack.c.b16 %v1985, %v1984
    %v2098 = vpack.c.b16 %v1987, %v1986
    %v2099 = vpack.c.b16 %v1989, %v1988
    %v2100 = vpack.c.b16 %v1991, %v1990
    %v2101 = vpack.c.b16 %v1993, %v1992
    %v2102 = vpack.c.b16 %v1995, %v1994
    %v2103 = vpack.c.b16 %v1997, %v1996
    %v2104 = vpack.c.b16 %v1999, %v1998
    %v2105 = vpack.c.b16 %v2001, %v2000
    %v2106 = vpack.c.b16 %v2003, %v2002
    %v2107 = vpack.c.b16 %v2005, %v2004
    %v2108 = vpack.c.b16 %v2007, %v2006
    %v2109 = vpack.c.b16 %v2009, %v2008
    %v2110 = vpack.c.b16 %v2011, %v2010
    %v2111 = vpack.c.b16 %v2013, %v2012
    %v2112 = vpack.c.b16 %v2015, %v2014
    %v2113 = vpack.c.b16 %v2017, %v2016
    %v2114 = vpack.c.b16 %v2019, %v2018
    %v2115 = vpack.c.b16 %v2021, %v2020
    %v2116 = vpack.c.b16 %v2023, %v2022
    %v2117 = vpack.c.b16 %v2025, %v2024
    %v2118 = vpack.c.b16 %v2027, %v2026
    %v2119 = vpack.c.b16 %v2029, %v2028
    %v2120 = vpack.c.b16 %v2031, %v2030
    %v2121 = vpack.c.b16 %v2033, %v2032
    %v2122 = vpack.c.b16 %v2035, %v2034
    %v2123 = vpack.c.b16 %v2037, %v2036
    %v2124 = vpack.c.b16 %v2039, %v2038
    %v2125 = vpack.c.b16 %v2041, %v2040
    %v2126 = vpack.c.b16 %v2043, %v2042
    %v2127 = vpack.c.b16 %v2045, %v2044
    %v2128 = vpack.c.b16 %v2047, %v2046
    %v2129 = vpack.c.b16 %v2049, %v2048
    %v2130 = vpack.c.b16 %v2051, %v2050
    %v2131 = vpack.c.b16 %v2053, %v2052
    %v2132 = vpack.c.b16 %v2055, %v2054
    %v2133 = vpack.c.b16 %v2057, %v2056
    %v2134 = vpack.c.b16 %v2059, %v2058
    %v2135 = vpack.c.b16 %v2061, %v2060
    %v2136 = vpack.c.b16 %v2063, %v2062
    %v2137 = vpack.c.b16 %v2065, %v2064
    %v2138 = vpack.c.b16 %v2067, %v2066
    %v2139 = vpack.c.b16 %v2069, %v2068
    %v2140 = vpack.c.b16 %v2071, %v2070
    %v2141 = vpack.c.b16 %v2073, %v2072
    %v2142 = vpack.c.b16 %v2075, %v2074
    %v2143 = vpack.c.b16 %v2077, %v2076
    %v2144 = vpack.c.b16 %v2079, %v2078
    %v2145 = vpack.c.b16 %v2081, %v2080
    %2210 = vmatprep.subr.bf16.mxu0 0
    %2211 = vmatpush1.bf16.msra.mxu0 %v2089
    %2212 = vmatprep.subr.bf16.mxu0 0
    %2213 = vmatpush1.bf16.msra.mxu0 %v2088
    %2214 = vmatprep.subr.bf16.mxu0 0
    %2215 = vmatpush1.bf16.msra.mxu0 %v2087
    %2216 = vmatprep.subr.bf16.mxu0 0
    %2217 = vmatpush1.bf16.msra.mxu0 %v2086
    %2218 = vmatprep.subr.bf16.mxu0 0
    %2219 = vmatpush1.bf16.msra.mxu0 %v2085
    %2220 = vmatprep.subr.bf16.mxu0 0
    %2221 = vmatpush1.bf16.msra.mxu0 %v2084
    %2222 = vmatprep.subr.bf16.mxu0 0
    %2223 = vmatpush1.bf16.msra.mxu0 %v2083
    %2224 = vmatprep.subr.bf16.mxu0 0
    %2225 = vmatpush1.bf16.msra.mxu0 %v2082
    %2226 = vmatprep.subr.bf16.mxu0 0
    %2227 = vmatpush2.bf16.msra.mxu0 %v2097
    %2228 = vmatprep.subr.bf16.mxu0 0
    %2229 = vmatpush2.bf16.msra.mxu0 %v2096
    %2230 = vmatprep.subr.bf16.mxu0 0
    %2231 = vmatpush2.bf16.msra.mxu0 %v2095
    %2232 = vmatprep.subr.bf16.mxu0 0
    %2233 = vmatpush2.bf16.msra.mxu0 %v2094
    %2234 = vmatprep.subr.bf16.mxu0 0
    %2235 = vmatpush2.bf16.msra.mxu0 %v2093
    %2236 = vmatprep.subr.bf16.mxu0 0
    %2237 = vmatpush2.bf16.msra.mxu0 %v2092
    %2238 = vmatprep.subr.bf16.mxu0 0
    %2239 = vmatpush2.bf16.msra.mxu0 %v2091
    %2240 = vmatprep.subr.bf16.mxu0 0
    %2241 = vmatpush2.bf16.msra.mxu0 %v2090
    %2242 = vmatprep.mubr.bf16.mxu0 %v1628
    %2243 = vmatmul.mubr.bf16.gmra.mxu0 %v1627
    %v2244 = vpop.f32.mrf.mxu0
    %v2245 = vadd.f32 %v1824, %v2244
    %v2246 = vpop.f32.mrf.mxu0
    %v2247 = vpop.f32.mrf.mxu0
    %v2248 = vadd.f32 %v1824, %v2247
    %v2249 = vpop.f32.mrf.mxu0
    %2250 = vmatprep.mubr.bf16.mxu0 %v1636
    %2251 = vmatmul.mubr.bf16.gmra.mxu0 %v1635
    %v2252 = vpop.f32.mrf.mxu0
    %v2253 = vadd.f32 %v1824, %v2252
    %v2254 = vpop.f32.mrf.mxu0
    %v2255 = vpop.f32.mrf.mxu0
    %v2256 = vadd.f32 %v1824, %v2255
    %v2257 = vpop.f32.mrf.mxu0
    %2258 = vmatprep.mubr.bf16.mxu0 %v1644
    %2259 = vmatmul.mubr.bf16.gmra.mxu0 %v1643
    %v2260 = vpop.f32.mrf.mxu0
    %v2261 = vadd.f32 %v1824, %v2260
    %v2262 = vpop.f32.mrf.mxu0
    %v2263 = vpop.f32.mrf.mxu0
    %v2264 = vadd.f32 %v1824, %v2263
    %v2265 = vpop.f32.mrf.mxu0
    %2266 = vmatprep.mubr.bf16.mxu0 %v1652
    %2267 = vmatmul.mubr.bf16.gmra.mxu0 %v1651
    %v2268 = vpop.f32.mrf.mxu0
    %v2269 = vadd.f32 %v1824, %v2268
    %v2270 = vpop.f32.mrf.mxu0
    %v2271 = vpop.f32.mrf.mxu0
    %v2272 = vadd.f32 %v1824, %v2271
    %v2273 = vpop.f32.mrf.mxu0
    %2274 = vmatprep.mubr.bf16.mxu0 %v1660
    %2275 = vmatmul.mubr.bf16.gmra.mxu0 %v1659
    %v2276 = vpop.f32.mrf.mxu0
    %v2277 = vadd.f32 %v1824, %v2276
    %v2278 = vpop.f32.mrf.mxu0
    %v2279 = vpop.f32.mrf.mxu0
    %v2280 = vadd.f32 %v1824, %v2279
    %v2281 = vpop.f32.mrf.mxu0
    %2282 = vmatprep.mubr.bf16.mxu0 %v1668
    %2283 = vmatmul.mubr.bf16.gmra.mxu0 %v1667
    %v2284 = vpop.f32.mrf.mxu0
    %v2285 = vadd.f32 %v1824, %v2284
    %v2286 = vpop.f32.mrf.mxu0
    %v2287 = vpop.f32.mrf.mxu0
    %v2288 = vadd.f32 %v1824, %v2287
    %v2289 = vpop.f32.mrf.mxu0
    %2290 = vmatprep.mubr.bf16.mxu0 %v1676
    %2291 = vmatmul.mubr.bf16.gmra.mxu0 %v1675
    %v2292 = vpop.f32.mrf.mxu0
    %v2293 = vadd.f32 %v1824, %v2292
    %v2294 = vpop.f32.mrf.mxu0
    %v2295 = vpop.f32.mrf.mxu0
    %v2296 = vadd.f32 %v1824, %v2295
    %v2297 = vpop.f32.mrf.mxu0
    %2298 = vmatprep.mubr.bf16.mxu0 %v1684
    %2299 = vmatmul.mubr.bf16.gmra.mxu0 %v1683
    %v2300 = vpop.f32.mrf.mxu0
    %v2301 = vadd.f32 %v1824, %v2300
    %v2302 = vpop.f32.mrf.mxu0
    %v2303 = vpop.f32.mrf.mxu0
    %v2304 = vadd.f32 %v1824, %v2303
    %v2305 = vpop.f32.mrf.mxu0
    %2306 = vdwg.mxu0
    %2307 = vmatprep.subr.bf16.mxu0 0
    %2308 = vmatpush1.bf16.msra.mxu0 %v2105
    %2309 = vmatprep.subr.bf16.mxu0 0
    %2310 = vmatpush1.bf16.msra.mxu0 %v2104
    %2311 = vmatprep.subr.bf16.mxu0 0
    %2312 = vmatpush1.bf16.msra.mxu0 %v2103
    %2313 = vmatprep.subr.bf16.mxu0 0
    %2314 = vmatpush1.bf16.msra.mxu0 %v2102
    %2315 = vmatprep.subr.bf16.mxu0 0
    %2316 = vmatpush1.bf16.msra.mxu0 %v2101
    %2317 = vmatprep.subr.bf16.mxu0 0
    %2318 = vmatpush1.bf16.msra.mxu0 %v2100
    %2319 = vmatprep.subr.bf16.mxu0 0
    %2320 = vmatpush1.bf16.msra.mxu0 %v2099
    %2321 = vmatprep.subr.bf16.mxu0 0
    %2322 = vmatpush1.bf16.msra.mxu0 %v2098
    %2323 = vmatprep.subr.bf16.mxu0 0
    %2324 = vmatpush2.bf16.msra.mxu0 %v2113
    %2325 = vmatprep.subr.bf16.mxu0 0
    %2326 = vmatpush2.bf16.msra.mxu0 %v2112
    %2327 = vmatprep.subr.bf16.mxu0 0
    %2328 = vmatpush2.bf16.msra.mxu0 %v2111
    %2329 = vmatprep.subr.bf16.mxu0 0
    %2330 = vmatpush2.bf16.msra.mxu0 %v2110
    %2331 = vmatprep.subr.bf16.mxu0 0
    %2332 = vmatpush2.bf16.msra.mxu0 %v2109
    %2333 = vmatprep.subr.bf16.mxu0 0
    %2334 = vmatpush2.bf16.msra.mxu0 %v2108
    %2335 = vmatprep.subr.bf16.mxu0 0
    %2336 = vmatpush2.bf16.msra.mxu0 %v2107
    %2337 = vmatprep.subr.bf16.mxu0 0
    %2338 = vmatpush2.bf16.msra.mxu0 %v2106
    %2339 = vmatprep.mubr.bf16.mxu0 %v1630
    %2340 = vmatmul.mubr.bf16.gmra.mxu0 %v1629
    %v2341 = vpop.f32.mrf.mxu0
    %v2342 = vadd.f32 %v2245, %v2341
    %v2343 = vpop.f32.mrf.mxu0
    %v2344 = vpop.f32.mrf.mxu0
    %v2345 = vadd.f32 %v2248, %v2344
    %v2346 = vpop.f32.mrf.mxu0
    %2347 = vmatprep.mubr.bf16.mxu0 %v1638
    %2348 = vmatmul.mubr.bf16.gmra.mxu0 %v1637
    %v2349 = vpop.f32.mrf.mxu0
    %v2350 = vadd.f32 %v2253, %v2349
    %v2351 = vpop.f32.mrf.mxu0
    %v2352 = vpop.f32.mrf.mxu0
    %v2353 = vadd.f32 %v2256, %v2352
    %v2354 = vpop.f32.mrf.mxu0
    %2355 = vmatprep.mubr.bf16.mxu0 %v1646
    %2356 = vmatmul.mubr.bf16.gmra.mxu0 %v1645
    %v2357 = vpop.f32.mrf.mxu0
    %v2358 = vadd.f32 %v2261, %v2357
    %v2359 = vpop.f32.mrf.mxu0
    %v2360 = vpop.f32.mrf.mxu0
    %v2361 = vadd.f32 %v2264, %v2360
    %v2362 = vpop.f32.mrf.mxu0
    %2363 = vmatprep.mubr.bf16.mxu0 %v1654
    %2364 = vmatmul.mubr.bf16.gmra.mxu0 %v1653
    %v2365 = vpop.f32.mrf.mxu0
    %v2366 = vadd.f32 %v2269, %v2365
    %v2367 = vpop.f32.mrf.mxu0
    %v2368 = vpop.f32.mrf.mxu0
    %v2369 = vadd.f32 %v2272, %v2368
    %v2370 = vpop.f32.mrf.mxu0
    %2371 = vmatprep.mubr.bf16.mxu0 %v1662
    %2372 = vmatmul.mubr.bf16.gmra.mxu0 %v1661
    %v2373 = vpop.f32.mrf.mxu0
    %v2374 = vadd.f32 %v2277, %v2373
    %v2375 = vpop.f32.mrf.mxu0
    %v2376 = vpop.f32.mrf.mxu0
    %v2377 = vadd.f32 %v2280, %v2376
    %v2378 = vpop.f32.mrf.mxu0
    %2379 = vmatprep.mubr.bf16.mxu0 %v1670
    %2380 = vmatmul.mubr.bf16.gmra.mxu0 %v1669
    %v2381 = vpop.f32.mrf.mxu0
    %v2382 = vadd.f32 %v2285, %v2381
    %v2383 = vpop.f32.mrf.mxu0
    %v2384 = vpop.f32.mrf.mxu0
    %v2385 = vadd.f32 %v2288, %v2384
    %v2386 = vpop.f32.mrf.mxu0
    %2387 = vmatprep.mubr.bf16.mxu0 %v1678
    %2388 = vmatmul.mubr.bf16.gmra.mxu0 %v1677
    %v2389 = vpop.f32.mrf.mxu0
    %v2390 = vadd.f32 %v2293, %v2389
    %v2391 = vpop.f32.mrf.mxu0
    %v2392 = vpop.f32.mrf.mxu0
    %v2393 = vadd.f32 %v2296, %v2392
    %v2394 = vpop.f32.mrf.mxu0
    %2395 = vmatprep.mubr.bf16.mxu0 %v1686
    %2396 = vmatmul.mubr.bf16.gmra.mxu0 %v1685
    %v2397 = vpop.f32.mrf.mxu0
    %v2398 = vadd.f32 %v2301, %v2397
    %v2399 = vpop.f32.mrf.mxu0
    %v2400 = vpop.f32.mrf.mxu0
    %v2401 = vadd.f32 %v2304, %v2400
    %v2402 = vpop.f32.mrf.mxu0
    %2403 = vdwg.mxu0
    %2404 = vmatprep.subr.bf16.mxu0 0
    %2405 = vmatpush1.bf16.msra.mxu0 %v2121
    %2406 = vmatprep.subr.bf16.mxu0 0
    %2407 = vmatpush1.bf16.msra.mxu0 %v2120
    %2408 = vmatprep.subr.bf16.mxu0 0
    %2409 = vmatpush1.bf16.msra.mxu0 %v2119
    %2410 = vmatprep.subr.bf16.mxu0 0
    %2411 = vmatpush1.bf16.msra.mxu0 %v2118
    %2412 = vmatprep.subr.bf16.mxu0 0
    %2413 = vmatpush1.bf16.msra.mxu0 %v2117
    %2414 = vmatprep.subr.bf16.mxu0 0
    %2415 = vmatpush1.bf16.msra.mxu0 %v2116
    %2416 = vmatprep.subr.bf16.mxu0 0
    %2417 = vmatpush1.bf16.msra.mxu0 %v2115
    %2418 = vmatprep.subr.bf16.mxu0 0
    %2419 = vmatpush1.bf16.msra.mxu0 %v2114
    %2420 = vmatprep.subr.bf16.mxu0 0
    %2421 = vmatpush2.bf16.msra.mxu0 %v2129
    %2422 = vmatprep.subr.bf16.mxu0 0
    %2423 = vmatpush2.bf16.msra.mxu0 %v2128
    %2424 = vmatprep.subr.bf16.mxu0 0
    %2425 = vmatpush2.bf16.msra.mxu0 %v2127
    %2426 = vmatprep.subr.bf16.mxu0 0
    %2427 = vmatpush2.bf16.msra.mxu0 %v2126
    %2428 = vmatprep.subr.bf16.mxu0 0
    %2429 = vmatpush2.bf16.msra.mxu0 %v2125
    %2430 = vmatprep.subr.bf16.mxu0 0
    %2431 = vmatpush2.bf16.msra.mxu0 %v2124
    %2432 = vmatprep.subr.bf16.mxu0 0
    %2433 = vmatpush2.bf16.msra.mxu0 %v2123
    %2434 = vmatprep.subr.bf16.mxu0 0
    %2435 = vmatpush2.bf16.msra.mxu0 %v2122
    %2436 = vmatprep.mubr.bf16.mxu0 %v1632
    %2437 = vmatmul.mubr.bf16.gmra.mxu0 %v1631
    %v2438 = vpop.f32.mrf.mxu0
    %v2439 = vadd.f32 %v2342, %v2438
    %v2440 = vpop.f32.mrf.mxu0
    %v2441 = vpop.f32.mrf.mxu0
    %v2442 = vadd.f32 %v2345, %v2441
    %v2443 = vpop.f32.mrf.mxu0
    %2444 = vmatprep.mubr.bf16.mxu0 %v1640
    %2445 = vmatmul.mubr.bf16.gmra.mxu0 %v1639
    %v2446 = vpop.f32.mrf.mxu0
    %v2447 = vadd.f32 %v2350, %v2446
    %v2448 = vpop.f32.mrf.mxu0
    %v2449 = vpop.f32.mrf.mxu0
    %v2450 = vadd.f32 %v2353, %v2449
    %v2451 = vpop.f32.mrf.mxu0
    %2452 = vmatprep.mubr.bf16.mxu0 %v1648
    %2453 = vmatmul.mubr.bf16.gmra.mxu0 %v1647
    %v2454 = vpop.f32.mrf.mxu0
    %v2455 = vadd.f32 %v2358, %v2454
    %v2456 = vpop.f32.mrf.mxu0
    %v2457 = vpop.f32.mrf.mxu0
    %v2458 = vadd.f32 %v2361, %v2457
    %v2459 = vpop.f32.mrf.mxu0
    %2460 = vmatprep.mubr.bf16.mxu0 %v1656
    %2461 = vmatmul.mubr.bf16.gmra.mxu0 %v1655
    %v2462 = vpop.f32.mrf.mxu0
    %v2463 = vadd.f32 %v2366, %v2462
    %v2464 = vpop.f32.mrf.mxu0
    %v2465 = vpop.f32.mrf.mxu0
    %v2466 = vadd.f32 %v2369, %v2465
    %v2467 = vpop.f32.mrf.mxu0
    %2468 = vmatprep.mubr.bf16.mxu0 %v1664
    %2469 = vmatmul.mubr.bf16.gmra.mxu0 %v1663
    %v2470 = vpop.f32.mrf.mxu0
    %v2471 = vadd.f32 %v2374, %v2470
    %v2472 = vpop.f32.mrf.mxu0
    %v2473 = vpop.f32.mrf.mxu0
    %v2474 = vadd.f32 %v2377, %v2473
    %v2475 = vpop.f32.mrf.mxu0
    %2476 = vmatprep.mubr.bf16.mxu0 %v1672
    %2477 = vmatmul.mubr.bf16.gmra.mxu0 %v1671
    %v2478 = vpop.f32.mrf.mxu0
    %v2479 = vadd.f32 %v2382, %v2478
    %v2480 = vpop.f32.mrf.mxu0
    %v2481 = vpop.f32.mrf.mxu0
    %v2482 = vadd.f32 %v2385, %v2481
    %v2483 = vpop.f32.mrf.mxu0
    %2484 = vmatprep.mubr.bf16.mxu0 %v1680
    %2485 = vmatmul.mubr.bf16.gmra.mxu0 %v1679
    %v2486 = vpop.f32.mrf.mxu0
    %v2487 = vadd.f32 %v2390, %v2486
    %v2488 = vpop.f32.mrf.mxu0
    %v2489 = vpop.f32.mrf.mxu0
    %v2490 = vadd.f32 %v2393, %v2489
    %v2491 = vpop.f32.mrf.mxu0
    %2492 = vmatprep.mubr.bf16.mxu0 %v1688
    %2493 = vmatmul.mubr.bf16.gmra.mxu0 %v1687
    %v2494 = vpop.f32.mrf.mxu0
    %v2495 = vadd.f32 %v2398, %v2494
    %v2496 = vpop.f32.mrf.mxu0
    %v2497 = vpop.f32.mrf.mxu0
    %v2498 = vadd.f32 %v2401, %v2497
    %v2499 = vpop.f32.mrf.mxu0
    %2500 = vdwg.mxu0
    %2501 = vmatprep.subr.bf16.mxu0 0
    %2502 = vmatpush1.bf16.msra.mxu0 %v2137
    %2503 = vmatprep.subr.bf16.mxu0 0
    %2504 = vmatpush1.bf16.msra.mxu0 %v2136
    %2505 = vmatprep.subr.bf16.mxu0 0
    %2506 = vmatpush1.bf16.msra.mxu0 %v2135
    %2507 = vmatprep.subr.bf16.mxu0 0
    %2508 = vmatpush1.bf16.msra.mxu0 %v2134
    %2509 = vmatprep.subr.bf16.mxu0 0
    %2510 = vmatpush1.bf16.msra.mxu0 %v2133
    %2511 = vmatprep.subr.bf16.mxu0 0
    %2512 = vmatpush1.bf16.msra.mxu0 %v2132
    %2513 = vmatprep.subr.bf16.mxu0 0
    %2514 = vmatpush1.bf16.msra.mxu0 %v2131
    %2515 = vmatprep.subr.bf16.mxu0 0
    %2516 = vmatpush1.bf16.msra.mxu0 %v2130
    %2517 = vmatprep.subr.bf16.mxu0 0
    %2518 = vmatpush2.bf16.msra.mxu0 %v2145
    %2519 = vmatprep.subr.bf16.mxu0 0
    %2520 = vmatpush2.bf16.msra.mxu0 %v2144
    %2521 = vmatprep.subr.bf16.mxu0 0
    %2522 = vmatpush2.bf16.msra.mxu0 %v2143
    %2523 = vmatprep.subr.bf16.mxu0 0
    %2524 = vmatpush2.bf16.msra.mxu0 %v2142
    %2525 = vmatprep.subr.bf16.mxu0 0
    %2526 = vmatpush2.bf16.msra.mxu0 %v2141
    %2527 = vmatprep.subr.bf16.mxu0 0
    %2528 = vmatpush2.bf16.msra.mxu0 %v2140
    %2529 = vmatprep.subr.bf16.mxu0 0
    %2530 = vmatpush2.bf16.msra.mxu0 %v2139
    %2531 = vmatprep.subr.bf16.mxu0 0
    %2532 = vmatpush2.bf16.msra.mxu0 %v2138
    %2533 = vmatprep.mubr.bf16.mxu0 %v1634
    %2534 = vmatmul.mubr.bf16.gmra.mxu0 %v1633
    %v2535 = vpop.f32.mrf.mxu0
    %v2536 = vadd.f32 %v2439, %v2535
    %v2537 = vpop.f32.mrf.mxu0
    %v2538 = vpop.f32.mrf.mxu0
    %v2539 = vadd.f32 %v2442, %v2538
    %v2540 = vpop.f32.mrf.mxu0
    %2541 = vmatprep.mubr.bf16.mxu0 %v1642
    %2542 = vmatmul.mubr.bf16.gmra.mxu0 %v1641
    %v2543 = vpop.f32.mrf.mxu0
    %v2544 = vadd.f32 %v2447, %v2543
    %v2545 = vpop.f32.mrf.mxu0
    %v2546 = vpop.f32.mrf.mxu0
    %v2547 = vadd.f32 %v2450, %v2546
    %v2548 = vpop.f32.mrf.mxu0
    %2549 = vmatprep.mubr.bf16.mxu0 %v1650
    %2550 = vmatmul.mubr.bf16.gmra.mxu0 %v1649
    %v2551 = vpop.f32.mrf.mxu0
    %v2552 = vadd.f32 %v2455, %v2551
    %v2553 = vpop.f32.mrf.mxu0
    %v2554 = vpop.f32.mrf.mxu0
    %v2555 = vadd.f32 %v2458, %v2554
    %v2556 = vpop.f32.mrf.mxu0
    %2557 = vmatprep.mubr.bf16.mxu0 %v1658
    %2558 = vmatmul.mubr.bf16.gmra.mxu0 %v1657
    %v2559 = vpop.f32.mrf.mxu0
    %v2560 = vadd.f32 %v2463, %v2559
    %v2561 = vpop.f32.mrf.mxu0
    %v2562 = vpop.f32.mrf.mxu0
    %v2563 = vadd.f32 %v2466, %v2562
    %v2564 = vpop.f32.mrf.mxu0
    %2565 = vmatprep.mubr.bf16.mxu0 %v1666
    %2566 = vmatmul.mubr.bf16.gmra.mxu0 %v1665
    %v2567 = vpop.f32.mrf.mxu0
    %v2568 = vadd.f32 %v2471, %v2567
    %v2569 = vpop.f32.mrf.mxu0
    %v2570 = vpop.f32.mrf.mxu0
    %v2571 = vadd.f32 %v2474, %v2570
    %v2572 = vpop.f32.mrf.mxu0
    %2573 = vmatprep.mubr.bf16.mxu0 %v1674
    %2574 = vmatmul.mubr.bf16.gmra.mxu0 %v1673
    %v2575 = vpop.f32.mrf.mxu0
    %v2576 = vadd.f32 %v2479, %v2575
    %v2577 = vpop.f32.mrf.mxu0
    %v2578 = vpop.f32.mrf.mxu0
    %v2579 = vadd.f32 %v2482, %v2578
    %v2580 = vpop.f32.mrf.mxu0
    %2581 = vmatprep.mubr.bf16.mxu0 %v1682
    %2582 = vmatmul.mubr.bf16.gmra.mxu0 %v1681
    %v2583 = vpop.f32.mrf.mxu0
    %v2584 = vadd.f32 %v2487, %v2583
    %v2585 = vpop.f32.mrf.mxu0
    %v2586 = vpop.f32.mrf.mxu0
    %v2587 = vadd.f32 %v2490, %v2586
    %v2588 = vpop.f32.mrf.mxu0
    %2589 = vmatprep.mubr.bf16.mxu0 %v1690
    %2590 = vmatmul.mubr.bf16.gmra.mxu0 %v1689
    %v2591 = vpop.f32.mrf.mxu0
    %v2592 = vadd.f32 %v2495, %v2591
    %v2593 = vpop.f32.mrf.mxu0
    %v2594 = vpop.f32.mrf.mxu0
    %v2595 = vadd.f32 %v2498, %v2594
    %v2596 = vpop.f32.mrf.mxu0
    %2597 = vdwg.mxu0
    %vm2598 = vcmp.gt.f32.partialorder %v2536, 0.0
    %vm2599 = vcmp.gt.f32.partialorder %v2539, 0.0
    %vm2600 = vcmp.gt.f32.partialorder %v2544, 0.0
    %vm2601 = vcmp.gt.f32.partialorder %v2547, 0.0
    %vm2602 = vcmp.gt.f32.partialorder %v2552, 0.0
    %vm2603 = vcmp.gt.f32.partialorder %v2555, 0.0
    %vm2604 = vcmp.gt.f32.partialorder %v2560, 0.0
    %vm2605 = vcmp.gt.f32.partialorder %v2563, 0.0
    %vm2606 = vcmp.gt.f32.partialorder %v2568, 0.0
    %vm2607 = vcmp.gt.f32.partialorder %v2571, 0.0
    %vm2608 = vcmp.gt.f32.partialorder %v2576, 0.0
    %vm2609 = vcmp.gt.f32.partialorder %v2579, 0.0
    %vm2610 = vcmp.gt.f32.partialorder %v2584, 0.0
    %vm2611 = vcmp.gt.f32.partialorder %v2587, 0.0
    %vm2612 = vcmp.gt.f32.partialorder %v2592, 0.0
    %vm2613 = vcmp.gt.f32.partialorder %v2595, 0.0
    %v2614 = vmul.f32 %v2536, 0.01
    %v2615 = vmul.f32 %v2539, 0.01
    %v2616 = vmul.f32 %v2544, 0.01
    %v2617 = vmul.f32 %v2547, 0.01
    %v2618 = vmul.f32 %v2552, 0.01
    %v2619 = vmul.f32 %v2555, 0.01
    %v2620 = vmul.f32 %v2560, 0.01
    %v2621 = vmul.f32 %v2563, 0.01
    %v2622 = vmul.f32 %v2568, 0.01
    %v2623 = vmul.f32 %v2571, 0.01
    %v2624 = vmul.f32 %v2576, 0.01
    %v2625 = vmul.f32 %v2579, 0.01
    %v2626 = vmul.f32 %v2584, 0.01
    %v2627 = vmul.f32 %v2587, 0.01
    %v2628 = vmul.f32 %v2592, 0.01
    %v2629 = vmul.f32 %v2595, 0.01
    %v2630 = vsel %vm2598, %v2536, %v2614
    %v2631 = vsel %vm2599, %v2539, %v2615
    %v2632 = vsel %vm2600, %v2544, %v2616
    %v2633 = vsel %vm2601, %v2547, %v2617
    %v2634 = vsel %vm2602, %v2552, %v2618
    %v2635 = vsel %vm2603, %v2555, %v2619
    %v2636 = vsel %vm2604, %v2560, %v2620
    %v2637 = vsel %vm2605, %v2563, %v2621
    %v2638 = vsel %vm2606, %v2568, %v2622
    %v2639 = vsel %vm2607, %v2571, %v2623
    %v2640 = vsel %vm2608, %v2576, %v2624
    %v2641 = vsel %vm2609, %v2579, %v2625
    %v2642 = vsel %vm2610, %v2584, %v2626
    %v2643 = vsel %vm2611, %v2587, %v2627
    %v2644 = vsel %vm2612, %v2592, %v2628
    %v2645 = vsel %vm2613, %v2595, %v2629
    %v2646 = vpack.c.bf16 %v2631, %v2630
    %v2647 = vpack.c.bf16 %v2633, %v2632
    %v2648 = vpack.c.bf16 %v2635, %v2634
    %v2649 = vpack.c.bf16 %v2637, %v2636
    %v2650 = vpack.c.bf16 %v2639, %v2638
    %v2651 = vpack.c.bf16 %v2641, %v2640
    %v2652 = vpack.c.bf16 %v2643, %v2642
    %v2653 = vpack.c.bf16 %v2645, %v2644
    %v2654 = vld [vmem:[#allocation8] sm:$0xf]
    %v2655 = vld [vmem:[#allocation8 + $0x4] sm:$0xf]
    %v2656 = vld [vmem:[#allocation8 + $0x8] sm:$0xf]
    %v2657 = vld [vmem:[#allocation8 + $0xc] sm:$0xf]
    %v2658 = vld [vmem:[#allocation8 + $0x10] sm:$0xf]
    %v2659 = vld [vmem:[#allocation8 + $0x14] sm:$0xf]
    %v2660 = vld [vmem:[#allocation8 + $0x18] sm:$0xf]
    %v2661 = vld [vmem:[#allocation8 + $0x1c] sm:$0xf]
    %v2662 = vld [vmem:[#allocation8 + $0x20] sm:$0xf]
    %v2663 = vld [vmem:[#allocation8 + $0x24] sm:$0xf]
    %v2664 = vld [vmem:[#allocation8 + $0x28] sm:$0xf]
    %v2665 = vld [vmem:[#allocation8 + $0x2c] sm:$0xf]
    %v2666 = vld [vmem:[#allocation8 + $0x30] sm:$0xf]
    %v2667 = vld [vmem:[#allocation8 + $0x34] sm:$0xf]
    %v2668 = vld [vmem:[#allocation8 + $0x38] sm:$0xf]
    %v2669 = vld [vmem:[#allocation8 + $0x3c] sm:$0xf]
    %v2670 = vld [vmem:[%s4] sm:$0x1]
    %v2672 = vlaneseq
    %v2673 = vshrl.u32 %v2672, 7
    %v2674 = vsub.s32 0, %v2673
    %v2675 = vrot.slane %v2670, %v2674
    %v2693 = vunpack.c.l.b16 %v2654
    %v2694 = vunpack.c.l.b16 %v2655
    %v2695 = vunpack.c.l.b16 %v2656
    %v2696 = vunpack.c.l.b16 %v2657
    %v2697 = vunpack.c.l.b16 %v2658
    %v2698 = vunpack.c.l.b16 %v2659
    %v2699 = vunpack.c.l.b16 %v2660
    %v2700 = vunpack.c.l.b16 %v2661
    %v2701 = vunpack.c.l.b16 %v2662
    %v2702 = vunpack.c.l.b16 %v2663
    %v2703 = vunpack.c.l.b16 %v2664
    %v2704 = vunpack.c.l.b16 %v2665
    %v2705 = vunpack.c.l.b16 %v2666
    %v2706 = vunpack.c.l.b16 %v2667
    %v2707 = vunpack.c.l.b16 %v2668
    %v2708 = vunpack.c.l.b16 %v2669
    %v2709 = vpack.c.b16 %v2694, %v2693
    %v2710 = vpack.c.b16 %v2696, %v2695
    %v2711 = vpack.c.b16 %v2698, %v2697
    %v2712 = vpack.c.b16 %v2700, %v2699
    %v2713 = vpack.c.b16 %v2702, %v2701
    %v2714 = vpack.c.b16 %v2704, %v2703
    %v2715 = vpack.c.b16 %v2706, %v2705
    %v2716 = vpack.c.b16 %v2708, %v2707
    %2725 = vmatprep.subr.bf16.mxu0 0
    %2726 = vmatpush1.bf16.msra.mxu0 %v2716
    %2727 = vmatprep.subr.bf16.mxu0 0
    %2728 = vmatpush1.bf16.msra.mxu0 %v2715
    %2729 = vmatprep.subr.bf16.mxu0 0
    %2730 = vmatpush1.bf16.msra.mxu0 %v2714
    %2731 = vmatprep.subr.bf16.mxu0 0
    %2732 = vmatpush1.bf16.msra.mxu0 %v2713
    %2733 = vmatprep.subr.bf16.mxu0 0
    %2734 = vmatpush1.bf16.msra.mxu0 %v2712
    %2735 = vmatprep.subr.bf16.mxu0 0
    %2736 = vmatpush1.bf16.msra.mxu0 %v2711
    %2737 = vmatprep.subr.bf16.mxu0 0
    %2738 = vmatpush1.bf16.msra.mxu0 %v2710
    %2739 = vmatprep.subr.bf16.mxu0 0
    %2740 = vmatpush1.bf16.msra.mxu0 %v2709
    %2741 = vmatprep.subr.bf16.mxu0 0
    %2742 = vmatpush2.bf16.msra.mxu0 0
    %2743 = vmatprep.subr.bf16.mxu0 0
    %2744 = vmatpush2.bf16.msra.mxu0 0
    %2745 = vmatprep.subr.bf16.mxu0 0
    %2746 = vmatpush2.bf16.msra.mxu0 0
    %2747 = vmatprep.subr.bf16.mxu0 0
    %2748 = vmatpush2.bf16.msra.mxu0 0
    %2749 = vmatprep.subr.bf16.mxu0 0
    %2750 = vmatpush2.bf16.msra.mxu0 0
    %2751 = vmatprep.subr.bf16.mxu0 0
    %2752 = vmatpush2.bf16.msra.mxu0 0
    %2753 = vmatprep.subr.bf16.mxu0 0
    %2754 = vmatpush2.bf16.msra.mxu0 0
    %2755 = vmatprep.subr.bf16.mxu0 0
    %2756 = vmatpush2.bf16.msra.mxu0 0
    %2757 = vmatprep.mubr.bf16.mxu0 0
    %2758 = vmatmul.mubr.bf16.gmra.mxu0 %v2646
    %v2759 = vpop.f32.mrf.mxu0
    %v2760 = vadd.f32 %v2675, %v2759
    %v2761 = vpop.f32.mrf.mxu0
    %v2762 = vpop.f32.mrf.mxu0
    %v2763 = vadd.f32 %v2675, %v2762
    %v2764 = vpop.f32.mrf.mxu0
    %2765 = vmatprep.mubr.bf16.mxu0 0
    %2766 = vmatmul.mubr.bf16.gmra.mxu0 %v2647
    %v2767 = vpop.f32.mrf.mxu0
    %v2768 = vadd.f32 %v2675, %v2767
    %v2769 = vpop.f32.mrf.mxu0
    %v2770 = vpop.f32.mrf.mxu0
    %v2771 = vadd.f32 %v2675, %v2770
    %v2772 = vpop.f32.mrf.mxu0
    %2773 = vmatprep.mubr.bf16.mxu0 0
    %2774 = vmatmul.mubr.bf16.gmra.mxu0 %v2648
    %v2775 = vpop.f32.mrf.mxu0
    %v2776 = vadd.f32 %v2675, %v2775
    %v2777 = vpop.f32.mrf.mxu0
    %v2778 = vpop.f32.mrf.mxu0
    %v2779 = vadd.f32 %v2675, %v2778
    %v2780 = vpop.f32.mrf.mxu0
    %2781 = vmatprep.mubr.bf16.mxu0 0
    %2782 = vmatmul.mubr.bf16.gmra.mxu0 %v2649
    %v2783 = vpop.f32.mrf.mxu0
    %v2784 = vadd.f32 %v2675, %v2783
    %v2785 = vpop.f32.mrf.mxu0
    %v2786 = vpop.f32.mrf.mxu0
    %v2787 = vadd.f32 %v2675, %v2786
    %v2788 = vpop.f32.mrf.mxu0
    %2789 = vmatprep.mubr.bf16.mxu0 0
    %2790 = vmatmul.mubr.bf16.gmra.mxu0 %v2650
    %v2791 = vpop.f32.mrf.mxu0
    %v2792 = vadd.f32 %v2675, %v2791
    %v2793 = vpop.f32.mrf.mxu0
    %v2794 = vpop.f32.mrf.mxu0
    %v2795 = vadd.f32 %v2675, %v2794
    %v2796 = vpop.f32.mrf.mxu0
    %2797 = vmatprep.mubr.bf16.mxu0 0
    %2798 = vmatmul.mubr.bf16.gmra.mxu0 %v2651
    %v2799 = vpop.f32.mrf.mxu0
    %v2800 = vadd.f32 %v2675, %v2799
    %v2801 = vpop.f32.mrf.mxu0
    %v2802 = vpop.f32.mrf.mxu0
    %v2803 = vadd.f32 %v2675, %v2802
    %v2804 = vpop.f32.mrf.mxu0
    %2805 = vmatprep.mubr.bf16.mxu0 0
    %2806 = vmatmul.mubr.bf16.gmra.mxu0 %v2652
    %v2807 = vpop.f32.mrf.mxu0
    %v2808 = vadd.f32 %v2675, %v2807
    %v2809 = vpop.f32.mrf.mxu0
    %v2810 = vpop.f32.mrf.mxu0
    %v2811 = vadd.f32 %v2675, %v2810
    %v2812 = vpop.f32.mrf.mxu0
    %2813 = vmatprep.mubr.bf16.mxu0 0
    %2814 = vmatmul.mubr.bf16.gmra.mxu0 %v2653
    %v2815 = vpop.f32.mrf.mxu0
    %v2816 = vadd.f32 %v2675, %v2815
    %v2817 = vpop.f32.mrf.mxu0
    %v2818 = vpop.f32.mrf.mxu0
    %v2819 = vadd.f32 %v2675, %v2818
    %v2820 = vpop.f32.mrf.mxu0
    %2821 = vdwg.mxu0
    %vm2822 = vcmp.gt.f32.partialorder %v2760, 0.0
    %vm2823 = vcmp.gt.f32.partialorder %v2763, 0.0
    %vm2824 = vcmp.gt.f32.partialorder %v2768, 0.0
    %vm2825 = vcmp.gt.f32.partialorder %v2771, 0.0
    %vm2826 = vcmp.gt.f32.partialorder %v2776, 0.0
    %vm2827 = vcmp.gt.f32.partialorder %v2779, 0.0
    %vm2828 = vcmp.gt.f32.partialorder %v2784, 0.0
    %vm2829 = vcmp.gt.f32.partialorder %v2787, 0.0
    %vm2830 = vcmp.gt.f32.partialorder %v2792, 0.0
    %vm2831 = vcmp.gt.f32.partialorder %v2795, 0.0
    %vm2832 = vcmp.gt.f32.partialorder %v2800, 0.0
    %vm2833 = vcmp.gt.f32.partialorder %v2803, 0.0
    %vm2834 = vcmp.gt.f32.partialorder %v2808, 0.0
    %vm2835 = vcmp.gt.f32.partialorder %v2811, 0.0
    %vm2836 = vcmp.gt.f32.partialorder %v2816, 0.0
    %vm2837 = vcmp.gt.f32.partialorder %v2819, 0.0
    %v2838 = vmul.f32 %v2760, 0.01
    %v2839 = vmul.f32 %v2763, 0.01
    %v2840 = vmul.f32 %v2768, 0.01
    %v2841 = vmul.f32 %v2771, 0.01
    %v2842 = vmul.f32 %v2776, 0.01
    %v2843 = vmul.f32 %v2779, 0.01
    %v2844 = vmul.f32 %v2784, 0.01
    %v2845 = vmul.f32 %v2787, 0.01
    %v2846 = vmul.f32 %v2792, 0.01
    %v2847 = vmul.f32 %v2795, 0.01
    %v2848 = vmul.f32 %v2800, 0.01
    %v2849 = vmul.f32 %v2803, 0.01
    %v2850 = vmul.f32 %v2808, 0.01
    %v2851 = vmul.f32 %v2811, 0.01
    %v2852 = vmul.f32 %v2816, 0.01
    %v2853 = vmul.f32 %v2819, 0.01
    %v2854 = vsel %vm2822, %v2760, %v2838
    %v2855 = vsel %vm2823, %v2763, %v2839
    %v2856 = vsel %vm2824, %v2768, %v2840
    %v2857 = vsel %vm2825, %v2771, %v2841
    %v2858 = vsel %vm2826, %v2776, %v2842
    %v2859 = vsel %vm2827, %v2779, %v2843
    %v2860 = vsel %vm2828, %v2784, %v2844
    %v2861 = vsel %vm2829, %v2787, %v2845
    %v2862 = vsel %vm2830, %v2792, %v2846
    %v2863 = vsel %vm2831, %v2795, %v2847
    %v2864 = vsel %vm2832, %v2800, %v2848
    %v2865 = vsel %vm2833, %v2803, %v2849
    %v2866 = vsel %vm2834, %v2808, %v2850
    %v2867 = vsel %vm2835, %v2811, %v2851
    %v2868 = vsel %vm2836, %v2816, %v2852
    %v2869 = vsel %vm2837, %v2819, %v2853
    %v2870 = vpack.c.bf16 %v2855, %v2854
    %v2871 = vpack.c.bf16 %v2857, %v2856
    %v2872 = vpack.c.bf16 %v2859, %v2858
    %v2873 = vpack.c.bf16 %v2861, %v2860
    %v2874 = vpack.c.bf16 %v2863, %v2862
    %v2875 = vpack.c.bf16 %v2865, %v2864
    %v2876 = vpack.c.bf16 %v2867, %v2866
    %v2877 = vpack.c.bf16 %v2869, %v2868
    %v2878 = vld [vmem:[#allocation9] sm:$0xf]
    %v2879 = vld [vmem:[#allocation9 + $0x4] sm:$0xf]
    %v2880 = vld [vmem:[#allocation9 + $0x8] sm:$0xf]
    %v2881 = vld [vmem:[#allocation9 + $0xc] sm:$0xf]
    %v2882 = vld [vmem:[#allocation9 + $0x10] sm:$0xf]
    %v2883 = vld [vmem:[#allocation9 + $0x14] sm:$0xf]
    %v2884 = vld [vmem:[#allocation9 + $0x18] sm:$0xf]
    %v2885 = vld [vmem:[#allocation9 + $0x1c] sm:$0xf]
    %v2886 = vld [vmem:[#allocation9 + $0x20] sm:$0xf]
    %v2887 = vld [vmem:[#allocation9 + $0x24] sm:$0xf]
    %v2888 = vld [vmem:[#allocation9 + $0x28] sm:$0xf]
    %v2889 = vld [vmem:[#allocation9 + $0x2c] sm:$0xf]
    %v2890 = vld [vmem:[#allocation9 + $0x30] sm:$0xf]
    %v2891 = vld [vmem:[#allocation9 + $0x34] sm:$0xf]
    %v2892 = vld [vmem:[#allocation9 + $0x38] sm:$0xf]
    %v2893 = vld [vmem:[#allocation9 + $0x3c] sm:$0xf]
    %v2894 = vld [vmem:[%s6] sm:$0x1]
    %v2896 = vlaneseq
    %v2897 = vshrl.u32 %v2896, 7
    %v2898 = vsub.s32 0, %v2897
    %v2899 = vrot.slane %v2894, %v2898
    %v2917 = vunpack.c.l.b16 %v2878
    %v2918 = vunpack.c.l.b16 %v2879
    %v2919 = vunpack.c.l.b16 %v2880
    %v2920 = vunpack.c.l.b16 %v2881
    %v2921 = vunpack.c.l.b16 %v2882
    %v2922 = vunpack.c.l.b16 %v2883
    %v2923 = vunpack.c.l.b16 %v2884
    %v2924 = vunpack.c.l.b16 %v2885
    %v2925 = vunpack.c.l.b16 %v2886
    %v2926 = vunpack.c.l.b16 %v2887
    %v2927 = vunpack.c.l.b16 %v2888
    %v2928 = vunpack.c.l.b16 %v2889
    %v2929 = vunpack.c.l.b16 %v2890
    %v2930 = vunpack.c.l.b16 %v2891
    %v2931 = vunpack.c.l.b16 %v2892
    %v2932 = vunpack.c.l.b16 %v2893
    %v2933 = vpack.c.b16 %v2918, %v2917
    %v2934 = vpack.c.b16 %v2920, %v2919
    %v2935 = vpack.c.b16 %v2922, %v2921
    %v2936 = vpack.c.b16 %v2924, %v2923
    %v2937 = vpack.c.b16 %v2926, %v2925
    %v2938 = vpack.c.b16 %v2928, %v2927
    %v2939 = vpack.c.b16 %v2930, %v2929
    %v2940 = vpack.c.b16 %v2932, %v2931
    %2949 = vmatprep.subr.bf16.mxu0 0
    %2950 = vmatpush1.bf16.msra.mxu0 %v2940
    %2951 = vmatprep.subr.bf16.mxu0 0
    %2952 = vmatpush1.bf16.msra.mxu0 %v2939
    %2953 = vmatprep.subr.bf16.mxu0 0
    %2954 = vmatpush1.bf16.msra.mxu0 %v2938
    %2955 = vmatprep.subr.bf16.mxu0 0
    %2956 = vmatpush1.bf16.msra.mxu0 %v2937
    %2957 = vmatprep.subr.bf16.mxu0 0
    %2958 = vmatpush1.bf16.msra.mxu0 %v2936
    %2959 = vmatprep.subr.bf16.mxu0 0
    %2960 = vmatpush1.bf16.msra.mxu0 %v2935
    %2961 = vmatprep.subr.bf16.mxu0 0
    %2962 = vmatpush1.bf16.msra.mxu0 %v2934
    %2963 = vmatprep.subr.bf16.mxu0 0
    %2964 = vmatpush1.bf16.msra.mxu0 %v2933
    %2965 = vmatprep.subr.bf16.mxu0 0
    %2966 = vmatpush2.bf16.msra.mxu0 0
    %2967 = vmatprep.subr.bf16.mxu0 0
    %2968 = vmatpush2.bf16.msra.mxu0 0
    %2969 = vmatprep.subr.bf16.mxu0 0
    %2970 = vmatpush2.bf16.msra.mxu0 0
    %2971 = vmatprep.subr.bf16.mxu0 0
    %2972 = vmatpush2.bf16.msra.mxu0 0
    %2973 = vmatprep.subr.bf16.mxu0 0
    %2974 = vmatpush2.bf16.msra.mxu0 0
    %2975 = vmatprep.subr.bf16.mxu0 0
    %2976 = vmatpush2.bf16.msra.mxu0 0
    %2977 = vmatprep.subr.bf16.mxu0 0
    %2978 = vmatpush2.bf16.msra.mxu0 0
    %2979 = vmatprep.subr.bf16.mxu0 0
    %2980 = vmatpush2.bf16.msra.mxu0 0
    %2981 = vmatprep.mubr.bf16.mxu0 0
    %2982 = vmatmul.mubr.bf16.gmra.mxu0 %v2870
    %v2983 = vpop.f32.mrf.mxu0
    %v2984 = vadd.f32 %v2899, %v2983
    %v2985 = vpop.f32.mrf.mxu0
    %v2986 = vpop.f32.mrf.mxu0
    %v2987 = vadd.f32 %v2899, %v2986
    %v2988 = vpop.f32.mrf.mxu0
    %2989 = vmatprep.mubr.bf16.mxu0 0
    %2990 = vmatmul.mubr.bf16.gmra.mxu0 %v2871
    %v2991 = vpop.f32.mrf.mxu0
    %v2992 = vadd.f32 %v2899, %v2991
    %v2993 = vpop.f32.mrf.mxu0
    %v2994 = vpop.f32.mrf.mxu0
    %v2995 = vadd.f32 %v2899, %v2994
    %v2996 = vpop.f32.mrf.mxu0
    %2997 = vmatprep.mubr.bf16.mxu0 0
    %2998 = vmatmul.mubr.bf16.gmra.mxu0 %v2872
    %v2999 = vpop.f32.mrf.mxu0
    %v3000 = vadd.f32 %v2899, %v2999
    %v3001 = vpop.f32.mrf.mxu0
    %v3002 = vpop.f32.mrf.mxu0
    %v3003 = vadd.f32 %v2899, %v3002
    %v3004 = vpop.f32.mrf.mxu0
    %3005 = vmatprep.mubr.bf16.mxu0 0
    %3006 = vmatmul.mubr.bf16.gmra.mxu0 %v2873
    %v3007 = vpop.f32.mrf.mxu0
    %v3008 = vadd.f32 %v2899, %v3007
    %v3009 = vpop.f32.mrf.mxu0
    %v3010 = vpop.f32.mrf.mxu0
    %v3011 = vadd.f32 %v2899, %v3010
    %v3012 = vpop.f32.mrf.mxu0
    %3013 = vmatprep.mubr.bf16.mxu0 0
    %3014 = vmatmul.mubr.bf16.gmra.mxu0 %v2874
    %v3015 = vpop.f32.mrf.mxu0
    %v3016 = vadd.f32 %v2899, %v3015
    %v3017 = vpop.f32.mrf.mxu0
    %v3018 = vpop.f32.mrf.mxu0
    %v3019 = vadd.f32 %v2899, %v3018
    %v3020 = vpop.f32.mrf.mxu0
    %3021 = vmatprep.mubr.bf16.mxu0 0
    %3022 = vmatmul.mubr.bf16.gmra.mxu0 %v2875
    %v3023 = vpop.f32.mrf.mxu0
    %v3024 = vadd.f32 %v2899, %v3023
    %v3025 = vpop.f32.mrf.mxu0
    %v3026 = vpop.f32.mrf.mxu0
    %v3027 = vadd.f32 %v2899, %v3026
    %v3028 = vpop.f32.mrf.mxu0
    %3029 = vmatprep.mubr.bf16.mxu0 0
    %3030 = vmatmul.mubr.bf16.gmra.mxu0 %v2876
    %v3031 = vpop.f32.mrf.mxu0
    %v3032 = vadd.f32 %v2899, %v3031
    %v3033 = vpop.f32.mrf.mxu0
    %v3034 = vpop.f32.mrf.mxu0
    %v3035 = vadd.f32 %v2899, %v3034
    %v3036 = vpop.f32.mrf.mxu0
    %3037 = vmatprep.mubr.bf16.mxu0 0
    %3038 = vmatmul.mubr.bf16.gmra.mxu0 %v2877
    %v3039 = vpop.f32.mrf.mxu0
    %v3040 = vadd.f32 %v2899, %v3039
    %v3041 = vpop.f32.mrf.mxu0
    %v3042 = vpop.f32.mrf.mxu0
    %v3043 = vadd.f32 %v2899, %v3042
    %v3044 = vpop.f32.mrf.mxu0
    %3045 = vdwg.mxu0
    %vm3046 = vcmp.gt.f32.partialorder %v2984, 0.0
    %vm3047 = vcmp.gt.f32.partialorder %v2987, 0.0
    %vm3048 = vcmp.gt.f32.partialorder %v2992, 0.0
    %vm3049 = vcmp.gt.f32.partialorder %v2995, 0.0
    %vm3050 = vcmp.gt.f32.partialorder %v3000, 0.0
    %vm3051 = vcmp.gt.f32.partialorder %v3003, 0.0
    %vm3052 = vcmp.gt.f32.partialorder %v3008, 0.0
    %vm3053 = vcmp.gt.f32.partialorder %v3011, 0.0
    %vm3054 = vcmp.gt.f32.partialorder %v3016, 0.0
    %vm3055 = vcmp.gt.f32.partialorder %v3019, 0.0
    %vm3056 = vcmp.gt.f32.partialorder %v3024, 0.0
    %vm3057 = vcmp.gt.f32.partialorder %v3027, 0.0
    %vm3058 = vcmp.gt.f32.partialorder %v3032, 0.0
    %vm3059 = vcmp.gt.f32.partialorder %v3035, 0.0
    %vm3060 = vcmp.gt.f32.partialorder %v3040, 0.0
    %vm3061 = vcmp.gt.f32.partialorder %v3043, 0.0
    %v3062 = vmul.f32 %v2984, 0.01
    %v3063 = vmul.f32 %v2987, 0.01
    %v3064 = vmul.f32 %v2992, 0.01
    %v3065 = vmul.f32 %v2995, 0.01
    %v3066 = vmul.f32 %v3000, 0.01
    %v3067 = vmul.f32 %v3003, 0.01
    %v3068 = vmul.f32 %v3008, 0.01
    %v3069 = vmul.f32 %v3011, 0.01
    %v3070 = vmul.f32 %v3016, 0.01
    %v3071 = vmul.f32 %v3019, 0.01
    %v3072 = vmul.f32 %v3024, 0.01
    %v3073 = vmul.f32 %v3027, 0.01
    %v3074 = vmul.f32 %v3032, 0.01
    %v3075 = vmul.f32 %v3035, 0.01
    %v3076 = vmul.f32 %v3040, 0.01
    %v3077 = vmul.f32 %v3043, 0.01
    %v3078 = vsel %vm3046, %v2984, %v3062
    %v3079 = vsel %vm3047, %v2987, %v3063
    %v3080 = vsel %vm3048, %v2992, %v3064
    %v3081 = vsel %vm3049, %v2995, %v3065
    %v3082 = vsel %vm3050, %v3000, %v3066
    %v3083 = vsel %vm3051, %v3003, %v3067
    %v3084 = vsel %vm3052, %v3008, %v3068
    %v3085 = vsel %vm3053, %v3011, %v3069
    %v3086 = vsel %vm3054, %v3016, %v3070
    %v3087 = vsel %vm3055, %v3019, %v3071
    %v3088 = vsel %vm3056, %v3024, %v3072
    %v3089 = vsel %vm3057, %v3027, %v3073
    %v3090 = vsel %vm3058, %v3032, %v3074
    %v3091 = vsel %vm3059, %v3035, %v3075
    %v3092 = vsel %vm3060, %v3040, %v3076
    %v3093 = vsel %vm3061, %v3043, %v3077
    %v3094 = vld [vmem:[%s7] sm:$0x1]
    %v3095 = vpack.c.bf16 %v3079, %v3078
    %v3096 = vpack.c.bf16 %v3081, %v3080
    %v3097 = vpack.c.bf16 %v3083, %v3082
    %v3098 = vpack.c.bf16 %v3085, %v3084
    %v3099 = vpack.c.bf16 %v3087, %v3086
    %v3100 = vpack.c.bf16 %v3089, %v3088
    %v3101 = vpack.c.bf16 %v3091, %v3090
    %v3102 = vpack.c.bf16 %v3093, %v3092
    %v3103 = vld [vmem:[#allocation2] sm:$0x1]
    %3105 = vset.pattern.permute.xlu0 0
    %3106 = vperm.xlu0 %3105, %v3103
    %v3107 = vpop.permute.xlu0 %3106
    %v3109 = vlaneseq
    %v3110 = vshrl.u32 %v3109, 7
    %v3111 = vsub.s32 0, %v3110
    %v3112 = vrot.slane %v3107, %v3111
    %3113 = vmatprep.subr.bf16.mxu0 0
    %3114 = vmatpush1.bf16.xpose.msra.mxu0 %v3102
    %3115 = vmatprep.subr.bf16.mxu0 0
    %3116 = vmatpush1.bf16.xpose.msra.mxu0 %v3101
    %3117 = vmatprep.subr.bf16.mxu0 0
    %3118 = vmatpush1.bf16.xpose.msra.mxu0 %v3100
    %3119 = vmatprep.subr.bf16.mxu0 0
    %3120 = vmatpush1.bf16.xpose.msra.mxu0 %v3099
    %3121 = vmatprep.subr.bf16.mxu0 0
    %3122 = vmatpush1.bf16.xpose.msra.mxu0 %v3098
    %3123 = vmatprep.subr.bf16.mxu0 0
    %3124 = vmatpush1.bf16.xpose.msra.mxu0 %v3097
    %3125 = vmatprep.subr.bf16.mxu0 0
    %3126 = vmatpush1.bf16.xpose.msra.mxu0 %v3096
    %3127 = vmatprep.subr.bf16.mxu0 0
    %3128 = vmatpush1.bf16.xpose.msra.mxu0 %v3095
    %3129 = vmatprep.subr.bf16.mxu0 0
    %3130 = vmatpush2.bf16.xpose.msra.mxu0 0
    %3131 = vmatprep.subr.bf16.mxu0 0
    %3132 = vmatpush2.bf16.xpose.msra.mxu0 0
    %3133 = vmatprep.subr.bf16.mxu0 0
    %3134 = vmatpush2.bf16.xpose.msra.mxu0 0
    %3135 = vmatprep.subr.bf16.mxu0 0
    %3136 = vmatpush2.bf16.xpose.msra.mxu0 0
    %3137 = vmatprep.subr.bf16.mxu0 0
    %3138 = vmatpush2.bf16.xpose.msra.mxu0 0
    %3139 = vmatprep.subr.bf16.mxu0 0
    %3140 = vmatpush2.bf16.xpose.msra.mxu0 0
    %3141 = vmatprep.subr.bf16.mxu0 0
    %3142 = vmatpush2.bf16.xpose.msra.mxu0 0
    %3143 = vmatprep.subr.bf16.mxu0 0
    %3144 = vmatpush2.bf16.xpose.msra.mxu0 0
    %3145 = vmatprep.mubr.bf16.mxu0 0
    %3146 = vmatmul.mubr.bf16.gmra.mxu0 %v3094
    %v3147 = vpop.f32.mrf.mxu0
    %v3148 = vadd.f32 %v3112, %v3147
    %v3149 = vpop.f32.mrf.mxu0
    %v3150 = vpop.f32.mrf.mxu0
    %v3151 = vpop.f32.mrf.mxu0
    %3152 = vdwg.mxu0
    %v3153 = vsub.f32 0.0, %v3148
    %v3154 = vmul.f32 %v3153, 1.442695
    %v3155 = vpow.pop %v3154
    %v3156 = vadd.f32 %v3155, 1.0
    %v3157 = vrcp.pop %v3156
    %v3158 = vmul.f32 1.0, %v3157
    %3159 = vst [vmem:[#allocation11] sm:$0x1] %v3158
    // Predicated region
    $region54: #{tpu_custom_call.1} parent=1 // pred_check
      _
    $region55: #{tpu_custom_call.1} parent=1 // pred_check_branch
      %3161 = sbr.rel (0) target = $region57
    $region56: #{tpu_custom_call.1} parent=1 // pred_region
      %s3163 = ssub.s32 16, 16
      %3164 = vsyncadd [#allocation5], %s3163
      %s3166 = sshll.u32 [#allocation11], 4
      %s3167 = int_to_ptr.vmem [resolvable:$true] %s3166
      %3169 = dma.vmem_to_hbm [thread:$0]  %s3167, 16, %s9, [#allocation5]
    $region57: #{tpu_custom_call.1} parent=1 // pred_fallthru
      _
    // Predicated region
    $region58: #{tpu_custom_call.1} parent=1 // pred_check
      _
    $region59: #{tpu_custom_call.1} parent=1 // pred_check_branch
      %3171 = sbr.rel (0) target = $region61
    $region60: #{tpu_custom_call.1} parent=1 // pred_region
      %3172 = dma.done [#allocation5], 16
    $region61: #{tpu_custom_call.1} parent=1 // pred_fallthru
      _
    %3173 = vsyncpa [#allocation4], 1
    %3174 = vsyncpa [#allocation7], 1
    %3175 = vsyncpa [#allocation10], 1
    %3176 = vsyncpa [#allocation5], 1

// kernel: tpu_custom_call.1
$region0: #{tpu_custom_call.1}
  #allocation0 [shape = 'u32[]', space=smem, size = 0x4, offset = 0x4, fixed_abs, tag = 'smem constant byte address 0x4 - core index']
  #allocation1 [shape = 'u32[144,128]{1,0:T(1,128)}', space=vmem, size = 0x12000, scoped, tag = 'internal scratch']
  #allocation2 [shape = 'f32[1,1]{1,0:T(1,128)S(1)}', space=vmem, size = 0x200, scoped, tag = 'scoped memory for tpu_custom_call.1']
  %s0 = inlined_call_operand.hbm [shape: f32[2,1024], index: 0, kind: input, shape index: {}]
  %s1 = inlined_call_operand.hbm [shape: bf16[1024,128], index: 1, kind: input, shape index: {}]
  %s2 = inlined_call_operand.vmem [shape: f32[1,128], index: 2, kind: input, shape index: {}]
  %s3 = inlined_call_operand.hbm [shape: bf16[128,128], index: 3, kind: input, shape index: {}]
  %s4 = inlined_call_operand.vmem [shape: f32[1,128], index: 4, kind: input, shape index: {}]
  %s5 = inlined_call_operand.hbm [shape: bf16[128,128], index: 5, kind: input, shape index: {}]
  %s6 = inlined_call_operand.vmem [shape: f32[1,128], index: 6, kind: input, shape index: {}]
  %s7 = inlined_call_operand.vmem [shape: bf16[1,128], index: 7, kind: input, shape index: {}]
  %s8 = inlined_call_operand.<no memory space> [shape: f32[1,1], index: 8, kind: input, shape index: {}]
  %s9 = inlined_call_operand.hbm [shape: f32[1,2], index: 9, kind: output, shape index: {}]
  %s10 = sld [smem:[#allocation0]]
  $region62: #{tpu_custom_call.1} parent=0
    _
  %s12 = ssub.s32 1, %s10
  %s13 = scalar_select 0, %s12, %s10
  %v14 = vstv %s8
  %15 = vst [vmem:[#allocation2] sm:$0x1] %v14
  $region1: #{tpu_custom_call.1} parent=0
    #allocation3 [shape = 'u8[524288]{0}', space=vmem, size = 0x80000, scoped, tag = 'input window, operand 0, single buffered']
    #allocation4 [shape = 's32[1]{0}', space=sflag, size = 0x4, scoped, tag = 'scoped memory for tpu_custom_call.1']
    #allocation5 [shape = 's32[1]{0}', space=sflag, size = 0x4, scoped, tag = 'scoped memory for tpu_custom_call.1']
    #allocation6 [shape = 'u8[262144]{0}', space=vmem, size = 0x40000, scoped, tag = 'input window, operand 1, single buffered']
    #allocation7 [shape = 's32[1]{0}', space=sflag, size = 0x4, scoped, tag = 'scoped memory for tpu_custom_call.1']
    #allocation8 [shape = 'u8[32768]{0}', space=vmem, size = 0x8000, scoped, tag = 'input window, operand 3, single buffered']
    #allocation9 [shape = 'u8[32768]{0}', space=vmem, size = 0x8000, scoped, tag = 'input window, operand 5, single buffered']
    #allocation10 [shape = 's32[1]{0}', space=sflag, size = 0x4, scoped, tag = 'scoped memory for tpu_custom_call.1']
    #allocation11 [shape = 'u8[512]{0}', space=vmem, size = 0x400, scoped, tag = 'output window, operand 0, single buffered']
    %16 = vsyncpa [#allocation4], 0
    %17 = vsyncpa [#allocation7], 0
    %18 = vsyncpa [#allocation10], 0
    %19 = vsyncpa [#allocation5], 0
    // Predicated region
    $region2: #{tpu_custom_call.1} parent=1 // pred_check
      _
    $region3: #{tpu_custom_call.1} parent=1 // pred_check_branch
      %21 = sbr.rel (0) target = $region5
    $region4: #{tpu_custom_call.1} parent=1 // pred_region
      %s23 = ssub.s32 16384, 256
      %24 = vsyncadd [#allocation4], %s23
      %s25 = sshll.u32 [#allocation3], 4
      %s26 = int_to_ptr.vmem [resolvable:$true] %s25
      %31 = dma.hbm_to_vmem [thread:$0]  %s0, 256, %s26, [#allocation4], 256, 256, 16
    $region5: #{tpu_custom_call.1} parent=1 // pred_fallthru
      _
    // Predicated region
    $region6: #{tpu_custom_call.1} parent=1 // pred_check
      _
    $region7: #{tpu_custom_call.1} parent=1 // pred_check_branch
      %33 = sbr.rel (0) target = $region9
    $region8: #{tpu_custom_call.1} parent=1 // pred_region
      %s35 = ssub.s32 8192, 8192
      %36 = vsyncadd [#allocation7], %s35
      %s37 = sshll.u32 [#allocation6], 4
      %s38 = int_to_ptr.vmem [resolvable:$true] %s37
      %43 = dma.hbm_to_vmem [thread:$0]  %s1, 8192, %s38, [#allocation7], 64, 64, 4
    $region9: #{tpu_custom_call.1} parent=1 // pred_fallthru
      _
    // Predicated region
    $region10: #{tpu_custom_call.1} parent=1 // pred_check
      _
    $region11: #{tpu_custom_call.1} parent=1 // pred_check_branch
      %45 = sbr.rel (0) target = $region13
    $region12: #{tpu_custom_call.1} parent=1 // pred_region
      _
    $region13: #{tpu_custom_call.1} parent=1 // pred_fallthru
      _
    // Predicated region
    $region14: #{tpu_custom_call.1} parent=1 // pred_check
      _
    $region15: #{tpu_custom_call.1} parent=1 // pred_check_branch
      %47 = sbr.rel (0) target = $region17
    $region16: #{tpu_custom_call.1} parent=1 // pred_region
      %s49 = ssub.s32 1024, 1024
      %50 = vsyncadd [#allocation7], %s49
      %s51 = sshll.u32 [#allocation8], 4
      %s52 = int_to_ptr.vmem [resolvable:$true] %s51
      %57 = dma.hbm_to_vmem [thread:$0]  %s3, 1024, %s52, [#allocation7], 64, 64, 4
    $region17: #{tpu_custom_call.1} parent=1 // pred_fallthru
      _
    // Predicated region
    $region18: #{tpu_custom_call.1} parent=1 // pred_check
      _
    $region19: #{tpu_custom_call.1} parent=1 // pred_check_branch
      %59 = sbr.rel (0) target = $region21
    $region20: #{tpu_custom_call.1} parent=1 // pred_region
      _
    $region21: #{tpu_custom_call.1} parent=1 // pred_fallthru
      _
    // Predicated region
    $region22: #{tpu_custom_call.1} parent=1 // pred_check
      _
    $region23: #{tpu_custom_call.1} parent=1 // pred_check_branch
      %61 = sbr.rel (0) target = $region25
    $region24: #{tpu_custom_call.1} parent=1 // pred_region
      %s63 = ssub.s32 1024, 1024
      %64 = vsyncadd [#allocation10], %s63
      %s65 = sshll.u32 [#allocation9], 4
      %s66 = int_to_ptr.vmem [resolvable:$true] %s65
      %71 = dma.hbm_to_vmem [thread:$0]  %s5, 1024, %s66, [#allocation10], 64, 64, 4
    $region25: #{tpu_custom_call.1} parent=1 // pred_fallthru
      _
    // Predicated region
    $region26: #{tpu_custom_call.1} parent=1 // pred_check
      _
    $region27: #{tpu_custom_call.1} parent=1 // pred_check_branch
      %73 = sbr.rel (0) target = $region29
    $region28: #{tpu_custom_call.1} parent=1 // pred_region
      _
    $region29: #{tpu_custom_call.1} parent=1 // pred_fallthru
      _
    // Predicated region
    $region30: #{tpu_custom_call.1} parent=1 // pred_check
      _
    $region31: #{tpu_custom_call.1} parent=1 // pred_check_branch
      %75 = sbr.rel (0) target = $region33
    $region32: #{tpu_custom_call.1} parent=1 // pred_region
      _
    $region33: #{tpu_custom_call.1} parent=1 // pred_fallthru
      _
    // Predicated region
    $region34: #{tpu_custom_call.1} parent=1 // pred_check
      _
    $region35: #{tpu_custom_call.1} parent=1 // pred_check_branch
      %77 = sbr.rel (0) target = $region37
    $region36: #{tpu_custom_call.1} parent=1 // pred_region
      _
    $region37: #{tpu_custom_call.1} parent=1 // pred_fallthru
      _
    // Predicated region
    $region38: #{tpu_custom_call.1} parent=1 // pred_check
      _
    $region39: #{tpu_custom_call.1} parent=1 // pred_check_branch
      %79 = sbr.rel (0) target = $region41
    $region40: #{tpu_custom_call.1} parent=1 // pred_region
      %80 = dma.done [#allocation4], 16384
    $region41: #{tpu_custom_call.1} parent=1 // pred_fallthru
      _
    // Predicated region
    $region42: #{tpu_custom_call.1} parent=1 // pred_check
      _
    $region43: #{tpu_custom_call.1} parent=1 // pred_check_branch
      %82 = sbr.rel (0) target = $region45
    $region44: #{tpu_custom_call.1} parent=1 // pred_region
      %83 = dma.done [#allocation7], 8192
    $region45: #{tpu_custom_call.1} parent=1 // pred_fallthru
      _
    // Predicated region
    $region46: #{tpu_custom_call.1} parent=1 // pred_check
      _
    $region47: #{tpu_custom_call.1} parent=1 // pred_check_branch
      %85 = sbr.rel (0) target = $region49
    $region48: #{tpu_custom_call.1} parent=1 // pred_region
      %86 = dma.done [#allocation7], 1024
    $region49: #{tpu_custom_call.1} parent=1 // pred_fallthru
      _
    // Predicated region
    $region50: #{tpu_custom_call.1} parent=1 // pred_check
      _
    $region51: #{tpu_custom_call.1} parent=1 // pred_check_branch
      %88 = sbr.rel (0) target = $region53
    $region52: #{tpu_custom_call.1} parent=1 // pred_region
      %89 = dma.done [#allocation10], 1024
    $region53: #{tpu_custom_call.1} parent=1 // pred_fallthru
      _
    %v91 = vld [vmem:[#allocation3] sm:$0xff]
    %v92 = vld [vmem:[#allocation3 + $0x8] sm:$0xff]
    %v93 = vld [vmem:[#allocation3 + $0x10] sm:$0xff]
    %v94 = vld [vmem:[#allocation3 + $0x18] sm:$0xff]
    %v95 = vld [vmem:[#allocation3 + $0x20] sm:$0xff]
    %v96 = vld [vmem:[#allocation3 + $0x28] sm:$0xff]
    %v97 = vld [vmem:[#allocation3 + $0x30] sm:$0xff]
    %v98 = vld [vmem:[#allocation3 + $0x38] sm:$0xff]
    %v99 = vld [vmem:[#allocation3 + $0x40] sm:$0xff]
    %v100 = vld [vmem:[#allocation3 + $0x48] sm:$0xff]
    %v101 = vld [vmem:[#allocation3 + $0x50] sm:$0xff]
    %v102 = vld [vmem:[#allocation3 + $0x58] sm:$0xff]
    %v103 = vld [vmem:[#allocation3 + $0x60] sm:$0xff]
    %v104 = vld [vmem:[#allocation3 + $0x68] sm:$0xff]
    %v105 = vld [vmem:[#allocation3 + $0x70] sm:$0xff]
    %v106 = vld [vmem:[#allocation3 + $0x78] sm:$0xff]
    %v107 = vld [vmem:[#allocation3 + $0x80] sm:$0xff]
    %v108 = vld [vmem:[#allocation3 + $0x88] sm:$0xff]
    %v109 = vld [vmem:[#allocation3 + $0x90] sm:$0xff]
    %v110 = vld [vmem:[#allocation3 + $0x98] sm:$0xff]
    %v111 = vld [vmem:[#allocation3 + $0xa0] sm:$0xff]
    %v112 = vld [vmem:[#allocation3 + $0xa8] sm:$0xff]
    %v113 = vld [vmem:[#allocation3 + $0xb0] sm:$0xff]
    %v114 = vld [vmem:[#allocation3 + $0xb8] sm:$0xff]
    %v115 = vld [vmem:[#allocation3 + $0xc0] sm:$0xff]
    %v116 = vld [vmem:[#allocation3 + $0xc8] sm:$0xff]
    %v117 = vld [vmem:[#allocation3 + $0xd0] sm:$0xff]
    %v118 = vld [vmem:[#allocation3 + $0xd8] sm:$0xff]
    %v119 = vld [vmem:[#allocation3 + $0xe0] sm:$0xff]
    %v120 = vld [vmem:[#allocation3 + $0xe8] sm:$0xff]
    %v121 = vld [vmem:[#allocation3 + $0xf0] sm:$0xff]
    %v122 = vld [vmem:[#allocation3 + $0xf8] sm:$0xff]
    %v123 = vld [vmem:[#allocation3 + $0x100] sm:$0xff]
    %v124 = vld [vmem:[#allocation3 + $0x108] sm:$0xff]
    %v125 = vld [vmem:[#allocation3 + $0x110] sm:$0xff]
    %v126 = vld [vmem:[#allocation3 + $0x118] sm:$0xff]
    %v127 = vld [vmem:[#allocation3 + $0x120] sm:$0xff]
    %v128 = vld [vmem:[#allocation3 + $0x128] sm:$0xff]
    %v129 = vld [vmem:[#allocation3 + $0x130] sm:$0xff]
    %v130 = vld [vmem:[#allocation3 + $0x138] sm:$0xff]
    %v131 = vld [vmem:[#allocation3 + $0x140] sm:$0xff]
    %v132 = vld [vmem:[#allocation3 + $0x148] sm:$0xff]
    %v133 = vld [vmem:[#allocation3 + $0x150] sm:$0xff]
    %v134 = vld [vmem:[#allocation3 + $0x158] sm:$0xff]
    %v135 = vld [vmem:[#allocation3 + $0x160] sm:$0xff]
    %v136 = vld [vmem:[#allocation3 + $0x168] sm:$0xff]
    %v137 = vld [vmem:[#allocation3 + $0x170] sm:$0xff]
    %v138 = vld [vmem:[#allocation3 + $0x178] sm:$0xff]
    %v139 = vld [vmem:[#allocation3 + $0x180] sm:$0xff]
    %v140 = vld [vmem:[#allocation3 + $0x188] sm:$0xff]
    %v141 = vld [vmem:[#allocation3 + $0x190] sm:$0xff]
    %v142 = vld [vmem:[#allocation3 + $0x198] sm:$0xff]
    %v143 = vld [vmem:[#allocation3 + $0x1a0] sm:$0xff]
    %v144 = vld [vmem:[#allocation3 + $0x1a8] sm:$0xff]
    %v145 = vld [vmem:[#allocation3 + $0x1b0] sm:$0xff]
    %v146 = vld [vmem:[#allocation3 + $0x1b8] sm:$0xff]
    %v147 = vld [vmem:[#allocation3 + $0x1c0] sm:$0xff]
    %v148 = vld [vmem:[#allocation3 + $0x1c8] sm:$0xff]
    %v149 = vld [vmem:[#allocation3 + $0x1d0] sm:$0xff]
    %v150 = vld [vmem:[#allocation3 + $0x1d8] sm:$0xff]
    %v151 = vld [vmem:[#allocation3 + $0x1e0] sm:$0xff]
    %v152 = vld [vmem:[#allocation3 + $0x1e8] sm:$0xff]
    %v153 = vld [vmem:[#allocation3 + $0x1f0] sm:$0xff]
    %v154 = vld [vmem:[#allocation3 + $0x1f8] sm:$0xff]
    %v155 = vld [vmem:[#allocation3 + $0x200] sm:$0xff]
    %v156 = vld [vmem:[#allocation3 + $0x208] sm:$0xff]
    %v157 = vld [vmem:[#allocation3 + $0x210] sm:$0xff]
    %v158 = vld [vmem:[#allocation3 + $0x218] sm:$0xff]
    %v159 = vld [vmem:[#allocation3 + $0x220] sm:$0xff]
    %v160 = vld [vmem:[#allocation3 + $0x228] sm:$0xff]
    %v161 = vld [vmem:[#allocation3 + $0x230] sm:$0xff]
    %v162 = vld [vmem:[#allocation3 + $0x238] sm:$0xff]
    %v163 = vld [vmem:[#allocation3 + $0x240] sm:$0xff]
    %v164 = vld [vmem:[#allocation3 + $0x248] sm:$0xff]
    %v165 = vld [vmem:[#allocation3 + $0x250] sm:$0xff]
    %v166 = vld [vmem:[#allocation3 + $0x258] sm:$0xff]
    %v167 = vld [vmem:[#allocation3 + $0x260] sm:$0xff]
    %v168 = vld [vmem:[#allocation3 + $0x268] sm:$0xff]
    %v169 = vld [vmem:[#allocation3 + $0x270] sm:$0xff]
    %v170 = vld [vmem:[#allocation3 + $0x278] sm:$0xff]
    %v171 = vld [vmem:[#allocation3 + $0x280] sm:$0xff]
    %v172 = vld [vmem:[#allocation3 + $0x288] sm:$0xff]
    %v173 = vld [vmem:[#allocation3 + $0x290] sm:$0xff]
    %v174 = vld [vmem:[#allocation3 + $0x298] sm:$0xff]
    %v175 = vld [vmem:[#allocation3 + $0x2a0] sm:$0xff]
    %v176 = vld [vmem:[#allocation3 + $0x2a8] sm:$0xff]
    %v177 = vld [vmem:[#allocation3 + $0x2b0] sm:$0xff]
    %v178 = vld [vmem:[#allocation3 + $0x2b8] sm:$0xff]
    %v179 = vld [vmem:[#allocation3 + $0x2c0] sm:$0xff]
    %v180 = vld [vmem:[#allocation3 + $0x2c8] sm:$0xff]
    %v181 = vld [vmem:[#allocation3 + $0x2d0] sm:$0xff]
    %v182 = vld [vmem:[#allocation3 + $0x2d8] sm:$0xff]
    %v183 = vld [vmem:[#allocation3 + $0x2e0] sm:$0xff]
    %v184 = vld [vmem:[#allocation3 + $0x2e8] sm:$0xff]
    %v185 = vld [vmem:[#allocation3 + $0x2f0] sm:$0xff]
    %v186 = vld [vmem:[#allocation3 + $0x2f8] sm:$0xff]
    %v187 = vld [vmem:[#allocation3 + $0x300] sm:$0xff]
    %v188 = vld [vmem:[#allocation3 + $0x308] sm:$0xff]
    %v189 = vld [vmem:[#allocation3 + $0x310] sm:$0xff]
    %v190 = vld [vmem:[#allocation3 + $0x318] sm:$0xff]
    %v191 = vld [vmem:[#allocation3 + $0x320] sm:$0xff]
    %v192 = vld [vmem:[#allocation3 + $0x328] sm:$0xff]
    %v193 = vld [vmem:[#allocation3 + $0x330] sm:$0xff]
    %v194 = vld [vmem:[#allocation3 + $0x338] sm:$0xff]
    %v195 = vld [vmem:[#allocation3 + $0x340] sm:$0xff]
    %v196 = vld [vmem:[#allocation3 + $0x348] sm:$0xff]
    %v197 = vld [vmem:[#allocation3 + $0x350] sm:$0xff]
    %v198 = vld [vmem:[#allocation3 + $0x358] sm:$0xff]
    %v199 = vld [vmem:[#allocation3 + $0x360] sm:$0xff]
    %v200 = vld [vmem:[#allocation3 + $0x368] sm:$0xff]
    %v201 = vld [vmem:[#allocation3 + $0x370] sm:$0xff]
    %v202 = vld [vmem:[#allocation3 + $0x378] sm:$0xff]
    %v203 = vld [vmem:[#allocation3 + $0x380] sm:$0xff]
    %v204 = vld [vmem:[#allocation3 + $0x388] sm:$0xff]
    %v205 = vld [vmem:[#allocation3 + $0x390] sm:$0xff]
    %v206 = vld [vmem:[#allocation3 + $0x398] sm:$0xff]
    %v207 = vld [vmem:[#allocation3 + $0x3a0] sm:$0xff]
    %v208 = vld [vmem:[#allocation3 + $0x3a8] sm:$0xff]
    %v209 = vld [vmem:[#allocation3 + $0x3b0] sm:$0xff]
    %v210 = vld [vmem:[#allocation3 + $0x3b8] sm:$0xff]
    %v211 = vld [vmem:[#allocation3 + $0x3c0] sm:$0xff]
    %v212 = vld [vmem:[#allocation3 + $0x3c8] sm:$0xff]
    %v213 = vld [vmem:[#allocation3 + $0x3d0] sm:$0xff]
    %v214 = vld [vmem:[#allocation3 + $0x3d8] sm:$0xff]
    %v215 = vld [vmem:[#allocation3 + $0x3e0] sm:$0xff]
    %v216 = vld [vmem:[#allocation3 + $0x3e8] sm:$0xff]
    %v217 = vld [vmem:[#allocation3 + $0x3f0] sm:$0xff]
    %v218 = vld [vmem:[#allocation3 + $0x3f8] sm:$0xff]
    %v347 = vcombine.low %v91, %v93
    %v348 = vcombine.high %v91, %v93
    %v349 = vcombine.low %v95, %v97
    %v350 = vcombine.high %v95, %v97
    %v352 = vunpack.c.l.s4 1983009808
    %v353 = vunpack.c.0.s8 %v352
    %v354 = vlaneseq
    %v355 = vshrl.u32 %v354, 7
    %v356 = vsub.s32 %v353, %v355
    %v357 = vrot.slane %v347, %v356
    %v359 = vunpack.c.l.s4 1983009808
    %v360 = vunpack.c.0.s8 %v359
    %v361 = vlaneseq
    %v362 = vshrl.u32 %v361, 7
    %v363 = vsub.s32 %v360, %v362
    %v364 = vrot.slane %v348, %v363
    %v366 = vunpack.c.l.s4 1983009808
    %v367 = vunpack.c.0.s8 %v366
    %v368 = vlaneseq
    %v369 = vshrl.u32 %v368, 7
    %v370 = vsub.s32 %v367, %v369
    %v371 = vrot.slane %v349, %v370
    %v373 = vunpack.c.l.s4 1983009808
    %v374 = vunpack.c.0.s8 %v373
    %v375 = vlaneseq
    %v376 = vshrl.u32 %v375, 7
    %v377 = vsub.s32 %v374, %v376
    %v378 = vrot.slane %v350, %v377
    %v379 = vcombine.low %v357, %v371
    %v380 = vcombine.high %v357, %v371
    %v381 = vcombine.low %v364, %v378
    %v382 = vcombine.high %v364, %v378
    %v383 = vcombine.low %v92, %v94
    %v384 = vcombine.high %v92, %v94
    %v385 = vcombine.low %v96, %v98
    %v386 = vcombine.high %v96, %v98
    %v388 = vunpack.c.l.s4 1983009808
    %v389 = vunpack.c.0.s8 %v388
    %v390 = vlaneseq
    %v391 = vshrl.u32 %v390, 7
    %v392 = vsub.s32 %v389, %v391
    %v393 = vrot.slane %v383, %v392
    %v395 = vunpack.c.l.s4 1983009808
    %v396 = vunpack.c.0.s8 %v395
    %v397 = vlaneseq
    %v398 = vshrl.u32 %v397, 7
    %v399 = vsub.s32 %v396, %v398
    %v400 = vrot.slane %v384, %v399
    %v402 = vunpack.c.l.s4 1983009808
    %v403 = vunpack.c.0.s8 %v402
    %v404 = vlaneseq
    %v405 = vshrl.u32 %v404, 7
    %v406 = vsub.s32 %v403, %v405
    %v407 = vrot.slane %v385, %v406
    %v409 = vunpack.c.l.s4 1983009808
    %v410 = vunpack.c.0.s8 %v409
    %v411 = vlaneseq
    %v412 = vshrl.u32 %v411, 7
    %v413 = vsub.s32 %v410, %v412
    %v414 = vrot.slane %v386, %v413
    %v415 = vcombine.low %v393, %v407
    %v416 = vcombine.high %v393, %v407
    %v417 = vcombine.low %v400, %v414
    %v418 = vcombine.high %v400, %v414
    %v419 = vcombine.low %v99, %v101
    %v420 = vcombine.high %v99, %v101
    %v421 = vcombine.low %v103, %v105
    %v422 = vcombine.high %v103, %v105
    %v424 = vunpack.c.l.s4 1983009808
    %v425 = vunpack.c.0.s8 %v424
    %v426 = vlaneseq
    %v427 = vshrl.u32 %v426, 7
    %v428 = vsub.s32 %v425, %v427
    %v429 = vrot.slane %v419, %v428
    %v431 = vunpack.c.l.s4 1983009808
    %v432 = vunpack.c.0.s8 %v431
    %v433 = vlaneseq
    %v434 = vshrl.u32 %v433, 7
    %v435 = vsub.s32 %v432, %v434
    %v436 = vrot.slane %v420, %v435
    %v438 = vunpack.c.l.s4 1983009808
    %v439 = vunpack.c.0.s8 %v438
    %v440 = vlaneseq
    %v441 = vshrl.u32 %v440, 7
    %v442 = vsub.s32 %v439, %v441
    %v443 = vrot.slane %v421, %v442
    %v445 = vunpack.c.l.s4 1983009808
    %v446 = vunpack.c.0.s8 %v445
    %v447 = vlaneseq
    %v448 = vshrl.u32 %v447, 7
    %v449 = vsub.s32 %v446, %v448
    %v450 = vrot.slane %v422, %v449
    %v451 = vcombine.low %v429, %v443
    %v452 = vcombine.high %v429, %v443
    %v453 = vcombine.low %v436, %v450
    %v454 = vcombine.high %v436, %v450
    %v455 = vcombine.low %v100, %v102
    %v456 = vcombine.high %v100, %v102
    %v457 = vcombine.low %v104, %v106
    %v458 = vcombine.high %v104, %v106
    %v460 = vunpack.c.l.s4 1983009808
    %v461 = vunpack.c.0.s8 %v460
    %v462 = vlaneseq
    %v463 = vshrl.u32 %v462, 7
    %v464 = vsub.s32 %v461, %v463
    %v465 = vrot.slane %v455, %v464
    %v467 = vunpack.c.l.s4 1983009808
    %v468 = vunpack.c.0.s8 %v467
    %v469 = vlaneseq
    %v470 = vshrl.u32 %v469, 7
    %v471 = vsub.s32 %v468, %v470
    %v472 = vrot.slane %v456, %v471
    %v474 = vunpack.c.l.s4 1983009808
    %v475 = vunpack.c.0.s8 %v474
    %v476 = vlaneseq
    %v477 = vshrl.u32 %v476, 7
    %v478 = vsub.s32 %v475, %v477
    %v479 = vrot.slane %v457, %v478
    %v481 = vunpack.c.l.s4 1983009808
    %v482 = vunpack.c.0.s8 %v481
    %v483 = vlaneseq
    %v484 = vshrl.u32 %v483, 7
    %v485 = vsub.s32 %v482, %v484
    %v486 = vrot.slane %v458, %v485
    %v487 = vcombine.low %v465, %v479
    %v488 = vcombine.high %v465, %v479
    %v489 = vcombine.low %v472, %v486
    %v490 = vcombine.high %v472, %v486
    %v491 = vcombine.low %v107, %v109
    %v492 = vcombine.high %v107, %v109
    %v493 = vcombine.low %v111, %v113
    %v494 = vcombine.high %v111, %v113
    %v496 = vunpack.c.l.s4 1983009808
    %v497 = vunpack.c.0.s8 %v496
    %v498 = vlaneseq
    %v499 = vshrl.u32 %v498, 7
    %v500 = vsub.s32 %v497, %v499
    %v501 = vrot.slane %v491, %v500
    %v503 = vunpack.c.l.s4 1983009808
    %v504 = vunpack.c.0.s8 %v503
    %v505 = vlaneseq
    %v506 = vshrl.u32 %v505, 7
    %v507 = vsub.s32 %v504, %v506
    %v508 = vrot.slane %v492, %v507
    %v510 = vunpack.c.l.s4 1983009808
    %v511 = vunpack.c.0.s8 %v510
    %v512 = vlaneseq
    %v513 = vshrl.u32 %v512, 7
    %v514 = vsub.s32 %v511, %v513
    %v515 = vrot.slane %v493, %v514
    %v517 = vunpack.c.l.s4 1983009808
    %v518 = vunpack.c.0.s8 %v517
    %v519 = vlaneseq
    %v520 = vshrl.u32 %v519, 7
    %v521 = vsub.s32 %v518, %v520
    %v522 = vrot.slane %v494, %v521
    %v523 = vcombine.low %v501, %v515
    %v524 = vcombine.high %v501, %v515
    %v525 = vcombine.low %v508, %v522
    %v526 = vcombine.high %v508, %v522
    %v527 = vcombine.low %v108, %v110
    %v528 = vcombine.high %v108, %v110
    %v529 = vcombine.low %v112, %v114
    %v530 = vcombine.high %v112, %v114
    %v532 = vunpack.c.l.s4 1983009808
    %v533 = vunpack.c.0.s8 %v532
    %v534 = vlaneseq
    %v535 = vshrl.u32 %v534, 7
    %v536 = vsub.s32 %v533, %v535
    %v537 = vrot.slane %v527, %v536
    %v539 = vunpack.c.l.s4 1983009808
    %v540 = vunpack.c.0.s8 %v539
    %v541 = vlaneseq
    %v542 = vshrl.u32 %v541, 7
    %v543 = vsub.s32 %v540, %v542
    %v544 = vrot.slane %v528, %v543
    %v546 = vunpack.c.l.s4 1983009808
    %v547 = vunpack.c.0.s8 %v546
    %v548 = vlaneseq
    %v549 = vshrl.u32 %v548, 7
    %v550 = vsub.s32 %v547, %v549
    %v551 = vrot.slane %v529, %v550
    %v553 = vunpack.c.l.s4 1983009808
    %v554 = vunpack.c.0.s8 %v553
    %v555 = vlaneseq
    %v556 = vshrl.u32 %v555, 7
    %v557 = vsub.s32 %v554, %v556
    %v558 = vrot.slane %v530, %v557
    %v559 = vcombine.low %v537, %v551
    %v560 = vcombine.high %v537, %v551
    %v561 = vcombine.low %v544, %v558
    %v562 = vcombine.high %v544, %v558
    %v563 = vcombine.low %v115, %v117
    %v564 = vcombine.high %v115, %v117
    %v565 = vcombine.low %v119, %v121
    %v566 = vcombine.high %v119, %v121
    %v568 = vunpack.c.l.s4 1983009808
    %v569 = vunpack.c.0.s8 %v568
    %v570 = vlaneseq
    %v571 = vshrl.u32 %v570, 7
    %v572 = vsub.s32 %v569, %v571
    %v573 = vrot.slane %v563, %v572
    %v575 = vunpack.c.l.s4 1983009808
    %v576 = vunpack.c.0.s8 %v575
    %v577 = vlaneseq
    %v578 = vshrl.u32 %v577, 7
    %v579 = vsub.s32 %v576, %v578
    %v580 = vrot.slane %v564, %v579
    %v582 = vunpack.c.l.s4 1983009808
    %v583 = vunpack.c.0.s8 %v582
    %v584 = vlaneseq
    %v585 = vshrl.u32 %v584, 7
    %v586 = vsub.s32 %v583, %v585
    %v587 = vrot.slane %v565, %v586
    %v589 = vunpack.c.l.s4 1983009808
    %v590 = vunpack.c.0.s8 %v589
    %v591 = vlaneseq
    %v592 = vshrl.u32 %v591, 7
    %v593 = vsub.s32 %v590, %v592
    %v594 = vrot.slane %v566, %v593
    %v595 = vcombine.low %v573, %v587
    %v596 = vcombine.high %v573, %v587
    %v597 = vcombine.low %v580, %v594
    %v598 = vcombine.high %v580, %v594
    %v599 = vcombine.low %v116, %v118
    %v600 = vcombine.high %v116, %v118
    %v601 = vcombine.low %v120, %v122
    %v602 = vcombine.high %v120, %v122
    %v604 = vunpack.c.l.s4 1983009808
    %v605 = vunpack.c.0.s8 %v604
    %v606 = vlaneseq
    %v607 = vshrl.u32 %v606, 7
    %v608 = vsub.s32 %v605, %v607
    %v609 = vrot.slane %v599, %v608
    %v611 = vunpack.c.l.s4 1983009808
    %v612 = vunpack.c.0.s8 %v611
    %v613 = vlaneseq
    %v614 = vshrl.u32 %v613, 7
    %v615 = vsub.s32 %v612, %v614
    %v616 = vrot.slane %v600, %v615
    %v618 = vunpack.c.l.s4 1983009808
    %v619 = vunpack.c.0.s8 %v618
    %v620 = vlaneseq
    %v621 = vshrl.u32 %v620, 7
    %v622 = vsub.s32 %v619, %v621
    %v623 = vrot.slane %v601, %v622
    %v625 = vunpack.c.l.s4 1983009808
    %v626 = vunpack.c.0.s8 %v625
    %v627 = vlaneseq
    %v628 = vshrl.u32 %v627, 7
    %v629 = vsub.s32 %v626, %v628
    %v630 = vrot.slane %v602, %v629
    %v631 = vcombine.low %v609, %v623
    %v632 = vcombine.high %v609, %v623
    %v633 = vcombine.low %v616, %v630
    %v634 = vcombine.high %v616, %v630
    %v635 = vcombine.low %v123, %v125
    %v636 = vcombine.high %v123, %v125
    %v637 = vcombine.low %v127, %v129
    %v638 = vcombine.high %v127, %v129
    %v640 = vunpack.c.l.s4 1983009808
    %v641 = vunpack.c.0.s8 %v640
    %v642 = vlaneseq
    %v643 = vshrl.u32 %v642, 7
    %v644 = vsub.s32 %v641, %v643
    %v645 = vrot.slane %v635, %v644
    %v647 = vunpack.c.l.s4 1983009808
    %v648 = vunpack.c.0.s8 %v647
    %v649 = vlaneseq
    %v650 = vshrl.u32 %v649, 7
    %v651 = vsub.s32 %v648, %v650
    %v652 = vrot.slane %v636, %v651
    %v654 = vunpack.c.l.s4 1983009808
    %v655 = vunpack.c.0.s8 %v654
    %v656 = vlaneseq
    %v657 = vshrl.u32 %v656, 7
    %v658 = vsub.s32 %v655, %v657
    %v659 = vrot.slane %v637, %v658
    %v661 = vunpack.c.l.s4 1983009808
    %v662 = vunpack.c.0.s8 %v661
    %v663 = vlaneseq
    %v664 = vshrl.u32 %v663, 7
    %v665 = vsub.s32 %v662, %v664
    %v666 = vrot.slane %v638, %v665
    %v667 = vcombine.low %v645, %v659
    %v668 = vcombine.high %v645, %v659
    %v669 = vcombine.low %v652, %v666
    %v670 = vcombine.high %v652, %v666
    %v671 = vcombine.low %v124, %v126
    %v672 = vcombine.high %v124, %v126
    %v673 = vcombine.low %v128, %v130
    %v674 = vcombine.high %v128, %v130
    %v676 = vunpack.c.l.s4 1983009808
    %v677 = vunpack.c.0.s8 %v676
    %v678 = vlaneseq
    %v679 = vshrl.u32 %v678, 7
    %v680 = vsub.s32 %v677, %v679
    %v681 = vrot.slane %v671, %v680
    %v683 = vunpack.c.l.s4 1983009808
    %v684 = vunpack.c.0.s8 %v683
    %v685 = vlaneseq
    %v686 = vshrl.u32 %v685, 7
    %v687 = vsub.s32 %v684, %v686
    %v688 = vrot.slane %v672, %v687
    %v690 = vunpack.c.l.s4 1983009808
    %v691 = vunpack.c.0.s8 %v690
    %v692 = vlaneseq
    %v693 = vshrl.u32 %v692, 7
    %v694 = vsub.s32 %v691, %v693
    %v695 = vrot.slane %v673, %v694
    %v697 = vunpack.c.l.s4 1983009808
    %v698 = vunpack.c.0.s8 %v697
    %v699 = vlaneseq
    %v700 = vshrl.u32 %v699, 7
    %v701 = vsub.s32 %v698, %v700
    %v702 = vrot.slane %v674, %v701
    %v703 = vcombine.low %v681, %v695
    %v704 = vcombine.high %v681, %v695
    %v705 = vcombine.low %v688, %v702
    %v706 = vcombine.high %v688, %v702
    %v707 = vcombine.low %v131, %v133
    %v708 = vcombine.high %v131, %v133
    %v709 = vcombine.low %v135, %v137
    %v710 = vcombine.high %v135, %v137
    %v712 = vunpack.c.l.s4 1983009808
    %v713 = vunpack.c.0.s8 %v712
    %v714 = vlaneseq
    %v715 = vshrl.u32 %v714, 7
    %v716 = vsub.s32 %v713, %v715
    %v717 = vrot.slane %v707, %v716
    %v719 = vunpack.c.l.s4 1983009808
    %v720 = vunpack.c.0.s8 %v719
    %v721 = vlaneseq
    %v722 = vshrl.u32 %v721, 7
    %v723 = vsub.s32 %v720, %v722
    %v724 = vrot.slane %v708, %v723
    %v726 = vunpack.c.l.s4 1983009808
    %v727 = vunpack.c.0.s8 %v726
    %v728 = vlaneseq
    %v729 = vshrl.u32 %v728, 7
    %v730 = vsub.s32 %v727, %v729
    %v731 = vrot.slane %v709, %v730
    %v733 = vunpack.c.l.s4 1983009808
    %v734 = vunpack.c.0.s8 %v733
    %v735 = vlaneseq
    %v736 = vshrl.u32 %v735, 7
    %v737 = vsub.s32 %v734, %v736
    %v738 = vrot.slane %v710, %v737
    %v739 = vcombine.low %v717, %v731
    %v740 = vcombine.high %v717, %v731
    %v741 = vcombine.low %v724, %v738
    %v742 = vcombine.high %v724, %v738
    %v743 = vcombine.low %v132, %v134
    %v744 = vcombine.high %v132, %v134
    %v745 = vcombine.low %v136, %v138
    %v746 = vcombine.high %v136, %v138
    %v748 = vunpack.c.l.s4 1983009808
    %v749 = vunpack.c.0.s8 %v748
    %v750 = vlaneseq
    %v751 = vshrl.u32 %v750, 7
    %v752 = vsub.s32 %v749, %v751
    %v753 = vrot.slane %v743, %v752
    %v755 = vunpack.c.l.s4 1983009808
    %v756 = vunpack.c.0.s8 %v755
    %v757 = vlaneseq
    %v758 = vshrl.u32 %v757, 7
    %v759 = vsub.s32 %v756, %v758
    %v760 = vrot.slane %v744, %v759
    %v762 = vunpack.c.l.s4 1983009808
    %v763 = vunpack.c.0.s8 %v762
    %v764 = vlaneseq
    %v765 = vshrl.u32 %v764, 7
    %v766 = vsub.s32 %v763, %v765
    %v767 = vrot.slane %v745, %v766
    %v769 = vunpack.c.l.s4 1983009808
    %v770 = vunpack.c.0.s8 %v769
    %v771 = vlaneseq
    %v772 = vshrl.u32 %v771, 7
    %v773 = vsub.s32 %v770, %v772
    %v774 = vrot.slane %v746, %v773
    %v775 = vcombine.low %v753, %v767
    %v776 = vcombine.high %v753, %v767
    %v777 = vcombine.low %v760, %v774
    %v778 = vcombine.high %v760, %v774
    %v779 = vcombine.low %v139, %v141
    %v780 = vcombine.high %v139, %v141
    %v781 = vcombine.low %v143, %v145
    %v782 = vcombine.high %v143, %v145
    %v784 = vunpack.c.l.s4 1983009808
    %v785 = vunpack.c.0.s8 %v784
    %v786 = vlaneseq
    %v787 = vshrl.u32 %v786, 7
    %v788 = vsub.s32 %v785, %v787
    %v789 = vrot.slane %v779, %v788
    %v791 = vunpack.c.l.s4 1983009808
    %v792 = vunpack.c.0.s8 %v791
    %v793 = vlaneseq
    %v794 = vshrl.u32 %v793, 7
    %v795 = vsub.s32 %v792, %v794
    %v796 = vrot.slane %v780, %v795
    %v798 = vunpack.c.l.s4 1983009808
    %v799 = vunpack.c.0.s8 %v798
    %v800 = vlaneseq
    %v801 = vshrl.u32 %v800, 7
    %v802 = vsub.s32 %v799, %v801
    %v803 = vrot.slane %v781, %v802
    %v805 = vunpack.c.l.s4 1983009808
    %v806 = vunpack.c.0.s8 %v805
    %v807 = vlaneseq
    %v808 = vshrl.u32 %v807, 7
    %v809 = vsub.s32 %v806, %v808
    %v810 = vrot.slane %v782, %v809
    %v811 = vcombine.low %v789, %v803
    %v812 = vcombine.high %v789, %v803
    %v813 = vcombine.low %v796, %v810
    %v814 = vcombine.high %v796, %v810
    %v815 = vcombine.low %v140, %v142
    %v816 = vcombine.high %v140, %v142
    %v817 = vcombine.low %v144, %v146
    %v818 = vcombine.high %v144, %v146
    %v820 = vunpack.c.l.s4 1983009808
    %v821 = vunpack.c.0.s8 %v820
    %v822 = vlaneseq
    %v823 = vshrl.u32 %v822, 7
    %v824 = vsub.s32 %v821, %v823
    %v825 = vrot.slane %v815, %v824
    %v827 = vunpack.c.l.s4 1983009808
    %v828 = vunpack.c.0.s8 %v827
    %v829 = vlaneseq
    %v830 = vshrl.u32 %v829, 7
    %v831 = vsub.s32 %v828, %v830
    %v832 = vrot.slane %v816, %v831
    %v834 = vunpack.c.l.s4 1983009808
    %v835 = vunpack.c.0.s8 %v834
    %v836 = vlaneseq
    %v837 = vshrl.u32 %v836, 7
    %v838 = vsub.s32 %v835, %v837
    %v839 = vrot.slane %v817, %v838
    %v841 = vunpack.c.l.s4 1983009808
    %v842 = vunpack.c.0.s8 %v841
    %v843 = vlaneseq
    %v844 = vshrl.u32 %v843, 7
    %v845 = vsub.s32 %v842, %v844
    %v846 = vrot.slane %v818, %v845
    %v847 = vcombine.low %v825, %v839
    %v848 = vcombine.high %v825, %v839
    %v849 = vcombine.low %v832, %v846
    %v850 = vcombine.high %v832, %v846
    %v851 = vcombine.low %v147, %v149
    %v852 = vcombine.high %v147, %v149
    %v853 = vcombine.low %v151, %v153
    %v854 = vcombine.high %v151, %v153
    %v856 = vunpack.c.l.s4 1983009808
    %v857 = vunpack.c.0.s8 %v856
    %v858 = vlaneseq
    %v859 = vshrl.u32 %v858, 7
    %v860 = vsub.s32 %v857, %v859
    %v861 = vrot.slane %v851, %v860
    %v863 = vunpack.c.l.s4 1983009808
    %v864 = vunpack.c.0.s8 %v863
    %v865 = vlaneseq
    %v866 = vshrl.u32 %v865, 7
    %v867 = vsub.s32 %v864, %v866
    %v868 = vrot.slane %v852, %v867
    %v870 = vunpack.c.l.s4 1983009808
    %v871 = vunpack.c.0.s8 %v870
    %v872 = vlaneseq
    %v873 = vshrl.u32 %v872, 7
    %v874 = vsub.s32 %v871, %v873
    %v875 = vrot.slane %v853, %v874
    %v877 = vunpack.c.l.s4 1983009808
    %v878 = vunpack.c.0.s8 %v877
    %v879 = vlaneseq
    %v880 = vshrl.u32 %v879, 7
    %v881 = vsub.s32 %v878, %v880
    %v882 = vrot.slane %v854, %v881
    %v883 = vcombine.low %v861, %v875
    %v884 = vcombine.high %v861, %v875
    %v885 = vcombine.low %v868, %v882
    %v886 = vcombine.high %v868, %v882
    %v887 = vcombine.low %v148, %v150
    %v888 = vcombine.high %v148, %v150
    %v889 = vcombine.low %v152, %v154
    %v890 = vcombine.high %v152, %v154
    %v892 = vunpack.c.l.s4 1983009808
    %v893 = vunpack.c.0.s8 %v892
    %v894 = vlaneseq
    %v895 = vshrl.u32 %v894, 7
    %v896 = vsub.s32 %v893, %v895
    %v897 = vrot.slane %v887, %v896
    %v899 = vunpack.c.l.s4 1983009808
    %v900 = vunpack.c.0.s8 %v899
    %v901 = vlaneseq
    %v902 = vshrl.u32 %v901, 7
    %v903 = vsub.s32 %v900, %v902
    %v904 = vrot.slane %v888, %v903
    %v906 = vunpack.c.l.s4 1983009808
    %v907 = vunpack.c.0.s8 %v906
    %v908 = vlaneseq
    %v909 = vshrl.u32 %v908, 7
    %v910 = vsub.s32 %v907, %v909
    %v911 = vrot.slane %v889, %v910
    %v913 = vunpack.c.l.s4 1983009808
    %v914 = vunpack.c.0.s8 %v913
    %v915 = vlaneseq
    %v916 = vshrl.u32 %v915, 7
    %v917 = vsub.s32 %v914, %v916
    %v918 = vrot.slane %v890, %v917
    %v919 = vcombine.low %v897, %v911
    %v920 = vcombine.high %v897, %v911
    %v921 = vcombine.low %v904, %v918
    %v922 = vcombine.high %v904, %v918
    %v923 = vcombine.low %v155, %v157
    %v924 = vcombine.high %v155, %v157
    %v925 = vcombine.low %v159, %v161
    %v926 = vcombine.high %v159, %v161
    %v928 = vunpack.c.l.s4 1983009808
    %v929 = vunpack.c.0.s8 %v928
    %v930 = vlaneseq
    %v931 = vshrl.u32 %v930, 7
    %v932 = vsub.s32 %v929, %v931
    %v933 = vrot.slane %v923, %v932
    %v935 = vunpack.c.l.s4 1983009808
    %v936 = vunpack.c.0.s8 %v935
    %v937 = vlaneseq
    %v938 = vshrl.u32 %v937, 7
    %v939 = vsub.s32 %v936, %v938
    %v940 = vrot.slane %v924, %v939
    %v942 = vunpack.c.l.s4 1983009808
    %v943 = vunpack.c.0.s8 %v942
    %v944 = vlaneseq
    %v945 = vshrl.u32 %v944, 7
    %v946 = vsub.s32 %v943, %v945
    %v947 = vrot.slane %v925, %v946
    %v949 = vunpack.c.l.s4 1983009808
    %v950 = vunpack.c.0.s8 %v949
    %v951 = vlaneseq
    %v952 = vshrl.u32 %v951, 7
    %v953 = vsub.s32 %v950, %v952
    %v954 = vrot.slane %v926, %v953
    %v955 = vcombine.low %v933, %v947
    %v956 = vcombine.high %v933, %v947
    %v957 = vcombine.low %v940, %v954
    %v958 = vcombine.high %v940, %v954
    %v959 = vcombine.low %v156, %v158
    %v960 = vcombine.high %v156, %v158
    %v961 = vcombine.low %v160, %v162
    %v962 = vcombine.high %v160, %v162
    %v964 = vunpack.c.l.s4 1983009808
    %v965 = vunpack.c.0.s8 %v964
    %v966 = vlaneseq
    %v967 = vshrl.u32 %v966, 7
    %v968 = vsub.s32 %v965, %v967
    %v969 = vrot.slane %v959, %v968
    %v971 = vunpack.c.l.s4 1983009808
    %v972 = vunpack.c.0.s8 %v971
    %v973 = vlaneseq
    %v974 = vshrl.u32 %v973, 7
    %v975 = vsub.s32 %v972, %v974
    %v976 = vrot.slane %v960, %v975
    %v978 = vunpack.c.l.s4 1983009808
    %v979 = vunpack.c.0.s8 %v978
    %v980 = vlaneseq
    %v981 = vshrl.u32 %v980, 7
    %v982 = vsub.s32 %v979, %v981
    %v983 = vrot.slane %v961, %v982
    %v985 = vunpack.c.l.s4 1983009808
    %v986 = vunpack.c.0.s8 %v985
    %v987 = vlaneseq
    %v988 = vshrl.u32 %v987, 7
    %v989 = vsub.s32 %v986, %v988
    %v990 = vrot.slane %v962, %v989
    %v991 = vcombine.low %v969, %v983
    %v992 = vcombine.high %v969, %v983
    %v993 = vcombine.low %v976, %v990
    %v994 = vcombine.high %v976, %v990
    %v995 = vcombine.low %v163, %v165
    %v996 = vcombine.high %v163, %v165
    %v997 = vcombine.low %v167, %v169
    %v998 = vcombine.high %v167, %v169
    %v1000 = vunpack.c.l.s4 1983009808
    %v1001 = vunpack.c.0.s8 %v1000
    %v1002 = vlaneseq
    %v1003 = vshrl.u32 %v1002, 7
    %v1004 = vsub.s32 %v1001, %v1003
    %v1005 = vrot.slane %v995, %v1004
    %v1007 = vunpack.c.l.s4 1983009808
    %v1008 = vunpack.c.0.s8 %v1007
    %v1009 = vlaneseq
    %v1010 = vshrl.u32 %v1009, 7
    %v1011 = vsub.s32 %v1008, %v1010
    %v1012 = vrot.slane %v996, %v1011
    %v1014 = vunpack.c.l.s4 1983009808
    %v1015 = vunpack.c.0.s8 %v1014
    %v1016 = vlaneseq
    %v1017 = vshrl.u32 %v1016, 7
    %v1018 = vsub.s32 %v1015, %v1017
    %v1019 = vrot.slane %v997, %v1018
    %v1021 = vunpack.c.l.s4 1983009808
    %v1022 = vunpack.c.0.s8 %v1021
    %v1023 = vlaneseq
    %v1024 = vshrl.u32 %v1023, 7
    %v1025 = vsub.s32 %v1022, %v1024
    %v1026 = vrot.slane %v998, %v1025
    %v1027 = vcombine.low %v1005, %v1019
    %v1028 = vcombine.high %v1005, %v1019
    %v1029 = vcombine.low %v1012, %v1026
    %v1030 = vcombine.high %v1012, %v1026
    %v1031 = vcombine.low %v164, %v166
    %v1032 = vcombine.high %v164, %v166
    %v1033 = vcombine.low %v168, %v170
    %v1034 = vcombine.high %v168, %v170
    %v1036 = vunpack.c.l.s4 1983009808
    %v1037 = vunpack.c.0.s8 %v1036
    %v1038 = vlaneseq
    %v1039 = vshrl.u32 %v1038, 7
    %v1040 = vsub.s32 %v1037, %v1039
    %v1041 = vrot.slane %v1031, %v1040
    %v1043 = vunpack.c.l.s4 1983009808
    %v1044 = vunpack.c.0.s8 %v1043
    %v1045 = vlaneseq
    %v1046 = vshrl.u32 %v1045, 7
    %v1047 = vsub.s32 %v1044, %v1046
    %v1048 = vrot.slane %v1032, %v1047
    %v1050 = vunpack.c.l.s4 1983009808
    %v1051 = vunpack.c.0.s8 %v1050
    %v1052 = vlaneseq
    %v1053 = vshrl.u32 %v1052, 7
    %v1054 = vsub.s32 %v1051, %v1053
    %v1055 = vrot.slane %v1033, %v1054
    %v1057 = vunpack.c.l.s4 1983009808
    %v1058 = vunpack.c.0.s8 %v1057
    %v1059 = vlaneseq
    %v1060 = vshrl.u32 %v1059, 7
    %v1061 = vsub.s32 %v1058, %v1060
    %v1062 = vrot.slane %v1034, %v1061
    %v1063 = vcombine.low %v1041, %v1055
    %v1064 = vcombine.high %v1041, %v1055
    %v1065 = vcombine.low %v1048, %v1062
    %v1066 = vcombine.high %v1048, %v1062
    %v1067 = vcombine.low %v171, %v173
    %v1068 = vcombine.high %v171, %v173
    %v1069 = vcombine.low %v175, %v177
    %v1070 = vcombine.high %v175, %v177
    %v1072 = vunpack.c.l.s4 1983009808
    %v1073 = vunpack.c.0.s8 %v1072
    %v1074 = vlaneseq
    %v1075 = vshrl.u32 %v1074, 7
    %v1076 = vsub.s32 %v1073, %v1075
    %v1077 = vrot.slane %v1067, %v1076
    %v1079 = vunpack.c.l.s4 1983009808
    %v1080 = vunpack.c.0.s8 %v1079
    %v1081 = vlaneseq
    %v1082 = vshrl.u32 %v1081, 7
    %v1083 = vsub.s32 %v1080, %v1082
    %v1084 = vrot.slane %v1068, %v1083
    %v1086 = vunpack.c.l.s4 1983009808
    %v1087 = vunpack.c.0.s8 %v1086
    %v1088 = vlaneseq
    %v1089 = vshrl.u32 %v1088, 7
    %v1090 = vsub.s32 %v1087, %v1089
    %v1091 = vrot.slane %v1069, %v1090
    %v1093 = vunpack.c.l.s4 1983009808
    %v1094 = vunpack.c.0.s8 %v1093
    %v1095 = vlaneseq
    %v1096 = vshrl.u32 %v1095, 7
    %v1097 = vsub.s32 %v1094, %v1096
    %v1098 = vrot.slane %v1070, %v1097
    %v1099 = vcombine.low %v1077, %v1091
    %v1100 = vcombine.high %v1077, %v1091
    %v1101 = vcombine.low %v1084, %v1098
    %v1102 = vcombine.high %v1084, %v1098
    %v1103 = vcombine.low %v172, %v174
    %v1104 = vcombine.high %v172, %v174
    %v1105 = vcombine.low %v176, %v178
    %v1106 = vcombine.high %v176, %v178
    %v1108 = vunpack.c.l.s4 1983009808
    %v1109 = vunpack.c.0.s8 %v1108
    %v1110 = vlaneseq
    %v1111 = vshrl.u32 %v1110, 7
    %v1112 = vsub.s32 %v1109, %v1111
    %v1113 = vrot.slane %v1103, %v1112
    %v1115 = vunpack.c.l.s4 1983009808
    %v1116 = vunpack.c.0.s8 %v1115
    %v1117 = vlaneseq
    %v1118 = vshrl.u32 %v1117, 7
    %v1119 = vsub.s32 %v1116, %v1118
    %v1120 = vrot.slane %v1104, %v1119
    %v1122 = vunpack.c.l.s4 1983009808
    %v1123 = vunpack.c.0.s8 %v1122
    %v1124 = vlaneseq
    %v1125 = vshrl.u32 %v1124, 7
    %v1126 = vsub.s32 %v1123, %v1125
    %v1127 = vrot.slane %v1105, %v1126
    %v1129 = vunpack.c.l.s4 1983009808
    %v1130 = vunpack.c.0.s8 %v1129
    %v1131 = vlaneseq
    %v1132 = vshrl.u32 %v1131, 7
    %v1133 = vsub.s32 %v1130, %v1132
    %v1134 = vrot.slane %v1106, %v1133
    %v1135 = vcombine.low %v1113, %v1127
    %v1136 = vcombine.high %v1113, %v1127
    %v1137 = vcombine.low %v1120, %v1134
    %v1138 = vcombine.high %v1120, %v1134
    %v1139 = vcombine.low %v179, %v181
    %v1140 = vcombine.high %v179, %v181
    %v1141 = vcombine.low %v183, %v185
    %v1142 = vcombine.high %v183, %v185
    %v1144 = vunpack.c.l.s4 1983009808
    %v1145 = vunpack.c.0.s8 %v1144
    %v1146 = vlaneseq
    %v1147 = vshrl.u32 %v1146, 7
    %v1148 = vsub.s32 %v1145, %v1147
    %v1149 = vrot.slane %v1139, %v1148
    %v1151 = vunpack.c.l.s4 1983009808
    %v1152 = vunpack.c.0.s8 %v1151
    %v1153 = vlaneseq
    %v1154 = vshrl.u32 %v1153, 7
    %v1155 = vsub.s32 %v1152, %v1154
    %v1156 = vrot.slane %v1140, %v1155
    %v1158 = vunpack.c.l.s4 1983009808
    %v1159 = vunpack.c.0.s8 %v1158
    %v1160 = vlaneseq
    %v1161 = vshrl.u32 %v1160, 7
    %v1162 = vsub.s32 %v1159, %v1161
    %v1163 = vrot.slane %v1141, %v1162
    %v1165 = vunpack.c.l.s4 1983009808
    %v1166 = vunpack.c.0.s8 %v1165
    %v1167 = vlaneseq
    %v1168 = vshrl.u32 %v1167, 7
    %v1169 = vsub.s32 %v1166, %v1168
    %v1170 = vrot.slane %v1142, %v1169
    %v1171 = vcombine.low %v1149, %v1163
    %v1172 = vcombine.high %v1149, %v1163
    %v1173 = vcombine.low %v1156, %v1170
    %v1174 = vcombine.high %v1156, %v1170
    %v1175 = vcombine.low %v180, %v182
    %v1176 = vcombine.high %v180, %v182
    %v1177 = vcombine.low %v184, %v186
    %v1178 = vcombine.high %v184, %v186
    %v1180 = vunpack.c.l.s4 1983009808
    %v1181 = vunpack.c.0.s8 %v1180
    %v1182 = vlaneseq
    %v1183 = vshrl.u32 %v1182, 7
    %v1184 = vsub.s32 %v1181, %v1183
    %v1185 = vrot.slane %v1175, %v1184
    %v1187 = vunpack.c.l.s4 1983009808
    %v1188 = vunpack.c.0.s8 %v1187
    %v1189 = vlaneseq
    %v1190 = vshrl.u32 %v1189, 7
    %v1191 = vsub.s32 %v1188, %v1190
    %v1192 = vrot.slane %v1176, %v1191
    %v1194 = vunpack.c.l.s4 1983009808
    %v1195 = vunpack.c.0.s8 %v1194
    %v1196 = vlaneseq
    %v1197 = vshrl.u32 %v1196, 7
    %v1198 = vsub.s32 %v1195, %v1197
    %v1199 = vrot.slane %v1177, %v1198
    %v1201 = vunpack.c.l.s4 1983009808
    %v1202 = vunpack.c.0.s8 %v1201
    %v1203 = vlaneseq
    %v1204 = vshrl.u32 %v1203, 7
    %v1205 = vsub.s32 %v1202, %v1204
    %v1206 = vrot.slane %v1178, %v1205
    %v1207 = vcombine.low %v1185, %v1199
    %v1208 = vcombine.high %v1185, %v1199
    %v1209 = vcombine.low %v1192, %v1206
    %v1210 = vcombine.high %v1192, %v1206
    %v1211 = vcombine.low %v187, %v189
    %v1212 = vcombine.high %v187, %v189
    %v1213 = vcombine.low %v191, %v193
    %v1214 = vcombine.high %v191, %v193
    %v1216 = vunpack.c.l.s4 1983009808
    %v1217 = vunpack.c.0.s8 %v1216
    %v1218 = vlaneseq
    %v1219 = vshrl.u32 %v1218, 7
    %v1220 = vsub.s32 %v1217, %v1219
    %v1221 = vrot.slane %v1211, %v1220
    %v1223 = vunpack.c.l.s4 1983009808
    %v1224 = vunpack.c.0.s8 %v1223
    %v1225 = vlaneseq
    %v1226 = vshrl.u32 %v1225, 7
    %v1227 = vsub.s32 %v1224, %v1226
    %v1228 = vrot.slane %v1212, %v1227
    %v1230 = vunpack.c.l.s4 1983009808
    %v1231 = vunpack.c.0.s8 %v1230
    %v1232 = vlaneseq
    %v1233 = vshrl.u32 %v1232, 7
    %v1234 = vsub.s32 %v1231, %v1233
    %v1235 = vrot.slane %v1213, %v1234
    %v1237 = vunpack.c.l.s4 1983009808
    %v1238 = vunpack.c.0.s8 %v1237
    %v1239 = vlaneseq
    %v1240 = vshrl.u32 %v1239, 7
    %v1241 = vsub.s32 %v1238, %v1240
    %v1242 = vrot.slane %v1214, %v1241
    %v1243 = vcombine.low %v1221, %v1235
    %v1244 = vcombine.high %v1221, %v1235
    %v1245 = vcombine.low %v1228, %v1242
    %v1246 = vcombine.high %v1228, %v1242
    %v1247 = vcombine.low %v188, %v190
    %v1248 = vcombine.high %v188, %v190
    %v1249 = vcombine.low %v192, %v194
    %v1250 = vcombine.high %v192, %v194
    %v1252 = vunpack.c.l.s4 1983009808
    %v1253 = vunpack.c.0.s8 %v1252
    %v1254 = vlaneseq
    %v1255 = vshrl.u32 %v1254, 7
    %v1256 = vsub.s32 %v1253, %v1255
    %v1257 = vrot.slane %v1247, %v1256
    %v1259 = vunpack.c.l.s4 1983009808
    %v1260 = vunpack.c.0.s8 %v1259
    %v1261 = vlaneseq
    %v1262 = vshrl.u32 %v1261, 7
    %v1263 = vsub.s32 %v1260, %v1262
    %v1264 = vrot.slane %v1248, %v1263
    %v1266 = vunpack.c.l.s4 1983009808
    %v1267 = vunpack.c.0.s8 %v1266
    %v1268 = vlaneseq
    %v1269 = vshrl.u32 %v1268, 7
    %v1270 = vsub.s32 %v1267, %v1269
    %v1271 = vrot.slane %v1249, %v1270
    %v1273 = vunpack.c.l.s4 1983009808
    %v1274 = vunpack.c.0.s8 %v1273
    %v1275 = vlaneseq
    %v1276 = vshrl.u32 %v1275, 7
    %v1277 = vsub.s32 %v1274, %v1276
    %v1278 = vrot.slane %v1250, %v1277
    %v1279 = vcombine.low %v1257, %v1271
    %v1280 = vcombine.high %v1257, %v1271
    %v1281 = vcombine.low %v1264, %v1278
    %v1282 = vcombine.high %v1264, %v1278
    %v1283 = vcombine.low %v195, %v197
    %v1284 = vcombine.high %v195, %v197
    %v1285 = vcombine.low %v199, %v201
    %v1286 = vcombine.high %v199, %v201
    %v1288 = vunpack.c.l.s4 1983009808
    %v1289 = vunpack.c.0.s8 %v1288
    %v1290 = vlaneseq
    %v1291 = vshrl.u32 %v1290, 7
    %v1292 = vsub.s32 %v1289, %v1291
    %v1293 = vrot.slane %v1283, %v1292
    %v1295 = vunpack.c.l.s4 1983009808
    %v1296 = vunpack.c.0.s8 %v1295
    %v1297 = vlaneseq
    %v1298 = vshrl.u32 %v1297, 7
    %v1299 = vsub.s32 %v1296, %v1298
    %v1300 = vrot.slane %v1284, %v1299
    %v1302 = vunpack.c.l.s4 1983009808
    %v1303 = vunpack.c.0.s8 %v1302
    %v1304 = vlaneseq
    %v1305 = vshrl.u32 %v1304, 7
    %v1306 = vsub.s32 %v1303, %v1305
    %v1307 = vrot.slane %v1285, %v1306
    %v1309 = vunpack.c.l.s4 1983009808
    %v1310 = vunpack.c.0.s8 %v1309
    %v1311 = vlaneseq
    %v1312 = vshrl.u32 %v1311, 7
    %v1313 = vsub.s32 %v1310, %v1312
    %v1314 = vrot.slane %v1286, %v1313
    %v1315 = vcombine.low %v1293, %v1307
    %v1316 = vcombine.high %v1293, %v1307
    %v1317 = vcombine.low %v1300, %v1314
    %v1318 = vcombine.high %v1300, %v1314
    %v1319 = vcombine.low %v196, %v198
    %v1320 = vcombine.high %v196, %v198
    %v1321 = vcombine.low %v200, %v202
    %v1322 = vcombine.high %v200, %v202
    %v1324 = vunpack.c.l.s4 1983009808
    %v1325 = vunpack.c.0.s8 %v1324
    %v1326 = vlaneseq
    %v1327 = vshrl.u32 %v1326, 7
    %v1328 = vsub.s32 %v1325, %v1327
    %v1329 = vrot.slane %v1319, %v1328
    %v1331 = vunpack.c.l.s4 1983009808
    %v1332 = vunpack.c.0.s8 %v1331
    %v1333 = vlaneseq
    %v1334 = vshrl.u32 %v1333, 7
    %v1335 = vsub.s32 %v1332, %v1334
    %v1336 = vrot.slane %v1320, %v1335
    %v1338 = vunpack.c.l.s4 1983009808
    %v1339 = vunpack.c.0.s8 %v1338
    %v1340 = vlaneseq
    %v1341 = vshrl.u32 %v1340, 7
    %v1342 = vsub.s32 %v1339, %v1341
    %v1343 = vrot.slane %v1321, %v1342
    %v1345 = vunpack.c.l.s4 1983009808
    %v1346 = vunpack.c.0.s8 %v1345
    %v1347 = vlaneseq
    %v1348 = vshrl.u32 %v1347, 7
    %v1349 = vsub.s32 %v1346, %v1348
    %v1350 = vrot.slane %v1322, %v1349
    %v1351 = vcombine.low %v1329, %v1343
    %v1352 = vcombine.high %v1329, %v1343
    %v1353 = vcombine.low %v1336, %v1350
    %v1354 = vcombine.high %v1336, %v1350
    %v1355 = vcombine.low %v203, %v205
    %v1356 = vcombine.high %v203, %v205
    %v1357 = vcombine.low %v207, %v209
    %v1358 = vcombine.high %v207, %v209
    %v1360 = vunpack.c.l.s4 1983009808
    %v1361 = vunpack.c.0.s8 %v1360
    %v1362 = vlaneseq
    %v1363 = vshrl.u32 %v1362, 7
    %v1364 = vsub.s32 %v1361, %v1363
    %v1365 = vrot.slane %v1355, %v1364
    %v1367 = vunpack.c.l.s4 1983009808
    %v1368 = vunpack.c.0.s8 %v1367
    %v1369 = vlaneseq
    %v1370 = vshrl.u32 %v1369, 7
    %v1371 = vsub.s32 %v1368, %v1370
    %v1372 = vrot.slane %v1356, %v1371
    %v1374 = vunpack.c.l.s4 1983009808
    %v1375 = vunpack.c.0.s8 %v1374
    %v1376 = vlaneseq
    %v1377 = vshrl.u32 %v1376, 7
    %v1378 = vsub.s32 %v1375, %v1377
    %v1379 = vrot.slane %v1357, %v1378
    %v1381 = vunpack.c.l.s4 1983009808
    %v1382 = vunpack.c.0.s8 %v1381
    %v1383 = vlaneseq
    %v1384 = vshrl.u32 %v1383, 7
    %v1385 = vsub.s32 %v1382, %v1384
    %v1386 = vrot.slane %v1358, %v1385
    %v1387 = vcombine.low %v1365, %v1379
    %v1388 = vcombine.high %v1365, %v1379
    %v1389 = vcombine.low %v1372, %v1386
    %v1390 = vcombine.high %v1372, %v1386
    %v1391 = vcombine.low %v204, %v206
    %v1392 = vcombine.high %v204, %v206
    %v1393 = vcombine.low %v208, %v210
    %v1394 = vcombine.high %v208, %v210
    %v1396 = vunpack.c.l.s4 1983009808
    %v1397 = vunpack.c.0.s8 %v1396
    %v1398 = vlaneseq
    %v1399 = vshrl.u32 %v1398, 7
    %v1400 = vsub.s32 %v1397, %v1399
    %v1401 = vrot.slane %v1391, %v1400
    %v1403 = vunpack.c.l.s4 1983009808
    %v1404 = vunpack.c.0.s8 %v1403
    %v1405 = vlaneseq
    %v1406 = vshrl.u32 %v1405, 7
    %v1407 = vsub.s32 %v1404, %v1406
    %v1408 = vrot.slane %v1392, %v1407
    %v1410 = vunpack.c.l.s4 1983009808
    %v1411 = vunpack.c.0.s8 %v1410
    %v1412 = vlaneseq
    %v1413 = vshrl.u32 %v1412, 7
    %v1414 = vsub.s32 %v1411, %v1413
    %v1415 = vrot.slane %v1393, %v1414
    %v1417 = vunpack.c.l.s4 1983009808
    %v1418 = vunpack.c.0.s8 %v1417
    %v1419 = vlaneseq
    %v1420 = vshrl.u32 %v1419, 7
    %v1421 = vsub.s32 %v1418, %v1420
    %v1422 = vrot.slane %v1394, %v1421
    %v1423 = vcombine.low %v1401, %v1415
    %v1424 = vcombine.high %v1401, %v1415
    %v1425 = vcombine.low %v1408, %v1422
    %v1426 = vcombine.high %v1408, %v1422
    %v1427 = vcombine.low %v211, %v213
    %v1428 = vcombine.high %v211, %v213
    %v1429 = vcombine.low %v215, %v217
    %v1430 = vcombine.high %v215, %v217
    %v1432 = vunpack.c.l.s4 1983009808
    %v1433 = vunpack.c.0.s8 %v1432
    %v1434 = vlaneseq
    %v1435 = vshrl.u32 %v1434, 7
    %v1436 = vsub.s32 %v1433, %v1435
    %v1437 = vrot.slane %v1427, %v1436
    %v1439 = vunpack.c.l.s4 1983009808
    %v1440 = vunpack.c.0.s8 %v1439
    %v1441 = vlaneseq
    %v1442 = vshrl.u32 %v1441, 7
    %v1443 = vsub.s32 %v1440, %v1442
    %v1444 = vrot.slane %v1428, %v1443
    %v1446 = vunpack.c.l.s4 1983009808
    %v1447 = vunpack.c.0.s8 %v1446
    %v1448 = vlaneseq
    %v1449 = vshrl.u32 %v1448, 7
    %v1450 = vsub.s32 %v1447, %v1449
    %v1451 = vrot.slane %v1429, %v1450
    %v1453 = vunpack.c.l.s4 1983009808
    %v1454 = vunpack.c.0.s8 %v1453
    %v1455 = vlaneseq
    %v1456 = vshrl.u32 %v1455, 7
    %v1457 = vsub.s32 %v1454, %v1456
    %v1458 = vrot.slane %v1430, %v1457
    %v1459 = vcombine.low %v1437, %v1451
    %v1460 = vcombine.high %v1437, %v1451
    %v1461 = vcombine.low %v1444, %v1458
    %v1462 = vcombine.high %v1444, %v1458
    %v1463 = vcombine.low %v212, %v214
    %v1464 = vcombine.high %v212, %v214
    %v1465 = vcombine.low %v216, %v218
    %v1466 = vcombine.high %v216, %v218
    %v1468 = vunpack.c.l.s4 1983009808
    %v1469 = vunpack.c.0.s8 %v1468
    %v1470 = vlaneseq
    %v1471 = vshrl.u32 %v1470, 7
    %v1472 = vsub.s32 %v1469, %v1471
    %v1473 = vrot.slane %v1463, %v1472
    %v1475 = vunpack.c.l.s4 1983009808
    %v1476 = vunpack.c.0.s8 %v1475
    %v1477 = vlaneseq
    %v1478 = vshrl.u32 %v1477, 7
    %v1479 = vsub.s32 %v1476, %v1478
    %v1480 = vrot.slane %v1464, %v1479
    %v1482 = vunpack.c.l.s4 1983009808
    %v1483 = vunpack.c.0.s8 %v1482
    %v1484 = vlaneseq
    %v1485 = vshrl.u32 %v1484, 7
    %v1486 = vsub.s32 %v1483, %v1485
    %v1487 = vrot.slane %v1465, %v1486
    %v1489 = vunpack.c.l.s4 1983009808
    %v1490 = vunpack.c.0.s8 %v1489
    %v1491 = vlaneseq
    %v1492 = vshrl.u32 %v1491, 7
    %v1493 = vsub.s32 %v1490, %v1492
    %v1494 = vrot.slane %v1466, %v1493
    %v1495 = vcombine.low %v1473, %v1487
    %v1496 = vcombine.high %v1473, %v1487
    %v1497 = vcombine.low %v1480, %v1494
    %v1498 = vcombine.high %v1480, %v1494
    %v1627 = vpack.c.bf16 %v451, %v379
    %v1628 = vpack.c.bf16 %v452, %v380
    %v1629 = vpack.c.bf16 %v453, %v381
    %v1630 = vpack.c.bf16 %v454, %v382
    %v1631 = vpack.c.bf16 %v487, %v415
    %v1632 = vpack.c.bf16 %v488, %v416
    %v1633 = vpack.c.bf16 %v489, %v417
    %v1634 = vpack.c.bf16 %v490, %v418
    %v1635 = vpack.c.bf16 %v595, %v523
    %v1636 = vpack.c.bf16 %v596, %v524
    %v1637 = vpack.c.bf16 %v597, %v525
    %v1638 = vpack.c.bf16 %v598, %v526
    %v1639 = vpack.c.bf16 %v631, %v559
    %v1640 = vpack.c.bf16 %v632, %v560
    %v1641 = vpack.c.bf16 %v633, %v561
    %v1642 = vpack.c.bf16 %v634, %v562
    %v1643 = vpack.c.bf16 %v739, %v667
    %v1644 = vpack.c.bf16 %v740, %v668
    %v1645 = vpack.c.bf16 %v741, %v669
    %v1646 = vpack.c.bf16 %v742, %v670
    %v1647 = vpack.c.bf16 %v775, %v703
    %v1648 = vpack.c.bf16 %v776, %v704
    %v1649 = vpack.c.bf16 %v777, %v705
    %v1650 = vpack.c.bf16 %v778, %v706
    %v1651 = vpack.c.bf16 %v883, %v811
    %v1652 = vpack.c.bf16 %v884, %v812
    %v1653 = vpack.c.bf16 %v885, %v813
    %v1654 = vpack.c.bf16 %v886, %v814
    %v1655 = vpack.c.bf16 %v919, %v847
    %v1656 = vpack.c.bf16 %v920, %v848
    %v1657 = vpack.c.bf16 %v921, %v849
    %v1658 = vpack.c.bf16 %v922, %v850
    %v1659 = vpack.c.bf16 %v1027, %v955
    %v1660 = vpack.c.bf16 %v1028, %v956
    %v1661 = vpack.c.bf16 %v1029, %v957
    %v1662 = vpack.c.bf16 %v1030, %v958
    %v1663 = vpack.c.bf16 %v1063, %v991
    %v1664 = vpack.c.bf16 %v1064, %v992
    %v1665 = vpack.c.bf16 %v1065, %v993
    %v1666 = vpack.c.bf16 %v1066, %v994
    %v1667 = vpack.c.bf16 %v1171, %v1099
    %v1668 = vpack.c.bf16 %v1172, %v1100
    %v1669 = vpack.c.bf16 %v1173, %v1101
    %v1670 = vpack.c.bf16 %v1174, %v1102
    %v1671 = vpack.c.bf16 %v1207, %v1135
    %v1672 = vpack.c.bf16 %v1208, %v1136
    %v1673 = vpack.c.bf16 %v1209, %v1137
    %v1674 = vpack.c.bf16 %v1210, %v1138
    %v1675 = vpack.c.bf16 %v1315, %v1243
    %v1676 = vpack.c.bf16 %v1316, %v1244
    %v1677 = vpack.c.bf16 %v1317, %v1245
    %v1678 = vpack.c.bf16 %v1318, %v1246
    %v1679 = vpack.c.bf16 %v1351, %v1279
    %v1680 = vpack.c.bf16 %v1352, %v1280
    %v1681 = vpack.c.bf16 %v1353, %v1281
    %v1682 = vpack.c.bf16 %v1354, %v1282
    %v1683 = vpack.c.bf16 %v1459, %v1387
    %v1684 = vpack.c.bf16 %v1460, %v1388
    %v1685 = vpack.c.bf16 %v1461, %v1389
    %v1686 = vpack.c.bf16 %v1462, %v1390
    %v1687 = vpack.c.bf16 %v1495, %v1423
    %v1688 = vpack.c.bf16 %v1496, %v1424
    %v1689 = vpack.c.bf16 %v1497, %v1425
    %v1690 = vpack.c.bf16 %v1498, %v1426
    %v1691 = vld [vmem:[#allocation6] sm:$0xf]
    %v1692 = vld [vmem:[#allocation6 + $0x4] sm:$0xf]
    %v1693 = vld [vmem:[#allocation6 + $0x8] sm:$0xf]
    %v1694 = vld [vmem:[#allocation6 + $0xc] sm:$0xf]
    %v1695 = vld [vmem:[#allocation6 + $0x10] sm:$0xf]
    %v1696 = vld [vmem:[#allocation6 + $0x14] sm:$0xf]
    %v1697 = vld [vmem:[#allocation6 + $0x18] sm:$0xf]
    %v1698 = vld [vmem:[#allocation6 + $0x1c] sm:$0xf]
    %v1699 = vld [vmem:[#allocation6 + $0x20] sm:$0xf]
    %v1700 = vld [vmem:[#allocation6 + $0x24] sm:$0xf]
    %v1701 = vld [vmem:[#allocation6 + $0x28] sm:$0xf]
    %v1702 = vld [vmem:[#allocation6 + $0x2c] sm:$0xf]
    %v1703 = vld [vmem:[#allocation6 + $0x30] sm:$0xf]
    %v1704 = vld [vmem:[#allocation6 + $0x34] sm:$0xf]
    %v1705 = vld [vmem:[#allocation6 + $0x38] sm:$0xf]
    %v1706 = vld [vmem:[#allocation6 + $0x3c] sm:$0xf]
    %v1707 = vld [vmem:[#allocation6 + $0x40] sm:$0xf]
    %v1708 = vld [vmem:[#allocation6 + $0x44] sm:$0xf]
    %v1709 = vld [vmem:[#allocation6 + $0x48] sm:$0xf]
    %v1710 = vld [vmem:[#allocation6 + $0x4c] sm:$0xf]
    %v1711 = vld [vmem:[#allocation6 + $0x50] sm:$0xf]
    %v1712 = vld [vmem:[#allocation6 + $0x54] sm:$0xf]
    %v1713 = vld [vmem:[#allocation6 + $0x58] sm:$0xf]
    %v1714 = vld [vmem:[#allocation6 + $0x5c] sm:$0xf]
    %v1715 = vld [vmem:[#allocation6 + $0x60] sm:$0xf]
    %v1716 = vld [vmem:[#allocation6 + $0x64] sm:$0xf]
    %v1717 = vld [vmem:[#allocation6 + $0x68] sm:$0xf]
    %v1718 = vld [vmem:[#allocation6 + $0x6c] sm:$0xf]
    %v1719 = vld [vmem:[#allocation6 + $0x70] sm:$0xf]
    %v1720 = vld [vmem:[#allocation6 + $0x74] sm:$0xf]
    %v1721 = vld [vmem:[#allocation6 + $0x78] sm:$0xf]
    %v1722 = vld [vmem:[#allocation6 + $0x7c] sm:$0xf]
    %v1723 = vld [vmem:[#allocation6 + $0x80] sm:$0xf]
    %v1724 = vld [vmem:[#allocation6 + $0x84] sm:$0xf]
    %v1725 = vld [vmem:[#allocation6 + $0x88] sm:$0xf]
    %v1726 = vld [vmem:[#allocation6 + $0x8c] sm:$0xf]
    %v1727 = vld [vmem:[#allocation6 + $0x90] sm:$0xf]
    %v1728 = vld [vmem:[#allocation6 + $0x94] sm:$0xf]
    %v1729 = vld [vmem:[#allocation6 + $0x98] sm:$0xf]
    %v1730 = vld [vmem:[#allocation6 + $0x9c] sm:$0xf]
    %v1731 = vld [vmem:[#allocation6 + $0xa0] sm:$0xf]
    %v1732 = vld [vmem:[#allocation6 + $0xa4] sm:$0xf]
    %v1733 = vld [vmem:[#allocation6 + $0xa8] sm:$0xf]
    %v1734 = vld [vmem:[#allocation6 + $0xac] sm:$0xf]
    %v1735 = vld [vmem:[#allocation6 + $0xb0] sm:$0xf]
    %v1736 = vld [vmem:[#allocation6 + $0xb4] sm:$0xf]
    %v1737 = vld [vmem:[#allocation6 + $0xb8] sm:$0xf]
    %v1738 = vld [vmem:[#allocation6 + $0xbc] sm:$0xf]
    %v1739 = vld [vmem:[#allocation6 + $0xc0] sm:$0xf]
    %v1740 = vld [vmem:[#allocation6 + $0xc4] sm:$0xf]
    %v1741 = vld [vmem:[#allocation6 + $0xc8] sm:$0xf]
    %v1742 = vld [vmem:[#allocation6 + $0xcc] sm:$0xf]
    %v1743 = vld [vmem:[#allocation6 + $0xd0] sm:$0xf]
    %v1744 = vld [vmem:[#allocation6 + $0xd4] sm:$0xf]
    %v1745 = vld [vmem:[#allocation6 + $0xd8] sm:$0xf]
    %v1746 = vld [vmem:[#allocation6 + $0xdc] sm:$0xf]
    %v1747 = vld [vmem:[#allocation6 + $0xe0] sm:$0xf]
    %v1748 = vld [vmem:[#allocation6 + $0xe4] sm:$0xf]
    %v1749 = vld [vmem:[#allocation6 + $0xe8] sm:$0xf]
    %v1750 = vld [vmem:[#allocation6 + $0xec] sm:$0xf]
    %v1751 = vld [vmem:[#allocation6 + $0xf0] sm:$0xf]
    %v1752 = vld [vmem:[#allocation6 + $0xf4] sm:$0xf]
    %v1753 = vld [vmem:[#allocation6 + $0xf8] sm:$0xf]
    %v1754 = vld [vmem:[#allocation6 + $0xfc] sm:$0xf]
    %v1755 = vld [vmem:[#allocation6 + $0x100] sm:$0xf]
    %v1756 = vld [vmem:[#allocation6 + $0x104] sm:$0xf]
    %v1757 = vld [vmem:[#allocation6 + $0x108] sm:$0xf]
    %v1758 = vld [vmem:[#allocation6 + $0x10c] sm:$0xf]
    %v1759 = vld [vmem:[#allocation6 + $0x110] sm:$0xf]
    %v1760 = vld [vmem:[#allocation6 + $0x114] sm:$0xf]
    %v1761 = vld [vmem:[#allocation6 + $0x118] sm:$0xf]
    %v1762 = vld [vmem:[#allocation6 + $0x11c] sm:$0xf]
    %v1763 = vld [vmem:[#allocation6 + $0x120] sm:$0xf]
    %v1764 = vld [vmem:[#allocation6 + $0x124] sm:$0xf]
    %v1765 = vld [vmem:[#allocation6 + $0x128] sm:$0xf]
    %v1766 = vld [vmem:[#allocation6 + $0x12c] sm:$0xf]
    %v1767 = vld [vmem:[#allocation6 + $0x130] sm:$0xf]
    %v1768 = vld [vmem:[#allocation6 + $0x134] sm:$0xf]
    %v1769 = vld [vmem:[#allocation6 + $0x138] sm:$0xf]
    %v1770 = vld [vmem:[#allocation6 + $0x13c] sm:$0xf]
    %v1771 = vld [vmem:[#allocation6 + $0x140] sm:$0xf]
    %v1772 = vld [vmem:[#allocation6 + $0x144] sm:$0xf]
    %v1773 = vld [vmem:[#allocation6 + $0x148] sm:$0xf]
    %v1774 = vld [vmem:[#allocation6 + $0x14c] sm:$0xf]
    %v1775 = vld [vmem:[#allocation6 + $0x150] sm:$0xf]
    %v1776 = vld [vmem:[#allocation6 + $0x154] sm:$0xf]
    %v1777 = vld [vmem:[#allocation6 + $0x158] sm:$0xf]
    %v1778 = vld [vmem:[#allocation6 + $0x15c] sm:$0xf]
    %v1779 = vld [vmem:[#allocation6 + $0x160] sm:$0xf]
    %v1780 = vld [vmem:[#allocation6 + $0x164] sm:$0xf]
    %v1781 = vld [vmem:[#allocation6 + $0x168] sm:$0xf]
    %v1782 = vld [vmem:[#allocation6 + $0x16c] sm:$0xf]
    %v1783 = vld [vmem:[#allocation6 + $0x170] sm:$0xf]
    %v1784 = vld [vmem:[#allocation6 + $0x174] sm:$0xf]
    %v1785 = vld [vmem:[#allocation6 + $0x178] sm:$0xf]
    %v1786 = vld [vmem:[#allocation6 + $0x17c] sm:$0xf]
    %v1787 = vld [vmem:[#allocation6 + $0x180] sm:$0xf]
    %v1788 = vld [vmem:[#allocation6 + $0x184] sm:$0xf]
    %v1789 = vld [vmem:[#allocation6 + $0x188] sm:$0xf]
    %v1790 = vld [vmem:[#allocation6 + $0x18c] sm:$0xf]
    %v1791 = vld [vmem:[#allocation6 + $0x190] sm:$0xf]
    %v1792 = vld [vmem:[#allocation6 + $0x194] sm:$0xf]
    %v1793 = vld [vmem:[#allocation6 + $0x198] sm:$0xf]
    %v1794 = vld [vmem:[#allocation6 + $0x19c] sm:$0xf]
    %v1795 = vld [vmem:[#allocation6 + $0x1a0] sm:$0xf]
    %v1796 = vld [vmem:[#allocation6 + $0x1a4] sm:$0xf]
    %v1797 = vld [vmem:[#allocation6 + $0x1a8] sm:$0xf]
    %v1798 = vld [vmem:[#allocation6 + $0x1ac] sm:$0xf]
    %v1799 = vld [vmem:[#allocation6 + $0x1b0] sm:$0xf]
    %v1800 = vld [vmem:[#allocation6 + $0x1b4] sm:$0xf]
    %v1801 = vld [vmem:[#allocation6 + $0x1b8] sm:$0xf]
    %v1802 = vld [vmem:[#allocation6 + $0x1bc] sm:$0xf]
    %v1803 = vld [vmem:[#allocation6 + $0x1c0] sm:$0xf]
    %v1804 = vld [vmem:[#allocation6 + $0x1c4] sm:$0xf]
    %v1805 = vld [vmem:[#allocation6 + $0x1c8] sm:$0xf]
    %v1806 = vld [vmem:[#allocation6 + $0x1cc] sm:$0xf]
    %v1807 = vld [vmem:[#allocation6 + $0x1d0] sm:$0xf]
    %v1808 = vld [vmem:[#allocation6 + $0x1d4] sm:$0xf]
    %v1809 = vld [vmem:[#allocation6 + $0x1d8] sm:$0xf]
    %v1810 = vld [vmem:[#allocation6 + $0x1dc] sm:$0xf]
    %v1811 = vld [vmem:[#allocation6 + $0x1e0] sm:$0xf]
    %v1812 = vld [vmem:[#allocation6 + $0x1e4] sm:$0xf]
    %v1813 = vld [vmem:[#allocation6 + $0x1e8] sm:$0xf]
    %v1814 = vld [vmem:[#allocation6 + $0x1ec] sm:$0xf]
    %v1815 = vld [vmem:[#allocation6 + $0x1f0] sm:$0xf]
    %v1816 = vld [vmem:[#allocation6 + $0x1f4] sm:$0xf]
    %v1817 = vld [vmem:[#allocation6 + $0x1f8] sm:$0xf]
    %v1818 = vld [vmem:[#allocation6 + $0x1fc] sm:$0xf]
    %v1819 = vld [vmem:[%s2] sm:$0x1]
    %v1821 = vlaneseq
    %v1822 = vshrl.u32 %v1821, 7
    %v1823 = vsub.s32 0, %v1822
    %v1824 = vrot.slane %v1819, %v1823
    %v1954 = vunpack.c.l.b16 %v1691
    %v1955 = vunpack.c.l.b16 %v1692
    %v1956 = vunpack.c.l.b16 %v1693
    %v1957 = vunpack.c.l.b16 %v1694
    %v1958 = vunpack.c.l.b16 %v1695
    %v1959 = vunpack.c.l.b16 %v1696
    %v1960 = vunpack.c.l.b16 %v1697
    %v1961 = vunpack.c.l.b16 %v1698
    %v1962 = vunpack.c.l.b16 %v1699
    %v1963 = vunpack.c.l.b16 %v1700
    %v1964 = vunpack.c.l.b16 %v1701
    %v1965 = vunpack.c.l.b16 %v1702
    %v1966 = vunpack.c.l.b16 %v1703
    %v1967 = vunpack.c.l.b16 %v1704
    %v1968 = vunpack.c.l.b16 %v1705
    %v1969 = vunpack.c.l.b16 %v1706
    %v1970 = vunpack.c.l.b16 %v1707
    %v1971 = vunpack.c.l.b16 %v1708
    %v1972 = vunpack.c.l.b16 %v1709
    %v1973 = vunpack.c.l.b16 %v1710
    %v1974 = vunpack.c.l.b16 %v1711
    %v1975 = vunpack.c.l.b16 %v1712
    %v1976 = vunpack.c.l.b16 %v1713
    %v1977 = vunpack.c.l.b16 %v1714
    %v1978 = vunpack.c.l.b16 %v1715
    %v1979 = vunpack.c.l.b16 %v1716
    %v1980 = vunpack.c.l.b16 %v1717
    %v1981 = vunpack.c.l.b16 %v1718
    %v1982 = vunpack.c.l.b16 %v1719
    %v1983 = vunpack.c.l.b16 %v1720
    %v1984 = vunpack.c.l.b16 %v1721
    %v1985 = vunpack.c.l.b16 %v1722
    %v1986 = vunpack.c.l.b16 %v1723
    %v1987 = vunpack.c.l.b16 %v1724
    %v1988 = vunpack.c.l.b16 %v1725
    %v1989 = vunpack.c.l.b16 %v1726
    %v1990 = vunpack.c.l.b16 %v1727
    %v1991 = vunpack.c.l.b16 %v1728
    %v1992 = vunpack.c.l.b16 %v1729
    %v1993 = vunpack.c.l.b16 %v1730
    %v1994 = vunpack.c.l.b16 %v1731
    %v1995 = vunpack.c.l.b16 %v1732
    %v1996 = vunpack.c.l.b16 %v1733
    %v1997 = vunpack.c.l.b16 %v1734
    %v1998 = vunpack.c.l.b16 %v1735
    %v1999 = vunpack.c.l.b16 %v1736
    %v2000 = vunpack.c.l.b16 %v1737
    %v2001 = vunpack.c.l.b16 %v1738
    %v2002 = vunpack.c.l.b16 %v1739
    %v2003 = vunpack.c.l.b16 %v1740
    %v2004 = vunpack.c.l.b16 %v1741
    %v2005 = vunpack.c.l.b16 %v1742
    %v2006 = vunpack.c.l.b16 %v1743
    %v2007 = vunpack.c.l.b16 %v1744
    %v2008 = vunpack.c.l.b16 %v1745
    %v2009 = vunpack.c.l.b16 %v1746
    %v2010 = vunpack.c.l.b16 %v1747
    %v2011 = vunpack.c.l.b16 %v1748
    %v2012 = vunpack.c.l.b16 %v1749
    %v2013 = vunpack.c.l.b16 %v1750
    %v2014 = vunpack.c.l.b16 %v1751
    %v2015 = vunpack.c.l.b16 %v1752
    %v2016 = vunpack.c.l.b16 %v1753
    %v2017 = vunpack.c.l.b16 %v1754
    %v2018 = vunpack.c.l.b16 %v1755
    %v2019 = vunpack.c.l.b16 %v1756
    %v2020 = vunpack.c.l.b16 %v1757
    %v2021 = vunpack.c.l.b16 %v1758
    %v2022 = vunpack.c.l.b16 %v1759
    %v2023 = vunpack.c.l.b16 %v1760
    %v2024 = vunpack.c.l.b16 %v1761
    %v2025 = vunpack.c.l.b16 %v1762
    %v2026 = vunpack.c.l.b16 %v1763
    %v2027 = vunpack.c.l.b16 %v1764
    %v2028 = vunpack.c.l.b16 %v1765
    %v2029 = vunpack.c.l.b16 %v1766
    %v2030 = vunpack.c.l.b16 %v1767
    %v2031 = vunpack.c.l.b16 %v1768
    %v2032 = vunpack.c.l.b16 %v1769
    %v2033 = vunpack.c.l.b16 %v1770
    %v2034 = vunpack.c.l.b16 %v1771
    %v2035 = vunpack.c.l.b16 %v1772
    %v2036 = vunpack.c.l.b16 %v1773
    %v2037 = vunpack.c.l.b16 %v1774
    %v2038 = vunpack.c.l.b16 %v1775
    %v2039 = vunpack.c.l.b16 %v1776
    %v2040 = vunpack.c.l.b16 %v1777
    %v2041 = vunpack.c.l.b16 %v1778
    %v2042 = vunpack.c.l.b16 %v1779
    %v2043 = vunpack.c.l.b16 %v1780
    %v2044 = vunpack.c.l.b16 %v1781
    %v2045 = vunpack.c.l.b16 %v1782
    %v2046 = vunpack.c.l.b16 %v1783
    %v2047 = vunpack.c.l.b16 %v1784
    %v2048 = vunpack.c.l.b16 %v1785
    %v2049 = vunpack.c.l.b16 %v1786
    %v2050 = vunpack.c.l.b16 %v1787
    %v2051 = vunpack.c.l.b16 %v1788
    %v2052 = vunpack.c.l.b16 %v1789
    %v2053 = vunpack.c.l.b16 %v1790
    %v2054 = vunpack.c.l.b16 %v1791
    %v2055 = vunpack.c.l.b16 %v1792
    %v2056 = vunpack.c.l.b16 %v1793
    %v2057 = vunpack.c.l.b16 %v1794
    %v2058 = vunpack.c.l.b16 %v1795
    %v2059 = vunpack.c.l.b16 %v1796
    %v2060 = vunpack.c.l.b16 %v1797
    %v2061 = vunpack.c.l.b16 %v1798
    %v2062 = vunpack.c.l.b16 %v1799
    %v2063 = vunpack.c.l.b16 %v1800
    %v2064 = vunpack.c.l.b16 %v1801
    %v2065 = vunpack.c.l.b16 %v1802
    %v2066 = vunpack.c.l.b16 %v1803
    %v2067 = vunpack.c.l.b16 %v1804
    %v2068 = vunpack.c.l.b16 %v1805
    %v2069 = vunpack.c.l.b16 %v1806
    %v2070 = vunpack.c.l.b16 %v1807
    %v2071 = vunpack.c.l.b16 %v1808
    %v2072 = vunpack.c.l.b16 %v1809
    %v2073 = vunpack.c.l.b16 %v1810
    %v2074 = vunpack.c.l.b16 %v1811
    %v2075 = vunpack.c.l.b16 %v1812
    %v2076 = vunpack.c.l.b16 %v1813
    %v2077 = vunpack.c.l.b16 %v1814
    %v2078 = vunpack.c.l.b16 %v1815
    %v2079 = vunpack.c.l.b16 %v1816
    %v2080 = vunpack.c.l.b16 %v1817
    %v2081 = vunpack.c.l.b16 %v1818
    %v2082 = vpack.c.b16 %v1955, %v1954
    %v2083 = vpack.c.b16 %v1957, %v1956
    %v2084 = vpack.c.b16 %v1959, %v1958
    %v2085 = vpack.c.b16 %v1961, %v1960
    %v2086 = vpack.c.b16 %v1963, %v1962
    %v2087 = vpack.c.b16 %v1965, %v1964
    %v2088 = vpack.c.b16 %v1967, %v1966
    %v2089 = vpack.c.b16 %v1969, %v1968
    %v2090 = vpack.c.b16 %v1971, %v1970
    %v2091 = vpack.c.b16 %v1973, %v1972
    %v2092 = vpack.c.b16 %v1975, %v1974
    %v2093 = vpack.c.b16 %v1977, %v1976
    %v2094 = vpack.c.b16 %v1979, %v1978
    %v2095 = vpack.c.b16 %v1981, %v1980
    %v2096 = vpack.c.b16 %v1983, %v1982
    %v2097 = vpack.c.b16 %v1985, %v1984
    %v2098 = vpack.c.b16 %v1987, %v1986
    %v2099 = vpack.c.b16 %v1989, %v1988
    %v2100 = vpack.c.b16 %v1991, %v1990
    %v2101 = vpack.c.b16 %v1993, %v1992
    %v2102 = vpack.c.b16 %v1995, %v1994
    %v2103 = vpack.c.b16 %v1997, %v1996
    %v2104 = vpack.c.b16 %v1999, %v1998
    %v2105 = vpack.c.b16 %v2001, %v2000
    %v2106 = vpack.c.b16 %v2003, %v2002
    %v2107 = vpack.c.b16 %v2005, %v2004
    %v2108 = vpack.c.b16 %v2007, %v2006
    %v2109 = vpack.c.b16 %v2009, %v2008
    %v2110 = vpack.c.b16 %v2011, %v2010
    %v2111 = vpack.c.b16 %v2013, %v2012
    %v2112 = vpack.c.b16 %v2015, %v2014
    %v2113 = vpack.c.b16 %v2017, %v2016
    %v2114 = vpack.c.b16 %v2019, %v2018
    %v2115 = vpack.c.b16 %v2021, %v2020
    %v2116 = vpack.c.b16 %v2023, %v2022
    %v2117 = vpack.c.b16 %v2025, %v2024
    %v2118 = vpack.c.b16 %v2027, %v2026
    %v2119 = vpack.c.b16 %v2029, %v2028
    %v2120 = vpack.c.b16 %v2031, %v2030
    %v2121 = vpack.c.b16 %v2033, %v2032
    %v2122 = vpack.c.b16 %v2035, %v2034
    %v2123 = vpack.c.b16 %v2037, %v2036
    %v2124 = vpack.c.b16 %v2039, %v2038
    %v2125 = vpack.c.b16 %v2041, %v2040
    %v2126 = vpack.c.b16 %v2043, %v2042
    %v2127 = vpack.c.b16 %v2045, %v2044
    %v2128 = vpack.c.b16 %v2047, %v2046
    %v2129 = vpack.c.b16 %v2049, %v2048
    %v2130 = vpack.c.b16 %v2051, %v2050
    %v2131 = vpack.c.b16 %v2053, %v2052
    %v2132 = vpack.c.b16 %v2055, %v2054
    %v2133 = vpack.c.b16 %v2057, %v2056
    %v2134 = vpack.c.b16 %v2059, %v2058
    %v2135 = vpack.c.b16 %v2061, %v2060
    %v2136 = vpack.c.b16 %v2063, %v2062
    %v2137 = vpack.c.b16 %v2065, %v2064
    %v2138 = vpack.c.b16 %v2067, %v2066
    %v2139 = vpack.c.b16 %v2069, %v2068
    %v2140 = vpack.c.b16 %v2071, %v2070
    %v2141 = vpack.c.b16 %v2073, %v2072
    %v2142 = vpack.c.b16 %v2075, %v2074
    %v2143 = vpack.c.b16 %v2077, %v2076
    %v2144 = vpack.c.b16 %v2079, %v2078
    %v2145 = vpack.c.b16 %v2081, %v2080
    %2210 = vmatprep.subr.bf16.mxu0 0
    %2211 = vmatpush1.bf16.msra.mxu0 %v2089
    %2212 = vmatprep.subr.bf16.mxu0 0
    %2213 = vmatpush1.bf16.msra.mxu0 %v2088
    %2214 = vmatprep.subr.bf16.mxu0 0
    %2215 = vmatpush1.bf16.msra.mxu0 %v2087
    %2216 = vmatprep.subr.bf16.mxu0 0
    %2217 = vmatpush1.bf16.msra.mxu0 %v2086
    %2218 = vmatprep.subr.bf16.mxu0 0
    %2219 = vmatpush1.bf16.msra.mxu0 %v2085
    %2220 = vmatprep.subr.bf16.mxu0 0
    %2221 = vmatpush1.bf16.msra.mxu0 %v2084
    %2222 = vmatprep.subr.bf16.mxu0 0
    %2223 = vmatpush1.bf16.msra.mxu0 %v2083
    %2224 = vmatprep.subr.bf16.mxu0 0
    %2225 = vmatpush1.bf16.msra.mxu0 %v2082
    %2226 = vmatprep.subr.bf16.mxu0 0
    %2227 = vmatpush2.bf16.msra.mxu0 %v2097
    %2228 = vmatprep.subr.bf16.mxu0 0
    %2229 = vmatpush2.bf16.msra.mxu0 %v2096
    %2230 = vmatprep.subr.bf16.mxu0 0
    %2231 = vmatpush2.bf16.msra.mxu0 %v2095
    %2232 = vmatprep.subr.bf16.mxu0 0
    %2233 = vmatpush2.bf16.msra.mxu0 %v2094
    %2234 = vmatprep.subr.bf16.mxu0 0
    %2235 = vmatpush2.bf16.msra.mxu0 %v2093
    %2236 = vmatprep.subr.bf16.mxu0 0
    %2237 = vmatpush2.bf16.msra.mxu0 %v2092
    %2238 = vmatprep.subr.bf16.mxu0 0
    %2239 = vmatpush2.bf16.msra.mxu0 %v2091
    %2240 = vmatprep.subr.bf16.mxu0 0
    %2241 = vmatpush2.bf16.msra.mxu0 %v2090
    %2242 = vmatprep.mubr.bf16.mxu0 %v1628
    %2243 = vmatmul.mubr.bf16.gmra.mxu0 %v1627
    %v2244 = vpop.f32.mrf.mxu0
    %v2245 = vadd.f32 %v1824, %v2244
    %v2246 = vpop.f32.mrf.mxu0
    %v2247 = vpop.f32.mrf.mxu0
    %v2248 = vadd.f32 %v1824, %v2247
    %v2249 = vpop.f32.mrf.mxu0
    %2250 = vmatprep.mubr.bf16.mxu0 %v1636
    %2251 = vmatmul.mubr.bf16.gmra.mxu0 %v1635
    %v2252 = vpop.f32.mrf.mxu0
    %v2253 = vadd.f32 %v1824, %v2252
    %v2254 = vpop.f32.mrf.mxu0
    %v2255 = vpop.f32.mrf.mxu0
    %v2256 = vadd.f32 %v1824, %v2255
    %v2257 = vpop.f32.mrf.mxu0
    %2258 = vmatprep.mubr.bf16.mxu0 %v1644
    %2259 = vmatmul.mubr.bf16.gmra.mxu0 %v1643
    %v2260 = vpop.f32.mrf.mxu0
    %v2261 = vadd.f32 %v1824, %v2260
    %v2262 = vpop.f32.mrf.mxu0
    %v2263 = vpop.f32.mrf.mxu0
    %v2264 = vadd.f32 %v1824, %v2263
    %v2265 = vpop.f32.mrf.mxu0
    %2266 = vmatprep.mubr.bf16.mxu0 %v1652
    %2267 = vmatmul.mubr.bf16.gmra.mxu0 %v1651
    %v2268 = vpop.f32.mrf.mxu0
    %v2269 = vadd.f32 %v1824, %v2268
    %v2270 = vpop.f32.mrf.mxu0
    %v2271 = vpop.f32.mrf.mxu0
    %v2272 = vadd.f32 %v1824, %v2271
    %v2273 = vpop.f32.mrf.mxu0
    %2274 = vmatprep.mubr.bf16.mxu0 %v1660
    %2275 = vmatmul.mubr.bf16.gmra.mxu0 %v1659
    %v2276 = vpop.f32.mrf.mxu0
    %v2277 = vadd.f32 %v1824, %v2276
    %v2278 = vpop.f32.mrf.mxu0
    %v2279 = vpop.f32.mrf.mxu0
    %v2280 = vadd.f32 %v1824, %v2279
    %v2281 = vpop.f32.mrf.mxu0
    %2282 = vmatprep.mubr.bf16.mxu0 %v1668
    %2283 = vmatmul.mubr.bf16.gmra.mxu0 %v1667
    %v2284 = vpop.f32.mrf.mxu0
    %v2285 = vadd.f32 %v1824, %v2284
    %v2286 = vpop.f32.mrf.mxu0
    %v2287 = vpop.f32.mrf.mxu0
    %v2288 = vadd.f32 %v1824, %v2287
    %v2289 = vpop.f32.mrf.mxu0
    %2290 = vmatprep.mubr.bf16.mxu0 %v1676
    %2291 = vmatmul.mubr.bf16.gmra.mxu0 %v1675
    %v2292 = vpop.f32.mrf.mxu0
    %v2293 = vadd.f32 %v1824, %v2292
    %v2294 = vpop.f32.mrf.mxu0
    %v2295 = vpop.f32.mrf.mxu0
    %v2296 = vadd.f32 %v1824, %v2295
    %v2297 = vpop.f32.mrf.mxu0
    %2298 = vmatprep.mubr.bf16.mxu0 %v1684
    %2299 = vmatmul.mubr.bf16.gmra.mxu0 %v1683
    %v2300 = vpop.f32.mrf.mxu0
    %v2301 = vadd.f32 %v1824, %v2300
    %v2302 = vpop.f32.mrf.mxu0
    %v2303 = vpop.f32.mrf.mxu0
    %v2304 = vadd.f32 %v1824, %v2303
    %v2305 = vpop.f32.mrf.mxu0
    %2306 = vdwg.mxu0
    %2307 = vmatprep.subr.bf16.mxu0 0
    %2308 = vmatpush1.bf16.msra.mxu0 %v2105
    %2309 = vmatprep.subr.bf16.mxu0 0
    %2310 = vmatpush1.bf16.msra.mxu0 %v2104
    %2311 = vmatprep.subr.bf16.mxu0 0
    %2312 = vmatpush1.bf16.msra.mxu0 %v2103
    %2313 = vmatprep.subr.bf16.mxu0 0
    %2314 = vmatpush1.bf16.msra.mxu0 %v2102
    %2315 = vmatprep.subr.bf16.mxu0 0
    %2316 = vmatpush1.bf16.msra.mxu0 %v2101
    %2317 = vmatprep.subr.bf16.mxu0 0
    %2318 = vmatpush1.bf16.msra.mxu0 %v2100
    %2319 = vmatprep.subr.bf16.mxu0 0
    %2320 = vmatpush1.bf16.msra.mxu0 %v2099
    %2321 = vmatprep.subr.bf16.mxu0 0
    %2322 = vmatpush1.bf16.msra.mxu0 %v2098
    %2323 = vmatprep.subr.bf16.mxu0 0
    %2324 = vmatpush2.bf16.msra.mxu0 %v2113
    %2325 = vmatprep.subr.bf16.mxu0 0
    %2326 = vmatpush2.bf16.msra.mxu0 %v2112
    %2327 = vmatprep.subr.bf16.mxu0 0
    %2328 = vmatpush2.bf16.msra.mxu0 %v2111
    %2329 = vmatprep.subr.bf16.mxu0 0
    %2330 = vmatpush2.bf16.msra.mxu0 %v2110
    %2331 = vmatprep.subr.bf16.mxu0 0
    %2332 = vmatpush2.bf16.msra.mxu0 %v2109
    %2333 = vmatprep.subr.bf16.mxu0 0
    %2334 = vmatpush2.bf16.msra.mxu0 %v2108
    %2335 = vmatprep.subr.bf16.mxu0 0
    %2336 = vmatpush2.bf16.msra.mxu0 %v2107
    %2337 = vmatprep.subr.bf16.mxu0 0
    %2338 = vmatpush2.bf16.msra.mxu0 %v2106
    %2339 = vmatprep.mubr.bf16.mxu0 %v1630
    %2340 = vmatmul.mubr.bf16.gmra.mxu0 %v1629
    %v2341 = vpop.f32.mrf.mxu0
    %v2342 = vadd.f32 %v2245, %v2341
    %v2343 = vpop.f32.mrf.mxu0
    %v2344 = vpop.f32.mrf.mxu0
    %v2345 = vadd.f32 %v2248, %v2344
    %v2346 = vpop.f32.mrf.mxu0
    %2347 = vmatprep.mubr.bf16.mxu0 %v1638
    %2348 = vmatmul.mubr.bf16.gmra.mxu0 %v1637
    %v2349 = vpop.f32.mrf.mxu0
    %v2350 = vadd.f32 %v2253, %v2349
    %v2351 = vpop.f32.mrf.mxu0
    %v2352 = vpop.f32.mrf.mxu0
    %v2353 = vadd.f32 %v2256, %v2352
    %v2354 = vpop.f32.mrf.mxu0
    %2355 = vmatprep.mubr.bf16.mxu0 %v1646
    %2356 = vmatmul.mubr.bf16.gmra.mxu0 %v1645
    %v2357 = vpop.f32.mrf.mxu0
    %v2358 = vadd.f32 %v2261, %v2357
    %v2359 = vpop.f32.mrf.mxu0
    %v2360 = vpop.f32.mrf.mxu0
    %v2361 = vadd.f32 %v2264, %v2360
    %v2362 = vpop.f32.mrf.mxu0
    %2363 = vmatprep.mubr.bf16.mxu0 %v1654
    %2364 = vmatmul.mubr.bf16.gmra.mxu0 %v1653
    %v2365 = vpop.f32.mrf.mxu0
    %v2366 = vadd.f32 %v2269, %v2365
    %v2367 = vpop.f32.mrf.mxu0
    %v2368 = vpop.f32.mrf.mxu0
    %v2369 = vadd.f32 %v2272, %v2368
    %v2370 = vpop.f32.mrf.mxu0
    %2371 = vmatprep.mubr.bf16.mxu0 %v1662
    %2372 = vmatmul.mubr.bf16.gmra.mxu0 %v1661
    %v2373 = vpop.f32.mrf.mxu0
    %v2374 = vadd.f32 %v2277, %v2373
    %v2375 = vpop.f32.mrf.mxu0
    %v2376 = vpop.f32.mrf.mxu0
    %v2377 = vadd.f32 %v2280, %v2376
    %v2378 = vpop.f32.mrf.mxu0
    %2379 = vmatprep.mubr.bf16.mxu0 %v1670
    %2380 = vmatmul.mubr.bf16.gmra.mxu0 %v1669
    %v2381 = vpop.f32.mrf.mxu0
    %v2382 = vadd.f32 %v2285, %v2381
    %v2383 = vpop.f32.mrf.mxu0
    %v2384 = vpop.f32.mrf.mxu0
    %v2385 = vadd.f32 %v2288, %v2384
    %v2386 = vpop.f32.mrf.mxu0
    %2387 = vmatprep.mubr.bf16.mxu0 %v1678
    %2388 = vmatmul.mubr.bf16.gmra.mxu0 %v1677
    %v2389 = vpop.f32.mrf.mxu0
    %v2390 = vadd.f32 %v2293, %v2389
    %v2391 = vpop.f32.mrf.mxu0
    %v2392 = vpop.f32.mrf.mxu0
    %v2393 = vadd.f32 %v2296, %v2392
    %v2394 = vpop.f32.mrf.mxu0
    %2395 = vmatprep.mubr.bf16.mxu0 %v1686
    %2396 = vmatmul.mubr.bf16.gmra.mxu0 %v1685
    %v2397 = vpop.f32.mrf.mxu0
    %v2398 = vadd.f32 %v2301, %v2397
    %v2399 = vpop.f32.mrf.mxu0
    %v2400 = vpop.f32.mrf.mxu0
    %v2401 = vadd.f32 %v2304, %v2400
    %v2402 = vpop.f32.mrf.mxu0
    %2403 = vdwg.mxu0
    %2404 = vmatprep.subr.bf16.mxu0 0
    %2405 = vmatpush1.bf16.msra.mxu0 %v2121
    %2406 = vmatprep.subr.bf16.mxu0 0
    %2407 = vmatpush1.bf16.msra.mxu0 %v2120
    %2408 = vmatprep.subr.bf16.mxu0 0
    %2409 = vmatpush1.bf16.msra.mxu0 %v2119
    %2410 = vmatprep.subr.bf16.mxu0 0
    %2411 = vmatpush1.bf16.msra.mxu0 %v2118
    %2412 = vmatprep.subr.bf16.mxu0 0
    %2413 = vmatpush1.bf16.msra.mxu0 %v2117
    %2414 = vmatprep.subr.bf16.mxu0 0
    %2415 = vmatpush1.bf16.msra.mxu0 %v2116
    %2416 = vmatprep.subr.bf16.mxu0 0
    %2417 = vmatpush1.bf16.msra.mxu0 %v2115
    %2418 = vmatprep.subr.bf16.mxu0 0
    %2419 = vmatpush1.bf16.msra.mxu0 %v2114
    %2420 = vmatprep.subr.bf16.mxu0 0
    %2421 = vmatpush2.bf16.msra.mxu0 %v2129
    %2422 = vmatprep.subr.bf16.mxu0 0
    %2423 = vmatpush2.bf16.msra.mxu0 %v2128
    %2424 = vmatprep.subr.bf16.mxu0 0
    %2425 = vmatpush2.bf16.msra.mxu0 %v2127
    %2426 = vmatprep.subr.bf16.mxu0 0
    %2427 = vmatpush2.bf16.msra.mxu0 %v2126
    %2428 = vmatprep.subr.bf16.mxu0 0
    %2429 = vmatpush2.bf16.msra.mxu0 %v2125
    %2430 = vmatprep.subr.bf16.mxu0 0
    %2431 = vmatpush2.bf16.msra.mxu0 %v2124
    %2432 = vmatprep.subr.bf16.mxu0 0
    %2433 = vmatpush2.bf16.msra.mxu0 %v2123
    %2434 = vmatprep.subr.bf16.mxu0 0
    %2435 = vmatpush2.bf16.msra.mxu0 %v2122
    %2436 = vmatprep.mubr.bf16.mxu0 %v1632
    %2437 = vmatmul.mubr.bf16.gmra.mxu0 %v1631
    %v2438 = vpop.f32.mrf.mxu0
    %v2439 = vadd.f32 %v2342, %v2438
    %v2440 = vpop.f32.mrf.mxu0
    %v2441 = vpop.f32.mrf.mxu0
    %v2442 = vadd.f32 %v2345, %v2441
    %v2443 = vpop.f32.mrf.mxu0
    %2444 = vmatprep.mubr.bf16.mxu0 %v1640
    %2445 = vmatmul.mubr.bf16.gmra.mxu0 %v1639
    %v2446 = vpop.f32.mrf.mxu0
    %v2447 = vadd.f32 %v2350, %v2446
    %v2448 = vpop.f32.mrf.mxu0
    %v2449 = vpop.f32.mrf.mxu0
    %v2450 = vadd.f32 %v2353, %v2449
    %v2451 = vpop.f32.mrf.mxu0
    %2452 = vmatprep.mubr.bf16.mxu0 %v1648
    %2453 = vmatmul.mubr.bf16.gmra.mxu0 %v1647
    %v2454 = vpop.f32.mrf.mxu0
    %v2455 = vadd.f32 %v2358, %v2454
    %v2456 = vpop.f32.mrf.mxu0
    %v2457 = vpop.f32.mrf.mxu0
    %v2458 = vadd.f32 %v2361, %v2457
    %v2459 = vpop.f32.mrf.mxu0
    %2460 = vmatprep.mubr.bf16.mxu0 %v1656
    %2461 = vmatmul.mubr.bf16.gmra.mxu0 %v1655
    %v2462 = vpop.f32.mrf.mxu0
    %v2463 = vadd.f32 %v2366, %v2462
    %v2464 = vpop.f32.mrf.mxu0
    %v2465 = vpop.f32.mrf.mxu0
    %v2466 = vadd.f32 %v2369, %v2465
    %v2467 = vpop.f32.mrf.mxu0
    %2468 = vmatprep.mubr.bf16.mxu0 %v1664
    %2469 = vmatmul.mubr.bf16.gmra.mxu0 %v1663
    %v2470 = vpop.f32.mrf.mxu0
    %v2471 = vadd.f32 %v2374, %v2470
    %v2472 = vpop.f32.mrf.mxu0
    %v2473 = vpop.f32.mrf.mxu0
    %v2474 = vadd.f32 %v2377, %v2473
    %v2475 = vpop.f32.mrf.mxu0
    %2476 = vmatprep.mubr.bf16.mxu0 %v1672
    %2477 = vmatmul.mubr.bf16.gmra.mxu0 %v1671
    %v2478 = vpop.f32.mrf.mxu0
    %v2479 = vadd.f32 %v2382, %v2478
    %v2480 = vpop.f32.mrf.mxu0
    %v2481 = vpop.f32.mrf.mxu0
    %v2482 = vadd.f32 %v2385, %v2481
    %v2483 = vpop.f32.mrf.mxu0
    %2484 = vmatprep.mubr.bf16.mxu0 %v1680
    %2485 = vmatmul.mubr.bf16.gmra.mxu0 %v1679
    %v2486 = vpop.f32.mrf.mxu0
    %v2487 = vadd.f32 %v2390, %v2486
    %v2488 = vpop.f32.mrf.mxu0
    %v2489 = vpop.f32.mrf.mxu0
    %v2490 = vadd.f32 %v2393, %v2489
    %v2491 = vpop.f32.mrf.mxu0
    %2492 = vmatprep.mubr.bf16.mxu0 %v1688
    %2493 = vmatmul.mubr.bf16.gmra.mxu0 %v1687
    %v2494 = vpop.f32.mrf.mxu0
    %v2495 = vadd.f32 %v2398, %v2494
    %v2496 = vpop.f32.mrf.mxu0
    %v2497 = vpop.f32.mrf.mxu0
    %v2498 = vadd.f32 %v2401, %v2497
    %v2499 = vpop.f32.mrf.mxu0
    %2500 = vdwg.mxu0
    %2501 = vmatprep.subr.bf16.mxu0 0
    %2502 = vmatpush1.bf16.msra.mxu0 %v2137
    %2503 = vmatprep.subr.bf16.mxu0 0
    %2504 = vmatpush1.bf16.msra.mxu0 %v2136
    %2505 = vmatprep.subr.bf16.mxu0 0
    %2506 = vmatpush1.bf16.msra.mxu0 %v2135
    %2507 = vmatprep.subr.bf16.mxu0 0
    %2508 = vmatpush1.bf16.msra.mxu0 %v2134
    %2509 = vmatprep.subr.bf16.mxu0 0
    %2510 = vmatpush1.bf16.msra.mxu0 %v2133
    %2511 = vmatprep.subr.bf16.mxu0 0
    %2512 = vmatpush1.bf16.msra.mxu0 %v2132
    %2513 = vmatprep.subr.bf16.mxu0 0
    %2514 = vmatpush1.bf16.msra.mxu0 %v2131
    %2515 = vmatprep.subr.bf16.mxu0 0
    %2516 = vmatpush1.bf16.msra.mxu0 %v2130
    %2517 = vmatprep.subr.bf16.mxu0 0
    %2518 = vmatpush2.bf16.msra.mxu0 %v2145
    %2519 = vmatprep.subr.bf16.mxu0 0
    %2520 = vmatpush2.bf16.msra.mxu0 %v2144
    %2521 = vmatprep.subr.bf16.mxu0 0
    %2522 = vmatpush2.bf16.msra.mxu0 %v2143
    %2523 = vmatprep.subr.bf16.mxu0 0
    %2524 = vmatpush2.bf16.msra.mxu0 %v2142
    %2525 = vmatprep.subr.bf16.mxu0 0
    %2526 = vmatpush2.bf16.msra.mxu0 %v2141
    %2527 = vmatprep.subr.bf16.mxu0 0
    %2528 = vmatpush2.bf16.msra.mxu0 %v2140
    %2529 = vmatprep.subr.bf16.mxu0 0
    %2530 = vmatpush2.bf16.msra.mxu0 %v2139
    %2531 = vmatprep.subr.bf16.mxu0 0
    %2532 = vmatpush2.bf16.msra.mxu0 %v2138
    %2533 = vmatprep.mubr.bf16.mxu0 %v1634
    %2534 = vmatmul.mubr.bf16.gmra.mxu0 %v1633
    %v2535 = vpop.f32.mrf.mxu0
    %v2536 = vadd.f32 %v2439, %v2535
    %v2537 = vpop.f32.mrf.mxu0
    %v2538 = vpop.f32.mrf.mxu0
    %v2539 = vadd.f32 %v2442, %v2538
    %v2540 = vpop.f32.mrf.mxu0
    %2541 = vmatprep.mubr.bf16.mxu0 %v1642
    %2542 = vmatmul.mubr.bf16.gmra.mxu0 %v1641
    %v2543 = vpop.f32.mrf.mxu0
    %v2544 = vadd.f32 %v2447, %v2543
    %v2545 = vpop.f32.mrf.mxu0
    %v2546 = vpop.f32.mrf.mxu0
    %v2547 = vadd.f32 %v2450, %v2546
    %v2548 = vpop.f32.mrf.mxu0
    %2549 = vmatprep.mubr.bf16.mxu0 %v1650
    %2550 = vmatmul.mubr.bf16.gmra.mxu0 %v1649
    %v2551 = vpop.f32.mrf.mxu0
    %v2552 = vadd.f32 %v2455, %v2551
    %v2553 = vpop.f32.mrf.mxu0
    %v2554 = vpop.f32.mrf.mxu0
    %v2555 = vadd.f32 %v2458, %v2554
    %v2556 = vpop.f32.mrf.mxu0
    %2557 = vmatprep.mubr.bf16.mxu0 %v1658
    %2558 = vmatmul.mubr.bf16.gmra.mxu0 %v1657
    %v2559 = vpop.f32.mrf.mxu0
    %v2560 = vadd.f32 %v2463, %v2559
    %v2561 = vpop.f32.mrf.mxu0
    %v2562 = vpop.f32.mrf.mxu0
    %v2563 = vadd.f32 %v2466, %v2562
    %v2564 = vpop.f32.mrf.mxu0
    %2565 = vmatprep.mubr.bf16.mxu0 %v1666
    %2566 = vmatmul.mubr.bf16.gmra.mxu0 %v1665
    %v2567 = vpop.f32.mrf.mxu0
    %v2568 = vadd.f32 %v2471, %v2567
    %v2569 = vpop.f32.mrf.mxu0
    %v2570 = vpop.f32.mrf.mxu0
    %v2571 = vadd.f32 %v2474, %v2570
    %v2572 = vpop.f32.mrf.mxu0
    %2573 = vmatprep.mubr.bf16.mxu0 %v1674
    %2574 = vmatmul.mubr.bf16.gmra.mxu0 %v1673
    %v2575 = vpop.f32.mrf.mxu0
    %v2576 = vadd.f32 %v2479, %v2575
    %v2577 = vpop.f32.mrf.mxu0
    %v2578 = vpop.f32.mrf.mxu0
    %v2579 = vadd.f32 %v2482, %v2578
    %v2580 = vpop.f32.mrf.mxu0
    %2581 = vmatprep.mubr.bf16.mxu0 %v1682
    %2582 = vmatmul.mubr.bf16.gmra.mxu0 %v1681
    %v2583 = vpop.f32.mrf.mxu0
    %v2584 = vadd.f32 %v2487, %v2583
    %v2585 = vpop.f32.mrf.mxu0
    %v2586 = vpop.f32.mrf.mxu0
    %v2587 = vadd.f32 %v2490, %v2586
    %v2588 = vpop.f32.mrf.mxu0
    %2589 = vmatprep.mubr.bf16.mxu0 %v1690
    %2590 = vmatmul.mubr.bf16.gmra.mxu0 %v1689
    %v2591 = vpop.f32.mrf.mxu0
    %v2592 = vadd.f32 %v2495, %v2591
    %v2593 = vpop.f32.mrf.mxu0
    %v2594 = vpop.f32.mrf.mxu0
    %v2595 = vadd.f32 %v2498, %v2594
    %v2596 = vpop.f32.mrf.mxu0
    %2597 = vdwg.mxu0
    %vm2598 = vcmp.gt.f32.partialorder %v2536, 0.0
    %vm2599 = vcmp.gt.f32.partialorder %v2539, 0.0
    %vm2600 = vcmp.gt.f32.partialorder %v2544, 0.0
    %vm2601 = vcmp.gt.f32.partialorder %v2547, 0.0
    %vm2602 = vcmp.gt.f32.partialorder %v2552, 0.0
    %vm2603 = vcmp.gt.f32.partialorder %v2555, 0.0
    %vm2604 = vcmp.gt.f32.partialorder %v2560, 0.0
    %vm2605 = vcmp.gt.f32.partialorder %v2563, 0.0
    %vm2606 = vcmp.gt.f32.partialorder %v2568, 0.0
    %vm2607 = vcmp.gt.f32.partialorder %v2571, 0.0
    %vm2608 = vcmp.gt.f32.partialorder %v2576, 0.0
    %vm2609 = vcmp.gt.f32.partialorder %v2579, 0.0
    %vm2610 = vcmp.gt.f32.partialorder %v2584, 0.0
    %vm2611 = vcmp.gt.f32.partialorder %v2587, 0.0
    %vm2612 = vcmp.gt.f32.partialorder %v2592, 0.0
    %vm2613 = vcmp.gt.f32.partialorder %v2595, 0.0
    %v2614 = vmul.f32 %v2536, 0.01
    %v2615 = vmul.f32 %v2539, 0.01
    %v2616 = vmul.f32 %v2544, 0.01
    %v2617 = vmul.f32 %v2547, 0.01
    %v2618 = vmul.f32 %v2552, 0.01
    %v2619 = vmul.f32 %v2555, 0.01
    %v2620 = vmul.f32 %v2560, 0.01
    %v2621 = vmul.f32 %v2563, 0.01
    %v2622 = vmul.f32 %v2568, 0.01
    %v2623 = vmul.f32 %v2571, 0.01
    %v2624 = vmul.f32 %v2576, 0.01
    %v2625 = vmul.f32 %v2579, 0.01
    %v2626 = vmul.f32 %v2584, 0.01
    %v2627 = vmul.f32 %v2587, 0.01
    %v2628 = vmul.f32 %v2592, 0.01
    %v2629 = vmul.f32 %v2595, 0.01
    %v2630 = vsel %vm2598, %v2536, %v2614
    %v2631 = vsel %vm2599, %v2539, %v2615
    %v2632 = vsel %vm2600, %v2544, %v2616
    %v2633 = vsel %vm2601, %v2547, %v2617
    %v2634 = vsel %vm2602, %v2552, %v2618
    %v2635 = vsel %vm2603, %v2555, %v2619
    %v2636 = vsel %vm2604, %v2560, %v2620
    %v2637 = vsel %vm2605, %v2563, %v2621
    %v2638 = vsel %vm2606, %v2568, %v2622
    %v2639 = vsel %vm2607, %v2571, %v2623
    %v2640 = vsel %vm2608, %v2576, %v2624
    %v2641 = vsel %vm2609, %v2579, %v2625
    %v2642 = vsel %vm2610, %v2584, %v2626
    %v2643 = vsel %vm2611, %v2587, %v2627
    %v2644 = vsel %vm2612, %v2592, %v2628
    %v2645 = vsel %vm2613, %v2595, %v2629
    %v2646 = vpack.c.bf16 %v2631, %v2630
    %v2647 = vpack.c.bf16 %v2633, %v2632
    %v2648 = vpack.c.bf16 %v2635, %v2634
    %v2649 = vpack.c.bf16 %v2637, %v2636
    %v2650 = vpack.c.bf16 %v2639, %v2638
    %v2651 = vpack.c.bf16 %v2641, %v2640
    %v2652 = vpack.c.bf16 %v2643, %v2642
    %v2653 = vpack.c.bf16 %v2645, %v2644
    %v2654 = vld [vmem:[#allocation8] sm:$0xf]
    %v2655 = vld [vmem:[#allocation8 + $0x4] sm:$0xf]
    %v2656 = vld [vmem:[#allocation8 + $0x8] sm:$0xf]
    %v2657 = vld [vmem:[#allocation8 + $0xc] sm:$0xf]
    %v2658 = vld [vmem:[#allocation8 + $0x10] sm:$0xf]
    %v2659 = vld [vmem:[#allocation8 + $0x14] sm:$0xf]
    %v2660 = vld [vmem:[#allocation8 + $0x18] sm:$0xf]
    %v2661 = vld [vmem:[#allocation8 + $0x1c] sm:$0xf]
    %v2662 = vld [vmem:[#allocation8 + $0x20] sm:$0xf]
    %v2663 = vld [vmem:[#allocation8 + $0x24] sm:$0xf]
    %v2664 = vld [vmem:[#allocation8 + $0x28] sm:$0xf]
    %v2665 = vld [vmem:[#allocation8 + $0x2c] sm:$0xf]
    %v2666 = vld [vmem:[#allocation8 + $0x30] sm:$0xf]
    %v2667 = vld [vmem:[#allocation8 + $0x34] sm:$0xf]
    %v2668 = vld [vmem:[#allocation8 + $0x38] sm:$0xf]
    %v2669 = vld [vmem:[#allocation8 + $0x3c] sm:$0xf]
    %v2670 = vld [vmem:[%s4] sm:$0x1]
    %v2672 = vlaneseq
    %v2673 = vshrl.u32 %v2672, 7
    %v2674 = vsub.s32 0, %v2673
    %v2675 = vrot.slane %v2670, %v2674
    %v2693 = vunpack.c.l.b16 %v2654
    %v2694 = vunpack.c.l.b16 %v2655
    %v2695 = vunpack.c.l.b16 %v2656
    %v2696 = vunpack.c.l.b16 %v2657
    %v2697 = vunpack.c.l.b16 %v2658
    %v2698 = vunpack.c.l.b16 %v2659
    %v2699 = vunpack.c.l.b16 %v2660
    %v2700 = vunpack.c.l.b16 %v2661
    %v2701 = vunpack.c.l.b16 %v2662
    %v2702 = vunpack.c.l.b16 %v2663
    %v2703 = vunpack.c.l.b16 %v2664
    %v2704 = vunpack.c.l.b16 %v2665
    %v2705 = vunpack.c.l.b16 %v2666
    %v2706 = vunpack.c.l.b16 %v2667
    %v2707 = vunpack.c.l.b16 %v2668
    %v2708 = vunpack.c.l.b16 %v2669
    %v2709 = vpack.c.b16 %v2694, %v2693
    %v2710 = vpack.c.b16 %v2696, %v2695
    %v2711 = vpack.c.b16 %v2698, %v2697
    %v2712 = vpack.c.b16 %v2700, %v2699
    %v2713 = vpack.c.b16 %v2702, %v2701
    %v2714 = vpack.c.b16 %v2704, %v2703
    %v2715 = vpack.c.b16 %v2706, %v2705
    %v2716 = vpack.c.b16 %v2708, %v2707
    %2725 = vmatprep.subr.bf16.mxu0 0
    %2726 = vmatpush1.bf16.msra.mxu0 %v2716
    %2727 = vmatprep.subr.bf16.mxu0 0
    %2728 = vmatpush1.bf16.msra.mxu0 %v2715
    %2729 = vmatprep.subr.bf16.mxu0 0
    %2730 = vmatpush1.bf16.msra.mxu0 %v2714
    %2731 = vmatprep.subr.bf16.mxu0 0
    %2732 = vmatpush1.bf16.msra.mxu0 %v2713
    %2733 = vmatprep.subr.bf16.mxu0 0
    %2734 = vmatpush1.bf16.msra.mxu0 %v2712
    %2735 = vmatprep.subr.bf16.mxu0 0
    %2736 = vmatpush1.bf16.msra.mxu0 %v2711
    %2737 = vmatprep.subr.bf16.mxu0 0
    %2738 = vmatpush1.bf16.msra.mxu0 %v2710
    %2739 = vmatprep.subr.bf16.mxu0 0
    %2740 = vmatpush1.bf16.msra.mxu0 %v2709
    %2741 = vmatprep.subr.bf16.mxu0 0
    %2742 = vmatpush2.bf16.msra.mxu0 0
    %2743 = vmatprep.subr.bf16.mxu0 0
    %2744 = vmatpush2.bf16.msra.mxu0 0
    %2745 = vmatprep.subr.bf16.mxu0 0
    %2746 = vmatpush2.bf16.msra.mxu0 0
    %2747 = vmatprep.subr.bf16.mxu0 0
    %2748 = vmatpush2.bf16.msra.mxu0 0
    %2749 = vmatprep.subr.bf16.mxu0 0
    %2750 = vmatpush2.bf16.msra.mxu0 0
    %2751 = vmatprep.subr.bf16.mxu0 0
    %2752 = vmatpush2.bf16.msra.mxu0 0
    %2753 = vmatprep.subr.bf16.mxu0 0
    %2754 = vmatpush2.bf16.msra.mxu0 0
    %2755 = vmatprep.subr.bf16.mxu0 0
    %2756 = vmatpush2.bf16.msra.mxu0 0
    %2757 = vmatprep.mubr.bf16.mxu0 0
    %2758 = vmatmul.mubr.bf16.gmra.mxu0 %v2646
    %v2759 = vpop.f32.mrf.mxu0
    %v2760 = vadd.f32 %v2675, %v2759
    %v2761 = vpop.f32.mrf.mxu0
    %v2762 = vpop.f32.mrf.mxu0
    %v2763 = vadd.f32 %v2675, %v2762
    %v2764 = vpop.f32.mrf.mxu0
    %2765 = vmatprep.mubr.bf16.mxu0 0
    %2766 = vmatmul.mubr.bf16.gmra.mxu0 %v2647
    %v2767 = vpop.f32.mrf.mxu0
    %v2768 = vadd.f32 %v2675, %v2767
    %v2769 = vpop.f32.mrf.mxu0
    %v2770 = vpop.f32.mrf.mxu0
    %v2771 = vadd.f32 %v2675, %v2770
    %v2772 = vpop.f32.mrf.mxu0
    %2773 = vmatprep.mubr.bf16.mxu0 0
    %2774 = vmatmul.mubr.bf16.gmra.mxu0 %v2648
    %v2775 = vpop.f32.mrf.mxu0
    %v2776 = vadd.f32 %v2675, %v2775
    %v2777 = vpop.f32.mrf.mxu0
    %v2778 = vpop.f32.mrf.mxu0
    %v2779 = vadd.f32 %v2675, %v2778
    %v2780 = vpop.f32.mrf.mxu0
    %2781 = vmatprep.mubr.bf16.mxu0 0
    %2782 = vmatmul.mubr.bf16.gmra.mxu0 %v2649
    %v2783 = vpop.f32.mrf.mxu0
    %v2784 = vadd.f32 %v2675, %v2783
    %v2785 = vpop.f32.mrf.mxu0
    %v2786 = vpop.f32.mrf.mxu0
    %v2787 = vadd.f32 %v2675, %v2786
    %v2788 = vpop.f32.mrf.mxu0
    %2789 = vmatprep.mubr.bf16.mxu0 0
    %2790 = vmatmul.mubr.bf16.gmra.mxu0 %v2650
    %v2791 = vpop.f32.mrf.mxu0
    %v2792 = vadd.f32 %v2675, %v2791
    %v2793 = vpop.f32.mrf.mxu0
    %v2794 = vpop.f32.mrf.mxu0
    %v2795 = vadd.f32 %v2675, %v2794
    %v2796 = vpop.f32.mrf.mxu0
    %2797 = vmatprep.mubr.bf16.mxu0 0
    %2798 = vmatmul.mubr.bf16.gmra.mxu0 %v2651
    %v2799 = vpop.f32.mrf.mxu0
    %v2800 = vadd.f32 %v2675, %v2799
    %v2801 = vpop.f32.mrf.mxu0
    %v2802 = vpop.f32.mrf.mxu0
    %v2803 = vadd.f32 %v2675, %v2802
    %v2804 = vpop.f32.mrf.mxu0
    %2805 = vmatprep.mubr.bf16.mxu0 0
    %2806 = vmatmul.mubr.bf16.gmra.mxu0 %v2652
    %v2807 = vpop.f32.mrf.mxu0
    %v2808 = vadd.f32 %v2675, %v2807
    %v2809 = vpop.f32.mrf.mxu0
    %v2810 = vpop.f32.mrf.mxu0
    %v2811 = vadd.f32 %v2675, %v2810
    %v2812 = vpop.f32.mrf.mxu0
    %2813 = vmatprep.mubr.bf16.mxu0 0
    %2814 = vmatmul.mubr.bf16.gmra.mxu0 %v2653
    %v2815 = vpop.f32.mrf.mxu0
    %v2816 = vadd.f32 %v2675, %v2815
    %v2817 = vpop.f32.mrf.mxu0
    %v2818 = vpop.f32.mrf.mxu0
    %v2819 = vadd.f32 %v2675, %v2818
    %v2820 = vpop.f32.mrf.mxu0
    %2821 = vdwg.mxu0
    %vm2822 = vcmp.gt.f32.partialorder %v2760, 0.0
    %vm2823 = vcmp.gt.f32.partialorder %v2763, 0.0
    %vm2824 = vcmp.gt.f32.partialorder %v2768, 0.0
    %vm2825 = vcmp.gt.f32.partialorder %v2771, 0.0
    %vm2826 = vcmp.gt.f32.partialorder %v2776, 0.0
    %vm2827 = vcmp.gt.f32.partialorder %v2779, 0.0
    %vm2828 = vcmp.gt.f32.partialorder %v2784, 0.0
    %vm2829 = vcmp.gt.f32.partialorder %v2787, 0.0
    %vm2830 = vcmp.gt.f32.partialorder %v2792, 0.0
    %vm2831 = vcmp.gt.f32.partialorder %v2795, 0.0
    %vm2832 = vcmp.gt.f32.partialorder %v2800, 0.0
    %vm2833 = vcmp.gt.f32.partialorder %v2803, 0.0
    %vm2834 = vcmp.gt.f32.partialorder %v2808, 0.0
    %vm2835 = vcmp.gt.f32.partialorder %v2811, 0.0
    %vm2836 = vcmp.gt.f32.partialorder %v2816, 0.0
    %vm2837 = vcmp.gt.f32.partialorder %v2819, 0.0
    %v2838 = vmul.f32 %v2760, 0.01
    %v2839 = vmul.f32 %v2763, 0.01
    %v2840 = vmul.f32 %v2768, 0.01
    %v2841 = vmul.f32 %v2771, 0.01
    %v2842 = vmul.f32 %v2776, 0.01
    %v2843 = vmul.f32 %v2779, 0.01
    %v2844 = vmul.f32 %v2784, 0.01
    %v2845 = vmul.f32 %v2787, 0.01
    %v2846 = vmul.f32 %v2792, 0.01
    %v2847 = vmul.f32 %v2795, 0.01
    %v2848 = vmul.f32 %v2800, 0.01
    %v2849 = vmul.f32 %v2803, 0.01
    %v2850 = vmul.f32 %v2808, 0.01
    %v2851 = vmul.f32 %v2811, 0.01
    %v2852 = vmul.f32 %v2816, 0.01
    %v2853 = vmul.f32 %v2819, 0.01
    %v2854 = vsel %vm2822, %v2760, %v2838
    %v2855 = vsel %vm2823, %v2763, %v2839
    %v2856 = vsel %vm2824, %v2768, %v2840
    %v2857 = vsel %vm2825, %v2771, %v2841
    %v2858 = vsel %vm2826, %v2776, %v2842
    %v2859 = vsel %vm2827, %v2779, %v2843
    %v2860 = vsel %vm2828, %v2784, %v2844
    %v2861 = vsel %vm2829, %v2787, %v2845
    %v2862 = vsel %vm2830, %v2792, %v2846
    %v2863 = vsel %vm2831, %v2795, %v2847
    %v2864 = vsel %vm2832, %v2800, %v2848
    %v2865 = vsel %vm2833, %v2803, %v2849
    %v2866 = vsel %vm2834, %v2808, %v2850
    %v2867 = vsel %vm2835, %v2811, %v2851
    %v2868 = vsel %vm2836, %v2816, %v2852
    %v2869 = vsel %vm2837, %v2819, %v2853
    %v2870 = vpack.c.bf16 %v2855, %v2854
    %v2871 = vpack.c.bf16 %v2857, %v2856
    %v2872 = vpack.c.bf16 %v2859, %v2858
    %v2873 = vpack.c.bf16 %v2861, %v2860
    %v2874 = vpack.c.bf16 %v2863, %v2862
    %v2875 = vpack.c.bf16 %v2865, %v2864
    %v2876 = vpack.c.bf16 %v2867, %v2866
    %v2877 = vpack.c.bf16 %v2869, %v2868
    %v2878 = vld [vmem:[#allocation9] sm:$0xf]
    %v2879 = vld [vmem:[#allocation9 + $0x4] sm:$0xf]
    %v2880 = vld [vmem:[#allocation9 + $0x8] sm:$0xf]
    %v2881 = vld [vmem:[#allocation9 + $0xc] sm:$0xf]
    %v2882 = vld [vmem:[#allocation9 + $0x10] sm:$0xf]
    %v2883 = vld [vmem:[#allocation9 + $0x14] sm:$0xf]
    %v2884 = vld [vmem:[#allocation9 + $0x18] sm:$0xf]
    %v2885 = vld [vmem:[#allocation9 + $0x1c] sm:$0xf]
    %v2886 = vld [vmem:[#allocation9 + $0x20] sm:$0xf]
    %v2887 = vld [vmem:[#allocation9 + $0x24] sm:$0xf]
    %v2888 = vld [vmem:[#allocation9 + $0x28] sm:$0xf]
    %v2889 = vld [vmem:[#allocation9 + $0x2c] sm:$0xf]
    %v2890 = vld [vmem:[#allocation9 + $0x30] sm:$0xf]
    %v2891 = vld [vmem:[#allocation9 + $0x34] sm:$0xf]
    %v2892 = vld [vmem:[#allocation9 + $0x38] sm:$0xf]
    %v2893 = vld [vmem:[#allocation9 + $0x3c] sm:$0xf]
    %v2894 = vld [vmem:[%s6] sm:$0x1]
    %v2896 = vlaneseq
    %v2897 = vshrl.u32 %v2896, 7
    %v2898 = vsub.s32 0, %v2897
    %v2899 = vrot.slane %v2894, %v2898
    %v2917 = vunpack.c.l.b16 %v2878
    %v2918 = vunpack.c.l.b16 %v2879
    %v2919 = vunpack.c.l.b16 %v2880
    %v2920 = vunpack.c.l.b16 %v2881
    %v2921 = vunpack.c.l.b16 %v2882
    %v2922 = vunpack.c.l.b16 %v2883
    %v2923 = vunpack.c.l.b16 %v2884
    %v2924 = vunpack.c.l.b16 %v2885
    %v2925 = vunpack.c.l.b16 %v2886
    %v2926 = vunpack.c.l.b16 %v2887
    %v2927 = vunpack.c.l.b16 %v2888
    %v2928 = vunpack.c.l.b16 %v2889
    %v2929 = vunpack.c.l.b16 %v2890
    %v2930 = vunpack.c.l.b16 %v2891
    %v2931 = vunpack.c.l.b16 %v2892
    %v2932 = vunpack.c.l.b16 %v2893
    %v2933 = vpack.c.b16 %v2918, %v2917
    %v2934 = vpack.c.b16 %v2920, %v2919
    %v2935 = vpack.c.b16 %v2922, %v2921
    %v2936 = vpack.c.b16 %v2924, %v2923
    %v2937 = vpack.c.b16 %v2926, %v2925
    %v2938 = vpack.c.b16 %v2928, %v2927
    %v2939 = vpack.c.b16 %v2930, %v2929
    %v2940 = vpack.c.b16 %v2932, %v2931
    %2949 = vmatprep.subr.bf16.mxu0 0
    %2950 = vmatpush1.bf16.msra.mxu0 %v2940
    %2951 = vmatprep.subr.bf16.mxu0 0
    %2952 = vmatpush1.bf16.msra.mxu0 %v2939
    %2953 = vmatprep.subr.bf16.mxu0 0
    %2954 = vmatpush1.bf16.msra.mxu0 %v2938
    %2955 = vmatprep.subr.bf16.mxu0 0
    %2956 = vmatpush1.bf16.msra.mxu0 %v2937
    %2957 = vmatprep.subr.bf16.mxu0 0
    %2958 = vmatpush1.bf16.msra.mxu0 %v2936
    %2959 = vmatprep.subr.bf16.mxu0 0
    %2960 = vmatpush1.bf16.msra.mxu0 %v2935
    %2961 = vmatprep.subr.bf16.mxu0 0
    %2962 = vmatpush1.bf16.msra.mxu0 %v2934
    %2963 = vmatprep.subr.bf16.mxu0 0
    %2964 = vmatpush1.bf16.msra.mxu0 %v2933
    %2965 = vmatprep.subr.bf16.mxu0 0
    %2966 = vmatpush2.bf16.msra.mxu0 0
    %2967 = vmatprep.subr.bf16.mxu0 0
    %2968 = vmatpush2.bf16.msra.mxu0 0
    %2969 = vmatprep.subr.bf16.mxu0 0
    %2970 = vmatpush2.bf16.msra.mxu0 0
    %2971 = vmatprep.subr.bf16.mxu0 0
    %2972 = vmatpush2.bf16.msra.mxu0 0
    %2973 = vmatprep.subr.bf16.mxu0 0
    %2974 = vmatpush2.bf16.msra.mxu0 0
    %2975 = vmatprep.subr.bf16.mxu0 0
    %2976 = vmatpush2.bf16.msra.mxu0 0
    %2977 = vmatprep.subr.bf16.mxu0 0
    %2978 = vmatpush2.bf16.msra.mxu0 0
    %2979 = vmatprep.subr.bf16.mxu0 0
    %2980 = vmatpush2.bf16.msra.mxu0 0
    %2981 = vmatprep.mubr.bf16.mxu0 0
    %2982 = vmatmul.mubr.bf16.gmra.mxu0 %v2870
    %v2983 = vpop.f32.mrf.mxu0
    %v2984 = vadd.f32 %v2899, %v2983
    %v2985 = vpop.f32.mrf.mxu0
    %v2986 = vpop.f32.mrf.mxu0
    %v2987 = vadd.f32 %v2899, %v2986
    %v2988 = vpop.f32.mrf.mxu0
    %2989 = vmatprep.mubr.bf16.mxu0 0
    %2990 = vmatmul.mubr.bf16.gmra.mxu0 %v2871
    %v2991 = vpop.f32.mrf.mxu0
    %v2992 = vadd.f32 %v2899, %v2991
    %v2993 = vpop.f32.mrf.mxu0
    %v2994 = vpop.f32.mrf.mxu0
    %v2995 = vadd.f32 %v2899, %v2994
    %v2996 = vpop.f32.mrf.mxu0
    %2997 = vmatprep.mubr.bf16.mxu0 0
    %2998 = vmatmul.mubr.bf16.gmra.mxu0 %v2872
    %v2999 = vpop.f32.mrf.mxu0
    %v3000 = vadd.f32 %v2899, %v2999
    %v3001 = vpop.f32.mrf.mxu0
    %v3002 = vpop.f32.mrf.mxu0
    %v3003 = vadd.f32 %v2899, %v3002
    %v3004 = vpop.f32.mrf.mxu0
    %3005 = vmatprep.mubr.bf16.mxu0 0
    %3006 = vmatmul.mubr.bf16.gmra.mxu0 %v2873
    %v3007 = vpop.f32.mrf.mxu0
    %v3008 = vadd.f32 %v2899, %v3007
    %v3009 = vpop.f32.mrf.mxu0
    %v3010 = vpop.f32.mrf.mxu0
    %v3011 = vadd.f32 %v2899, %v3010
    %v3012 = vpop.f32.mrf.mxu0
    %3013 = vmatprep.mubr.bf16.mxu0 0
    %3014 = vmatmul.mubr.bf16.gmra.mxu0 %v2874
    %v3015 = vpop.f32.mrf.mxu0
    %v3016 = vadd.f32 %v2899, %v3015
    %v3017 = vpop.f32.mrf.mxu0
    %v3018 = vpop.f32.mrf.mxu0
    %v3019 = vadd.f32 %v2899, %v3018
    %v3020 = vpop.f32.mrf.mxu0
    %3021 = vmatprep.mubr.bf16.mxu0 0
    %3022 = vmatmul.mubr.bf16.gmra.mxu0 %v2875
    %v3023 = vpop.f32.mrf.mxu0
    %v3024 = vadd.f32 %v2899, %v3023
    %v3025 = vpop.f32.mrf.mxu0
    %v3026 = vpop.f32.mrf.mxu0
    %v3027 = vadd.f32 %v2899, %v3026
    %v3028 = vpop.f32.mrf.mxu0
    %3029 = vmatprep.mubr.bf16.mxu0 0
    %3030 = vmatmul.mubr.bf16.gmra.mxu0 %v2876
    %v3031 = vpop.f32.mrf.mxu0
    %v3032 = vadd.f32 %v2899, %v3031
    %v3033 = vpop.f32.mrf.mxu0
    %v3034 = vpop.f32.mrf.mxu0
    %v3035 = vadd.f32 %v2899, %v3034
    %v3036 = vpop.f32.mrf.mxu0
    %3037 = vmatprep.mubr.bf16.mxu0 0
    %3038 = vmatmul.mubr.bf16.gmra.mxu0 %v2877
    %v3039 = vpop.f32.mrf.mxu0
    %v3040 = vadd.f32 %v2899, %v3039
    %v3041 = vpop.f32.mrf.mxu0
    %v3042 = vpop.f32.mrf.mxu0
    %v3043 = vadd.f32 %v2899, %v3042
    %v3044 = vpop.f32.mrf.mxu0
    %3045 = vdwg.mxu0
    %vm3046 = vcmp.gt.f32.partialorder %v2984, 0.0
    %vm3047 = vcmp.gt.f32.partialorder %v2987, 0.0
    %vm3048 = vcmp.gt.f32.partialorder %v2992, 0.0
    %vm3049 = vcmp.gt.f32.partialorder %v2995, 0.0
    %vm3050 = vcmp.gt.f32.partialorder %v3000, 0.0
    %vm3051 = vcmp.gt.f32.partialorder %v3003, 0.0
    %vm3052 = vcmp.gt.f32.partialorder %v3008, 0.0
    %vm3053 = vcmp.gt.f32.partialorder %v3011, 0.0
    %vm3054 = vcmp.gt.f32.partialorder %v3016, 0.0
    %vm3055 = vcmp.gt.f32.partialorder %v3019, 0.0
    %vm3056 = vcmp.gt.f32.partialorder %v3024, 0.0
    %vm3057 = vcmp.gt.f32.partialorder %v3027, 0.0
    %vm3058 = vcmp.gt.f32.partialorder %v3032, 0.0
    %vm3059 = vcmp.gt.f32.partialorder %v3035, 0.0
    %vm3060 = vcmp.gt.f32.partialorder %v3040, 0.0
    %vm3061 = vcmp.gt.f32.partialorder %v3043, 0.0
    %v3062 = vmul.f32 %v2984, 0.01
    %v3063 = vmul.f32 %v2987, 0.01
    %v3064 = vmul.f32 %v2992, 0.01
    %v3065 = vmul.f32 %v2995, 0.01
    %v3066 = vmul.f32 %v3000, 0.01
    %v3067 = vmul.f32 %v3003, 0.01
    %v3068 = vmul.f32 %v3008, 0.01
    %v3069 = vmul.f32 %v3011, 0.01
    %v3070 = vmul.f32 %v3016, 0.01
    %v3071 = vmul.f32 %v3019, 0.01
    %v3072 = vmul.f32 %v3024, 0.01
    %v3073 = vmul.f32 %v3027, 0.01
    %v3074 = vmul.f32 %v3032, 0.01
    %v3075 = vmul.f32 %v3035, 0.01
    %v3076 = vmul.f32 %v3040, 0.01
    %v3077 = vmul.f32 %v3043, 0.01
    %v3078 = vsel %vm3046, %v2984, %v3062
    %v3079 = vsel %vm3047, %v2987, %v3063
    %v3080 = vsel %vm3048, %v2992, %v3064
    %v3081 = vsel %vm3049, %v2995, %v3065
    %v3082 = vsel %vm3050, %v3000, %v3066
    %v3083 = vsel %vm3051, %v3003, %v3067
    %v3084 = vsel %vm3052, %v3008, %v3068
    %v3085 = vsel %vm3053, %v3011, %v3069
    %v3086 = vsel %vm3054, %v3016, %v3070
    %v3087 = vsel %vm3055, %v3019, %v3071
    %v3088 = vsel %vm3056, %v3024, %v3072
    %v3089 = vsel %vm3057, %v3027, %v3073
    %v3090 = vsel %vm3058, %v3032, %v3074
    %v3091 = vsel %vm3059, %v3035, %v3075
    %v3092 = vsel %vm3060, %v3040, %v3076
    %v3093 = vsel %vm3061, %v3043, %v3077
    %v3094 = vld [vmem:[%s7] sm:$0x1]
    %v3095 = vpack.c.bf16 %v3079, %v3078
    %v3096 = vpack.c.bf16 %v3081, %v3080
    %v3097 = vpack.c.bf16 %v3083, %v3082
    %v3098 = vpack.c.bf16 %v3085, %v3084
    %v3099 = vpack.c.bf16 %v3087, %v3086
    %v3100 = vpack.c.bf16 %v3089, %v3088
    %v3101 = vpack.c.bf16 %v3091, %v3090
    %v3102 = vpack.c.bf16 %v3093, %v3092
    %v3103 = vld [vmem:[#allocation2] sm:$0x1]
    %3105 = vset.pattern.permute.xlu0 0
    %3106 = vperm.xlu0 %3105, %v3103
    %v3107 = vpop.permute.xlu0 %3106
    %v3109 = vlaneseq
    %v3110 = vshrl.u32 %v3109, 7
    %v3111 = vsub.s32 0, %v3110
    %v3112 = vrot.slane %v3107, %v3111
    %3113 = vmatprep.subr.bf16.mxu0 0
    %3114 = vmatpush1.bf16.xpose.msra.mxu0 %v3102
    %3115 = vmatprep.subr.bf16.mxu0 0
    %3116 = vmatpush1.bf16.xpose.msra.mxu0 %v3101
    %3117 = vmatprep.subr.bf16.mxu0 0
    %3118 = vmatpush1.bf16.xpose.msra.mxu0 %v3100
    %3119 = vmatprep.subr.bf16.mxu0 0
    %3120 = vmatpush1.bf16.xpose.msra.mxu0 %v3099
    %3121 = vmatprep.subr.bf16.mxu0 0
    %3122 = vmatpush1.bf16.xpose.msra.mxu0 %v3098
    %3123 = vmatprep.subr.bf16.mxu0 0
    %3124 = vmatpush1.bf16.xpose.msra.mxu0 %v3097
    %3125 = vmatprep.subr.bf16.mxu0 0
    %3126 = vmatpush1.bf16.xpose.msra.mxu0 %v3096
    %3127 = vmatprep.subr.bf16.mxu0 0
    %3128 = vmatpush1.bf16.xpose.msra.mxu0 %v3095
    %3129 = vmatprep.subr.bf16.mxu0 0
    %3130 = vmatpush2.bf16.xpose.msra.mxu0 0
    %3131 = vmatprep.subr.bf16.mxu0 0
    %3132 = vmatpush2.bf16.xpose.msra.mxu0 0
    %3133 = vmatprep.subr.bf16.mxu0 0
    %3134 = vmatpush2.bf16.xpose.msra.mxu0 0
    %3135 = vmatprep.subr.bf16.mxu0 0
    %3136 = vmatpush2.bf16.xpose.msra.mxu0 0
    %3137 = vmatprep.subr.bf16.mxu0 0
    %3138 = vmatpush2.bf16.xpose.msra.mxu0 0
    %3139 = vmatprep.subr.bf16.mxu0 0
    %3140 = vmatpush2.bf16.xpose.msra.mxu0 0
    %3141 = vmatprep.subr.bf16.mxu0 0
    %3142 = vmatpush2.bf16.xpose.msra.mxu0 0
    %3143 = vmatprep.subr.bf16.mxu0 0
    %3144 = vmatpush2.bf16.xpose.msra.mxu0 0
    %3145 = vmatprep.mubr.bf16.mxu0 0
    %3146 = vmatmul.mubr.bf16.gmra.mxu0 %v3094
    %v3147 = vpop.f32.mrf.mxu0
    %v3148 = vadd.f32 %v3112, %v3147
    %v3149 = vpop.f32.mrf.mxu0
    %v3150 = vpop.f32.mrf.mxu0
    %v3151 = vpop.f32.mrf.mxu0
    %3152 = vdwg.mxu0
    %v3153 = vsub.f32 0.0, %v3148
    %v3154 = vmul.f32 %v3153, 1.442695
    %v3155 = vpow.pop %v3154
    %v3156 = vadd.f32 %v3155, 1.0
    %v3157 = vrcp.pop %v3156
    %v3158 = vmul.f32 1.0, %v3157
    %3159 = vst [vmem:[#allocation11] sm:$0x1] %v3158
    // Predicated region
    $region54: #{tpu_custom_call.1} parent=1 // pred_check
      _
    $region55: #{tpu_custom_call.1} parent=1 // pred_check_branch
      %3161 = sbr.rel (0) target = $region57
    $region56: #{tpu_custom_call.1} parent=1 // pred_region
      %s3163 = ssub.s32 16, 16
      %3164 = vsyncadd [#allocation5], %s3163
      %s3166 = sshll.u32 [#allocation11], 4
      %s3167 = int_to_ptr.vmem [resolvable:$true] %s3166
      %3169 = dma.vmem_to_hbm [thread:$0]  %s3167, 16, %s9, [#allocation5]
    $region57: #{tpu_custom_call.1} parent=1 // pred_fallthru
      _
    // Predicated region
    $region58: #{tpu_custom_call.1} parent=1 // pred_check
      _
    $region59: #{tpu_custom_call.1} parent=1 // pred_check_branch
      %3171 = sbr.rel (0) target = $region61
    $region60: #{tpu_custom_call.1} parent=1 // pred_region
      %3172 = dma.done [#allocation5], 16
    $region61: #{tpu_custom_call.1} parent=1 // pred_fallthru
      _
    %3173 = vsyncpa [#allocation4], 1
    %3174 = vsyncpa [#allocation7], 1
    %3175 = vsyncpa [#allocation10], 1
    %3176 = vsyncpa [#allocation5], 1

</llo_original>
